<compile_context>
chip_gen: v7x
topology: tpu7x:2x2x1
jax: 0.10.0
libtpu: 0.0.40
codegen_flags: <defaults>
</compile_context>

<pallas_src>
import functools

import jax
import jax.numpy as jnp
import numpy as np
from jax import lax
from jax.experimental import pallas as pl
from jax.experimental.pallas import tpu as pltpu

_DP = 8            # padded coordinate width (lanes) per neighbour slot
_LANE_DIST = 6     # lane (within the 8-lane group) carrying the distance
_LANE_IDX = 7      # lane carrying the neighbour index (as exact float)


def _group_points_kernel(src_ref, srcT_ref, tgt_ref, slab_ref, *, K, radius):
    # src_ref : (Ns, 8) augmented source rows  [-2x, -2y, -2z, 1, |s|^2, 0, 0, 0]
    # srcT_ref: (8, Ns) the same rows, pre-transposed in the wrapper
    # tgt_ref : (Tt, 8) augmented target rows  [ x,  y,  z, |t|^2, 1, 0, 0, 0]
    src_aug = src_ref[...]
    srcT_aug = srcT_ref[...]
    tgt_aug = tgt_ref[...]
    Ns = src_aug.shape[0]
    Tt = tgt_aug.shape[0]

    # One standard MXU matmul gives the full squared-distance tile:
    #   d = |t|^2 - 2 t.s + |s|^2   (norm terms carried by the padded lanes)
    d = jnp.dot(tgt_aug, srcT_aug, preferred_element_type=jnp.float32)   # (Tt, Ns)

    col = lax.broadcasted_iota(jnp.int32, (Tt, Ns), 1)
    lane = lax.broadcasted_iota(jnp.int32, (Tt, _DP), 1)
    rad2 = jnp.float32(radius * radius)
    inv_r = jnp.float32(1.0 / (radius + 1e-6))
    neg_half_inv_r = jnp.float32(-0.5 / (radius + 1e-6))
    # hoisted: scaled target (only lanes 0..2 survive the wrapper's slice)
    tgt_s = tgt_aug * inv_r

    work = d
    for k in range(K):
        # exact argmin, tie broken to lowest column (matches stable top-k)
        mn = jnp.min(work, axis=-1, keepdims=True)                       # (Tt, 1)
        amn = jnp.min(jnp.where(work == mn, col, Ns),
                      axis=-1, keepdims=True)                            # (Tt, 1)
        m = col == amn                                                   # one-hot row
        # reuse the mask both to eliminate this neighbour ...
        work = jnp.where(m, jnp.float32(jnp.inf), work)
        # ... and as the gather matmul:  (Tt, Ns) @ (Ns, 8) on the MXU.
        g = jnp.dot(m.astype(jnp.float32), src_aug,
                    preferred_element_type=jnp.float32)                  # (Tt, 8)

        valid = rad2 >= mn                                               # (Tt, 1)
        g = jnp.where(valid, g, 0.0)      # gather_idx zeroes out-of-radius rows
        # lanes 0..2 of g are -2*s  ->  (s - t)/(rad+1e-6); spare lanes are
        # repurposed to carry dist and idx so the kernel has ONE lane-dense
        # output slab instead of three (two of them 8-lane / masked-store).
        row = g * neg_half_inv_r - tgt_s                                 # (Tt, 8)
        dist = jnp.sqrt(jnp.maximum(mn, 1e-9)) * inv_r                   # (Tt, 1)
        idx_f = jnp.where(valid, amn, -1).astype(jnp.float32)            # exact (Ns < 2^24)
        row = jnp.where(lane == _LANE_DIST, dist, row)
        row = jnp.where(lane == _LANE_IDX, idx_f, row)
        slab_ref[:, k * _DP:(k + 1) * _DP] = row


def _pick_target_tile(Nt, Ns, K):
    """Largest target tile that fits a conservative per-step VMEM budget."""
    nt8 = ((Nt + 7) // 8) * 8
    budget = 8 * 1024 * 1024
    for tt in (512, 256, 128):
        if tt > nt8:
            continue
        need = 4 * (2 * tt * Ns           # distance / work tiles
                    + 2 * tt * K * _DP    # double-buffered output slab
                    + 2 * tt * _DP        # double-buffered target tile
                    + 4 * Ns * _DP)       # src + srcT, double-buffered
        if need <= budget:
            return tt
    return min(128, nt8)


def group_points_pallas(source, target, num_samples, radius, spacing=0):
    """Pallas implementation of compute_patches_ (float radius, no mask)."""
    assert spacing == 0  # TODO(synk): spacing > 0 (strided top-k subsampling) not implemented
    assert isinstance(radius, float)  # TODO(synk): string radius modes ('avg'/'min'/percentile) not implemented
    B, Ns, D = source.shape
    _, Nt, _ = target.shape
    assert D + 2 <= _DP and D <= _LANE_DIST
    assert Ns < (1 << 24)  # idx rides a float32 lane; exact below 2^24
    K = int(min(num_samples, Ns))

    src32 = source.astype(jnp.float32)
    tgt32 = target.astype(jnp.float32)
    # augment the padded lanes so the distance matmul needs no extra terms
    s_sq = jnp.sum(src32 * src32, axis=-1, keepdims=True)
    t_sq = jnp.sum(tgt32 * tgt32, axis=-1, keepdims=True)
    src_aug = jnp.concatenate(
        [-2.0 * src32, jnp.ones_like(s_sq), s_sq,
         jnp.zeros((B, Ns, _DP - D - 2), jnp.float32)], axis=-1)      # (B, Ns, 8)
    tgt_aug = jnp.concatenate(
        [tgt32, t_sq, jnp.ones_like(t_sq),
         jnp.zeros((B, Nt, _DP - D - 2), jnp.float32)], axis=-1)      # (B, Nt, 8)
    src_augT = jnp.swapaxes(src_aug, 1, 2)                            # (B, 8, Ns)

    # tile the target dimension -> second parallel grid axis
    Tt = _pick_target_tile(Nt, Ns, K)
    Nt_pad = int(pl.cdiv(Nt, Tt)) * Tt
    if Nt_pad != Nt:
        # padded rows are all-zero -> well-defined garbage, sliced off below
        tgt_aug = jnp.pad(tgt_aug, ((0, 0), (0, Nt_pad - Nt), (0, 0)))

    kernel = functools.partial(_group_points_kernel, K=K, radius=float(radius))
    slab = pl.pallas_call(
        kernel,
        out_shape=jax.ShapeDtypeStruct((B, Nt_pad, K * _DP), jnp.float32),
        grid=(B, Nt_pad // Tt),
        in_specs=[
            pl.BlockSpec((None, Ns, _DP), lambda b, t: (b, 0, 0)),
            pl.BlockSpec((None, _DP, Ns), lambda b, t: (b, 0, 0)),
            pl.BlockSpec((None, Tt, _DP), lambda b, t: (b, t, 0)),
        ],
        out_specs=pl.BlockSpec((None, Tt, K * _DP), lambda b, t: (b, t, 0)),
        compiler_params=pltpu.CompilerParams(
            dimension_semantics=("parallel", "parallel"),
            vmem_limit_bytes=32 * 1024 * 1024),
    )(src_aug, src_augT, tgt_aug)

    slab = slab[:, :Nt].reshape(B, Nt, K, _DP)
    patches = slab[..., :D]
    dist = slab[..., _LANE_DIST]
    idx = slab[..., _LANE_IDX].astype(jnp.int32)          # values are exact ints
    size = jnp.sum((idx >= 0).astype(jnp.float32), axis=-1)
    rad_arr = jnp.full((B, 1, 1), radius, jnp.float32)
    batch_idx = jnp.broadcast_to(
        jnp.arange(B, dtype=idx.dtype)[:, None, None], idx.shape)
    patches_idx = jnp.stack([batch_idx, idx], axis=-1)    # int32 (torch uses int64)
    return {
        'patches': patches,
        'patches idx': patches_idx,
        'patches size': size,
        'patches radius': rad_arr,
        'patches dist': dist,
    }


class GroupPoints:
    """Mirror of the PyTorch GroupPoints module (no learnable parameters)."""

    def __init__(self, radius, patch_size_source, radius_target=None,
                 patch_size_target=None, spacing_source=0, spacing_target=0):
        self.radius = radius
        self.radius_target = radius_target
        self.patch_size_source = patch_size_source
        self.patch_size_target = patch_size_target
        self.spacing_source = spacing_source
        self.spacing_target = spacing_target

    def forward(self, x):
        assert isinstance(x, dict)
        source = x['source points']
        target = x['target points']
        # TODO(synk): 'source mask' / 'target mask' handling not implemented
        y = {}
        p = group_points_pallas(source, target,
                                min(self.patch_size_source, source.shape[1]),
                                self.radius, self.spacing_source)
        y['patches source'] = p['patches']
        y['patches idx source'] = p['patches idx']
        y['patches size source'] = p['patches size']
        y['patches radius source'] = p['patches radius']
        y['patches dist source'] = p['patches dist']
        if self.patch_size_target is not None:
            p = group_points_pallas(target, source,
                                    min(self.patch_size_target, target.shape[1]),
                                    self.radius_target, self.spacing_target)
            y['patches target'] = p['patches']
            y['patches idx target'] = p['patches idx']
            y['patches size target'] = p['patches size']
            y['patches radius target'] = p['patches radius']
            y['patches dist target'] = p['patches dist']
        return y


def group_points_ref(source, target, K, radius):
    """Pure-JAX reference of compute_patches_ (float radius, no mask)."""
    r0 = jnp.sum(target * target, axis=-1, keepdims=True)
    r1 = jnp.sum(source * source, axis=-1, keepdims=True)
    cross = jnp.einsum('btd,bsd->bts', target, source)
    d = r0 - 2.0 * cross + jnp.swapaxes(r1, 1, 2)
    neg, idx = jax.lax.top_k(-d, K)
    sqd = -neg
    rad = jnp.float32(radius)
    valid = (rad * rad) >= sqd
    idx = jnp.where(valid, idx, -1)
    src_s = source / (rad + 1e-6)
    tgt_s = target / (rad + 1e-6)
    gathered = jax.vmap(lambda s, i: s[i])(src_s, jnp.maximum(idx, 0))
    gathered = jnp.where((idx >= 0)[..., None], gathered, 0.0)
    patches = gathered - tgt_s[:, :, None, :]
    size = jnp.sum((idx >= 0).astype(jnp.float32), axis=-1)
    dist = jnp.sqrt(jnp.maximum(sqd, 1e-9)) / (rad + 1e-6)
    return patches, idx, size, dist


if __name__ == "__main__":
    key = jax.random.PRNGKey(0)
    ks, kt = jax.random.split(key)
    B, Ns, Nt, K = 2, 64, 32, 8
    source = jax.random.uniform(ks, (B, Ns, 3), jnp.float32, minval=-1.0, maxval=1.0)
    target = jax.random.uniform(kt, (B, Nt, 3), jnp.float32, minval=-1.0, maxval=1.0)

    gp = GroupPoints(radius=0.7, patch_size_source=K,
                     radius_target=0.7, patch_size_target=K)
    y = gp.forward({'source points': source, 'target points': target})
    jax.block_until_ready(y)

    # shape checks (match the PyTorch module's outputs)
    assert y['patches source'].shape == (B, Nt, K, 3)
    assert y['patches idx source'].shape == (B, Nt, K, 2)
    assert y['patches size source'].shape == (B, Nt)
    assert y['patches radius source'].shape == (B, 1, 1)
    assert y['patches dist source'].shape == (B, Nt, K)
    assert y['patches target'].shape == (B, Ns, K, 3)
    assert y['patches idx target'].shape == (B, Ns, K, 2)

    # numerical check against a pure-JAX reference (order-insensitive on patches)
    ps, _, sz, ds = group_points_ref(source, target, K, 0.7)
    np.testing.assert_allclose(np.asarray(y['patches dist source']), np.asarray(ds),
                               atol=1e-4, rtol=1e-4)
    np.testing.assert_allclose(np.asarray(y['patches size source']), np.asarray(sz), atol=1e-4)
    np.testing.assert_allclose(np.asarray(jnp.sum(y['patches source'], axis=2)),
                               np.asarray(jnp.sum(ps, axis=2)), atol=5e-4, rtol=1e-3)

    pt, _, szt, dt = group_points_ref(target, source, K, 0.7)
    np.testing.assert_allclose(np.asarray(y['patches dist target']), np.asarray(dt),
                               atol=1e-4, rtol=1e-4)
    np.testing.assert_allclose(np.asarray(y['patches size target']), np.asarray(szt), atol=1e-4)
    np.testing.assert_allclose(np.asarray(jnp.sum(y['patches target'], axis=2)),
                               np.asarray(jnp.sum(pt, axis=2)), atol=5e-4, rtol=1e-3)

    print("KERNEL_OK")
</pallas_src>

<mosaic_0001>
module attributes {stable_mosaic.version = 11 : i64} {
  func.func @_group_points_kernel(%arg0: i32, %arg1: i32, %arg2: memref<1x64x8xf32, #tpu.memory_space<vmem>>, %arg3: memref<1x8x64xf32, #tpu.memory_space<vmem>>, %arg4: memref<1x32x8xf32, #tpu.memory_space<vmem>>, %arg5: memref<1x32x64xf32, #tpu.memory_space<vmem>>) attributes {dimension_semantics = [#tpu.dimension_semantics<parallel>, #tpu.dimension_semantics<parallel>], iteration_bounds = array<i64: 2, 1>, scalar_prefetch = 0 : i64, scratch_operands = 0 : i64, tpu.core_type = #tpu.core_type<tc>, window_params = [{transform_indices = @transform_0, window_bounds = array<i64: 1, 64, 8>}, {transform_indices = @transform_1, window_bounds = array<i64: 1, 8, 64>}, {transform_indices = @transform_2, window_bounds = array<i64: 1, 32, 8>}, {transform_indices = @transform_3, window_bounds = array<i64: 1, 32, 64>}]} {
    %c0 = arith.constant 0 : index
    %c0_0 = arith.constant 0 : index
    %c0_1 = arith.constant 0 : index
    %0 = vector.load %arg2[%c0, %c0_0, %c0_1] : memref<1x64x8xf32, #tpu.memory_space<vmem>>, vector<1x64x8xf32>
    %1 = vector.shape_cast %0 : vector<1x64x8xf32> to vector<64x8xf32>
    %c0_2 = arith.constant 0 : index
    %c0_3 = arith.constant 0 : index
    %c0_4 = arith.constant 0 : index
    %2 = vector.load %arg3[%c0_2, %c0_3, %c0_4] : memref<1x8x64xf32, #tpu.memory_space<vmem>>, vector<1x8x64xf32>
    %3 = vector.shape_cast %2 : vector<1x8x64xf32> to vector<8x64xf32>
    %c0_5 = arith.constant 0 : index
    %c0_6 = arith.constant 0 : index
    %c0_7 = arith.constant 0 : index
    %4 = vector.load %arg4[%c0_5, %c0_6, %c0_7] : memref<1x32x8xf32, #tpu.memory_space<vmem>>, vector<1x32x8xf32>
    %5 = vector.shape_cast %4 : vector<1x32x8xf32> to vector<32x8xf32>
    %cst = arith.constant dense<0.000000e+00> : vector<32x64xf32>
    %6 = tpu.matmul %5, %3, %cst {dimension_numbers = #tpu.dot_dimension_numbers<[1], [0], [0], [1], [0, 0, 1, 1], [], []>} : vector<32x8xf32>, vector<8x64xf32>, vector<32x64xf32> -> vector<32x64xf32>
    %7 = tpu.iota {dimensions = array<i32: 1>} : vector<32x64xi32>
    %8 = tpu.iota {dimensions = array<i32: 1>} : vector<32x8xi32>
    %cst_8 = arith.constant 1.42856944 : f32
    %9 = vector.broadcast %cst_8 : f32 to vector<32x8xf32>
    %10 = arith.mulf %5, %9 : vector<32x8xf32>
    %cst_9 = arith.constant dense<0x7F800000> : vector<32xf32>
    %11 = vector.multi_reduction <minimumf>, %6, %cst_9 [1] : vector<32x64xf32> to vector<32xf32>
    %12 = vector.shape_cast %11 : vector<32xf32> to vector<32x1xf32>
    %13 = vector.broadcast %12 : vector<32x1xf32> to vector<32x64xf32>
    %14 = arith.cmpf oeq, %6, %13 : vector<32x64xf32>
    %c64_i32 = arith.constant 64 : i32
    %15 = vector.broadcast %c64_i32 : i32 to vector<32x64xi32>
    %16 = arith.select %14, %7, %15 : vector<32x64xi1>, vector<32x64xi32>
    %cst_10 = arith.constant dense<2147483647> : vector<32xi32>
    %17 = vector.multi_reduction <minsi>, %16, %cst_10 [1] : vector<32x64xi32> to vector<32xi32>
    %18 = vector.shape_cast %17 : vector<32xi32> to vector<32x1xi32>
    %19 = vector.broadcast %18 : vector<32x1xi32> to vector<32x64xi32>
    %20 = arith.cmpi eq, %7, %19 : vector<32x64xi32>
    %cst_11 = arith.constant 0x7F800000 : f32
    %21 = vector.broadcast %cst_11 : f32 to vector<32x64xf32>
    %22 = arith.select %20, %21, %6 : vector<32x64xi1>, vector<32x64xf32>
    %23 = arith.extui %20 : vector<32x64xi1> to vector<32x64xi32>
    %24 = arith.sitofp %23 : vector<32x64xi32> to vector<32x64xf32>
    %cst_12 = arith.constant dense<0.000000e+00> : vector<32x8xf32>
    %25 = tpu.matmul %24, %1, %cst_12 {dimension_numbers = #tpu.dot_dimension_numbers<[1], [0], [0], [1], [0, 0, 1, 1], [], []>} : vector<32x64xf32>, vector<64x8xf32>, vector<32x8xf32> -> vector<32x8xf32>
    %cst_13 = arith.constant 4.900000e-01 : f32
    %26 = vector.broadcast %cst_13 : f32 to vector<32x1xf32>
    %27 = arith.cmpf oge, %26, %12 : vector<32x1xf32>
    %cst_14 = arith.constant 0.000000e+00 : f32
    %28 = vector.shape_cast %27 : vector<32x1xi1> to vector<32x1xi1>
    %29 = vector.broadcast %28 : vector<32x1xi1> to vector<32x8xi1>
    %30 = vector.broadcast %cst_14 : f32 to vector<32x8xf32>
    %31 = arith.select %29, %25, %30 : vector<32x8xi1>, vector<32x8xf32>
    %cst_15 = arith.constant -0.714284718 : f32
    %32 = vector.broadcast %cst_15 : f32 to vector<32x8xf32>
    %33 = arith.mulf %31, %32 : vector<32x8xf32>
    %34 = arith.subf %33, %10 : vector<32x8xf32>
    %cst_16 = arith.constant 9.99999971E-10 : f32
    %35 = vector.broadcast %cst_16 : f32 to vector<32x1xf32>
    %36 = arith.maximumf %12, %35 : vector<32x1xf32>
    %37 = math.sqrt %36 : vector<32x1xf32>
    %cst_17 = arith.constant 1.42856944 : f32
    %38 = vector.broadcast %cst_17 : f32 to vector<32x1xf32>
    %39 = arith.mulf %37, %38 : vector<32x1xf32>
    %c-1_i32 = arith.constant -1 : i32
    %40 = vector.broadcast %c-1_i32 : i32 to vector<32x1xi32>
    %41 = arith.select %27, %18, %40 : vector<32x1xi1>, vector<32x1xi32>
    %42 = arith.sitofp %41 : vector<32x1xi32> to vector<32x1xf32>
    %c6_i32 = arith.constant 6 : i32
    %43 = vector.broadcast %c6_i32 : i32 to vector<32x8xi32>
    %44 = arith.cmpi eq, %8, %43 : vector<32x8xi32>
    %45 = vector.shape_cast %39 : vector<32x1xf32> to vector<32x1xf32>
    %46 = vector.broadcast %45 : vector<32x1xf32> to vector<32x8xf32>
    %47 = arith.select %44, %46, %34 : vector<32x8xi1>, vector<32x8xf32>
    %c7_i32 = arith.constant 7 : i32
    %48 = vector.broadcast %c7_i32 : i32 to vector<32x8xi32>
    %49 = arith.cmpi eq, %8, %48 : vector<32x8xi32>
    %50 = vector.shape_cast %42 : vector<32x1xf32> to vector<32x1xf32>
    %51 = vector.broadcast %50 : vector<32x1xf32> to vector<32x8xf32>
    %52 = arith.select %49, %51, %47 : vector<32x8xi1>, vector<32x8xf32>
    %c0_18 = arith.constant 0 : index
    %c0_19 = arith.constant 0 : index
    %c0_20 = arith.constant 0 : index
    %53 = vector.load %arg5[%c0_18, %c0_19, %c0_20] : memref<1x32x64xf32, #tpu.memory_space<vmem>>, vector<1x32x8xf32>
    %54 = vector.shape_cast %53 : vector<1x32x8xf32> to vector<32x8xf32>
    %55 = vector.shape_cast %52 : vector<32x8xf32> to vector<1x32x8xf32>
    tpu.vector_store %arg5[%c0_18, %c0_19, %c0_20], %55 {strides = array<i32>} : memref<1x32x64xf32, #tpu.memory_space<vmem>>, vector<1x32x8xf32>,
    %cst_21 = arith.constant dense<0x7F800000> : vector<32xf32>
    %56 = vector.multi_reduction <minimumf>, %22, %cst_21 [1] : vector<32x64xf32> to vector<32xf32>
    %57 = vector.shape_cast %56 : vector<32xf32> to vector<32x1xf32>
    %58 = vector.broadcast %57 : vector<32x1xf32> to vector<32x64xf32>
    %59 = arith.cmpf oeq, %22, %58 : vector<32x64xf32>
    %c64_i32_22 = arith.constant 64 : i32
    %60 = vector.broadcast %c64_i32_22 : i32 to vector<32x64xi32>
    %61 = arith.select %59, %7, %60 : vector<32x64xi1>, vector<32x64xi32>
    %cst_23 = arith.constant dense<2147483647> : vector<32xi32>
    %62 = vector.multi_reduction <minsi>, %61, %cst_23 [1] : vector<32x64xi32> to vector<32xi32>
    %63 = vector.shape_cast %62 : vector<32xi32> to vector<32x1xi32>
    %64 = vector.broadcast %63 : vector<32x1xi32> to vector<32x64xi32>
    %65 = arith.cmpi eq, %7, %64 : vector<32x64xi32>
    %cst_24 = arith.constant 0x7F800000 : f32
    %66 = vector.broadcast %cst_24 : f32 to vector<32x64xf32>
    %67 = arith.select %65, %66, %22 : vector<32x64xi1>, vector<32x64xf32>
    %68 = arith.extui %65 : vector<32x64xi1> to vector<32x64xi32>
    %69 = arith.sitofp %68 : vector<32x64xi32> to vector<32x64xf32>
    %cst_25 = arith.constant dense<0.000000e+00> : vector<32x8xf32>
    %70 = tpu.matmul %69, %1, %cst_25 {dimension_numbers = #tpu.dot_dimension_numbers<[1], [0], [0], [1], [0, 0, 1, 1], [], []>} : vector<32x64xf32>, vector<64x8xf32>, vector<32x8xf32> -> vector<32x8xf32>
    %cst_26 = arith.constant 4.900000e-01 : f32
    %71 = vector.broadcast %cst_26 : f32 to vector<32x1xf32>
    %72 = arith.cmpf oge, %71, %57 : vector<32x1xf32>
    %cst_27 = arith.constant 0.000000e+00 : f32
    %73 = vector.shape_cast %72 : vector<32x1xi1> to vector<32x1xi1>
    %74 = vector.broadcast %73 : vector<32x1xi1> to vector<32x8xi1>
    %75 = vector.broadcast %cst_27 : f32 to vector<32x8xf32>
    %76 = arith.select %74, %70, %75 : vector<32x8xi1>, vector<32x8xf32>
    %cst_28 = arith.constant -0.714284718 : f32
    %77 = vector.broadcast %cst_28 : f32 to vector<32x8xf32>
    %78 = arith.mulf %76, %77 : vector<32x8xf32>
    %79 = arith.subf %78, %10 : vector<32x8xf32>
    %cst_29 = arith.constant 9.99999971E-10 : f32
    %80 = vector.broadcast %cst_29 : f32 to vector<32x1xf32>
    %81 = arith.maximumf %57, %80 : vector<32x1xf32>
    %82 = math.sqrt %81 : vector<32x1xf32>
    %cst_30 = arith.constant 1.42856944 : f32
    %83 = vector.broadcast %cst_30 : f32 to vector<32x1xf32>
    %84 = arith.mulf %82, %83 : vector<32x1xf32>
    %c-1_i32_31 = arith.constant -1 : i32
    %85 = vector.broadcast %c-1_i32_31 : i32 to vector<32x1xi32>
    %86 = arith.select %72, %63, %85 : vector<32x1xi1>, vector<32x1xi32>
    %87 = arith.sitofp %86 : vector<32x1xi32> to vector<32x1xf32>
    %c6_i32_32 = arith.constant 6 : i32
    %88 = vector.broadcast %c6_i32_32 : i32 to vector<32x8xi32>
    %89 = arith.cmpi eq, %8, %88 : vector<32x8xi32>
    %90 = vector.shape_cast %84 : vector<32x1xf32> to vector<32x1xf32>
    %91 = vector.broadcast %90 : vector<32x1xf32> to vector<32x8xf32>
    %92 = arith.select %89, %91, %79 : vector<32x8xi1>, vector<32x8xf32>
    %c7_i32_33 = arith.constant 7 : i32
    %93 = vector.broadcast %c7_i32_33 : i32 to vector<32x8xi32>
    %94 = arith.cmpi eq, %8, %93 : vector<32x8xi32>
    %95 = vector.shape_cast %87 : vector<32x1xf32> to vector<32x1xf32>
    %96 = vector.broadcast %95 : vector<32x1xf32> to vector<32x8xf32>
    %97 = arith.select %94, %96, %92 : vector<32x8xi1>, vector<32x8xf32>
    %c0_34 = arith.constant 0 : index
    %c0_35 = arith.constant 0 : index
    %c8 = arith.constant 8 : index
    %98 = vector.load %arg5[%c0_34, %c0_35, %c8] : memref<1x32x64xf32, #tpu.memory_space<vmem>>, vector<1x32x8xf32>
    %99 = vector.shape_cast %98 : vector<1x32x8xf32> to vector<32x8xf32>
    %100 = vector.shape_cast %97 : vector<32x8xf32> to vector<1x32x8xf32>
    tpu.vector_store %arg5[%c0_34, %c0_35, %c8], %100 {strides = array<i32>} : memref<1x32x64xf32, #tpu.memory_space<vmem>>, vector<1x32x8xf32>,
    %cst_36 = arith.constant dense<0x7F800000> : vector<32xf32>
    %101 = vector.multi_reduction <minimumf>, %67, %cst_36 [1] : vector<32x64xf32> to vector<32xf32>
    %102 = vector.shape_cast %101 : vector<32xf32> to vector<32x1xf32>
    %103 = vector.broadcast %102 : vector<32x1xf32> to vector<32x64xf32>
    %104 = arith.cmpf oeq, %67, %103 : vector<32x64xf32>
    %c64_i32_37 = arith.constant 64 : i32
    %105 = vector.broadcast %c64_i32_37 : i32 to vector<32x64xi32>
    %106 = arith.select %104, %7, %105 : vector<32x64xi1>, vector<32x64xi32>
    %cst_38 = arith.constant dense<2147483647> : vector<32xi32>
    %107 = vector.multi_reduction <minsi>, %106, %cst_38 [1] : vector<32x64xi32> to vector<32xi32>
    %108 = vector.shape_cast %107 : vector<32xi32> to vector<32x1xi32>
    %109 = vector.broadcast %108 : vector<32x1xi32> to vector<32x64xi32>
    %110 = arith.cmpi eq, %7, %109 : vector<32x64xi32>
    %cst_39 = arith.constant 0x7F800000 : f32
    %111 = vector.broadcast %cst_39 : f32 to vector<32x64xf32>
    %112 = arith.select %110, %111, %67 : vector<32x64xi1>, vector<32x64xf32>
    %113 = arith.extui %110 : vector<32x64xi1> to vector<32x64xi32>
    %114 = arith.sitofp %113 : vector<32x64xi32> to vector<32x64xf32>
    %cst_40 = arith.constant dense<0.000000e+00> : vector<32x8xf32>
    %115 = tpu.matmul %114, %1, %cst_40 {dimension_numbers = #tpu.dot_dimension_numbers<[1], [0], [0], [1], [0, 0, 1, 1], [], []>} : vector<32x64xf32>, vector<64x8xf32>, vector<32x8xf32> -> vector<32x8xf32>
    %cst_41 = arith.constant 4.900000e-01 : f32
    %116 = vector.broadcast %cst_41 : f32 to vector<32x1xf32>
    %117 = arith.cmpf oge, %116, %102 : vector<32x1xf32>
    %cst_42 = arith.constant 0.000000e+00 : f32
    %118 = vector.shape_cast %117 : vector<32x1xi1> to vector<32x1xi1>
    %119 = vector.broadcast %118 : vector<32x1xi1> to vector<32x8xi1>
    %120 = vector.broadcast %cst_42 : f32 to vector<32x8xf32>
    %121 = arith.select %119, %115, %120 : vector<32x8xi1>, vector<32x8xf32>
    %cst_43 = arith.constant -0.714284718 : f32
    %122 = vector.broadcast %cst_43 : f32 to vector<32x8xf32>
    %123 = arith.mulf %121, %122 : vector<32x8xf32>
    %124 = arith.subf %123, %10 : vector<32x8xf32>
    %cst_44 = arith.constant 9.99999971E-10 : f32
    %125 = vector.broadcast %cst_44 : f32 to vector<32x1xf32>
    %126 = arith.maximumf %102, %125 : vector<32x1xf32>
    %127 = math.sqrt %126 : vector<32x1xf32>
    %cst_45 = arith.constant 1.42856944 : f32
    %128 = vector.broadcast %cst_45 : f32 to vector<32x1xf32>
    %129 = arith.mulf %127, %128 : vector<32x1xf32>
    %c-1_i32_46 = arith.constant -1 : i32
    %130 = vector.broadcast %c-1_i32_46 : i32 to vector<32x1xi32>
    %131 = arith.select %117, %108, %130 : vector<32x1xi1>, vector<32x1xi32>
    %132 = arith.sitofp %131 : vector<32x1xi32> to vector<32x1xf32>
    %c6_i32_47 = arith.constant 6 : i32
    %133 = vector.broadcast %c6_i32_47 : i32 to vector<32x8xi32>
    %134 = arith.cmpi eq, %8, %133 : vector<32x8xi32>
    %135 = vector.shape_cast %129 : vector<32x1xf32> to vector<32x1xf32>
    %136 = vector.broadcast %135 : vector<32x1xf32> to vector<32x8xf32>
    %137 = arith.select %134, %136, %124 : vector<32x8xi1>, vector<32x8xf32>
    %c7_i32_48 = arith.constant 7 : i32
    %138 = vector.broadcast %c7_i32_48 : i32 to vector<32x8xi32>
    %139 = arith.cmpi eq, %8, %138 : vector<32x8xi32>
    %140 = vector.shape_cast %132 : vector<32x1xf32> to vector<32x1xf32>
    %141 = vector.broadcast %140 : vector<32x1xf32> to vector<32x8xf32>
    %142 = arith.select %139, %141, %137 : vector<32x8xi1>, vector<32x8xf32>
    %c0_49 = arith.constant 0 : index
    %c0_50 = arith.constant 0 : index
    %c16 = arith.constant 16 : index
    %143 = vector.load %arg5[%c0_49, %c0_50, %c16] : memref<1x32x64xf32, #tpu.memory_space<vmem>>, vector<1x32x8xf32>
    %144 = vector.shape_cast %143 : vector<1x32x8xf32> to vector<32x8xf32>
    %145 = vector.shape_cast %142 : vector<32x8xf32> to vector<1x32x8xf32>
    tpu.vector_store %arg5[%c0_49, %c0_50, %c16], %145 {strides = array<i32>} : memref<1x32x64xf32, #tpu.memory_space<vmem>>, vector<1x32x8xf32>,
    %cst_51 = arith.constant dense<0x7F800000> : vector<32xf32>
    %146 = vector.multi_reduction <minimumf>, %112, %cst_51 [1] : vector<32x64xf32> to vector<32xf32>
    %147 = vector.shape_cast %146 : vector<32xf32> to vector<32x1xf32>
    %148 = vector.broadcast %147 : vector<32x1xf32> to vector<32x64xf32>
    %149 = arith.cmpf oeq, %112, %148 : vector<32x64xf32>
    %c64_i32_52 = arith.constant 64 : i32
    %150 = vector.broadcast %c64_i32_52 : i32 to vector<32x64xi32>
    %151 = arith.select %149, %7, %150 : vector<32x64xi1>, vector<32x64xi32>
    %cst_53 = arith.constant dense<2147483647> : vector<32xi32>
    %152 = vector.multi_reduction <minsi>, %151, %cst_53 [1] : vector<32x64xi32> to vector<32xi32>
    %153 = vector.shape_cast %152 : vector<32xi32> to vector<32x1xi32>
    %154 = vector.broadcast %153 : vector<32x1xi32> to vector<32x64xi32>
    %155 = arith.cmpi eq, %7, %154 : vector<32x64xi32>
    %cst_54 = arith.constant 0x7F800000 : f32
    %156 = vector.broadcast %cst_54 : f32 to vector<32x64xf32>
    %157 = arith.select %155, %156, %112 : vector<32x64xi1>, vector<32x64xf32>
    %158 = arith.extui %155 : vector<32x64xi1> to vector<32x64xi32>
    %159 = arith.sitofp %158 : vector<32x64xi32> to vector<32x64xf32>
    %cst_55 = arith.constant dense<0.000000e+00> : vector<32x8xf32>
    %160 = tpu.matmul %159, %1, %cst_55 {dimension_numbers = #tpu.dot_dimension_numbers<[1], [0], [0], [1], [0, 0, 1, 1], [], []>} : vector<32x64xf32>, vector<64x8xf32>, vector<32x8xf32> -> vector<32x8xf32>
    %cst_56 = arith.constant 4.900000e-01 : f32
    %161 = vector.broadcast %cst_56 : f32 to vector<32x1xf32>
    %162 = arith.cmpf oge, %161, %147 : vector<32x1xf32>
    %cst_57 = arith.constant 0.000000e+00 : f32
    %163 = vector.shape_cast %162 : vector<32x1xi1> to vector<32x1xi1>
    %164 = vector.broadcast %163 : vector<32x1xi1> to vector<32x8xi1>
    %165 = vector.broadcast %cst_57 : f32 to vector<32x8xf32>
    %166 = arith.select %164, %160, %165 : vector<32x8xi1>, vector<32x8xf32>
    %cst_58 = arith.constant -0.714284718 : f32
    %167 = vector.broadcast %cst_58 : f32 to vector<32x8xf32>
    %168 = arith.mulf %166, %167 : vector<32x8xf32>
    %169 = arith.subf %168, %10 : vector<32x8xf32>
    %cst_59 = arith.constant 9.99999971E-10 : f32
    %170 = vector.broadcast %cst_59 : f32 to vector<32x1xf32>
    %171 = arith.maximumf %147, %170 : vector<32x1xf32>
    %172 = math.sqrt %171 : vector<32x1xf32>
    %cst_60 = arith.constant 1.42856944 : f32
    %173 = vector.broadcast %cst_60 : f32 to vector<32x1xf32>
    %174 = arith.mulf %172, %173 : vector<32x1xf32>
    %c-1_i32_61 = arith.constant -1 : i32
    %175 = vector.broadcast %c-1_i32_61 : i32 to vector<32x1xi32>
    %176 = arith.select %162, %153, %175 : vector<32x1xi1>, vector<32x1xi32>
    %177 = arith.sitofp %176 : vector<32x1xi32> to vector<32x1xf32>
    %c6_i32_62 = arith.constant 6 : i32
    %178 = vector.broadcast %c6_i32_62 : i32 to vector<32x8xi32>
    %179 = arith.cmpi eq, %8, %178 : vector<32x8xi32>
    %180 = vector.shape_cast %174 : vector<32x1xf32> to vector<32x1xf32>
    %181 = vector.broadcast %180 : vector<32x1xf32> to vector<32x8xf32>
    %182 = arith.select %179, %181, %169 : vector<32x8xi1>, vector<32x8xf32>
    %c7_i32_63 = arith.constant 7 : i32
    %183 = vector.broadcast %c7_i32_63 : i32 to vector<32x8xi32>
    %184 = arith.cmpi eq, %8, %183 : vector<32x8xi32>
    %185 = vector.shape_cast %177 : vector<32x1xf32> to vector<32x1xf32>
    %186 = vector.broadcast %185 : vector<32x1xf32> to vector<32x8xf32>
    %187 = arith.select %184, %186, %182 : vector<32x8xi1>, vector<32x8xf32>
    %c0_64 = arith.constant 0 : index
    %c0_65 = arith.constant 0 : index
    %c24 = arith.constant 24 : index
    %188 = vector.load %arg5[%c0_64, %c0_65, %c24] : memref<1x32x64xf32, #tpu.memory_space<vmem>>, vector<1x32x8xf32>
    %189 = vector.shape_cast %188 : vector<1x32x8xf32> to vector<32x8xf32>
    %190 = vector.shape_cast %187 : vector<32x8xf32> to vector<1x32x8xf32>
    tpu.vector_store %arg5[%c0_64, %c0_65, %c24], %190 {strides = array<i32>} : memref<1x32x64xf32, #tpu.memory_space<vmem>>, vector<1x32x8xf32>,
    %cst_66 = arith.constant dense<0x7F800000> : vector<32xf32>
    %191 = vector.multi_reduction <minimumf>, %157, %cst_66 [1] : vector<32x64xf32> to vector<32xf32>
    %192 = vector.shape_cast %191 : vector<32xf32> to vector<32x1xf32>
    %193 = vector.broadcast %192 : vector<32x1xf32> to vector<32x64xf32>
    %194 = arith.cmpf oeq, %157, %193 : vector<32x64xf32>
    %c64_i32_67 = arith.constant 64 : i32
    %195 = vector.broadcast %c64_i32_67 : i32 to vector<32x64xi32>
    %196 = arith.select %194, %7, %195 : vector<32x64xi1>, vector<32x64xi32>
    %cst_68 = arith.constant dense<2147483647> : vector<32xi32>
    %197 = vector.multi_reduction <minsi>, %196, %cst_68 [1] : vector<32x64xi32> to vector<32xi32>
    %198 = vector.shape_cast %197 : vector<32xi32> to vector<32x1xi32>
    %199 = vector.broadcast %198 : vector<32x1xi32> to vector<32x64xi32>
    %200 = arith.cmpi eq, %7, %199 : vector<32x64xi32>
    %cst_69 = arith.constant 0x7F800000 : f32
    %201 = vector.broadcast %cst_69 : f32 to vector<32x64xf32>
    %202 = arith.select %200, %201, %157 : vector<32x64xi1>, vector<32x64xf32>
    %203 = arith.extui %200 : vector<32x64xi1> to vector<32x64xi32>
    %204 = arith.sitofp %203 : vector<32x64xi32> to vector<32x64xf32>
    %cst_70 = arith.constant dense<0.000000e+00> : vector<32x8xf32>
    %205 = tpu.matmul %204, %1, %cst_70 {dimension_numbers = #tpu.dot_dimension_numbers<[1], [0], [0], [1], [0, 0, 1, 1], [], []>} : vector<32x64xf32>, vector<64x8xf32>, vector<32x8xf32> -> vector<32x8xf32>
    %cst_71 = arith.constant 4.900000e-01 : f32
    %206 = vector.broadcast %cst_71 : f32 to vector<32x1xf32>
    %207 = arith.cmpf oge, %206, %192 : vector<32x1xf32>
    %cst_72 = arith.constant 0.000000e+00 : f32
    %208 = vector.shape_cast %207 : vector<32x1xi1> to vector<32x1xi1>
    %209 = vector.broadcast %208 : vector<32x1xi1> to vector<32x8xi1>
    %210 = vector.broadcast %cst_72 : f32 to vector<32x8xf32>
    %211 = arith.select %209, %205, %210 : vector<32x8xi1>, vector<32x8xf32>
    %cst_73 = arith.constant -0.714284718 : f32
    %212 = vector.broadcast %cst_73 : f32 to vector<32x8xf32>
    %213 = arith.mulf %211, %212 : vector<32x8xf32>
    %214 = arith.subf %213, %10 : vector<32x8xf32>
    %cst_74 = arith.constant 9.99999971E-10 : f32
    %215 = vector.broadcast %cst_74 : f32 to vector<32x1xf32>
    %216 = arith.maximumf %192, %215 : vector<32x1xf32>
    %217 = math.sqrt %216 : vector<32x1xf32>
    %cst_75 = arith.constant 1.42856944 : f32
    %218 = vector.broadcast %cst_75 : f32 to vector<32x1xf32>
    %219 = arith.mulf %217, %218 : vector<32x1xf32>
    %c-1_i32_76 = arith.constant -1 : i32
    %220 = vector.broadcast %c-1_i32_76 : i32 to vector<32x1xi32>
    %221 = arith.select %207, %198, %220 : vector<32x1xi1>, vector<32x1xi32>
    %222 = arith.sitofp %221 : vector<32x1xi32> to vector<32x1xf32>
    %c6_i32_77 = arith.constant 6 : i32
    %223 = vector.broadcast %c6_i32_77 : i32 to vector<32x8xi32>
    %224 = arith.cmpi eq, %8, %223 : vector<32x8xi32>
    %225 = vector.shape_cast %219 : vector<32x1xf32> to vector<32x1xf32>
    %226 = vector.broadcast %225 : vector<32x1xf32> to vector<32x8xf32>
    %227 = arith.select %224, %226, %214 : vector<32x8xi1>, vector<32x8xf32>
    %c7_i32_78 = arith.constant 7 : i32
    %228 = vector.broadcast %c7_i32_78 : i32 to vector<32x8xi32>
    %229 = arith.cmpi eq, %8, %228 : vector<32x8xi32>
    %230 = vector.shape_cast %222 : vector<32x1xf32> to vector<32x1xf32>
    %231 = vector.broadcast %230 : vector<32x1xf32> to vector<32x8xf32>
    %232 = arith.select %229, %231, %227 : vector<32x8xi1>, vector<32x8xf32>
    %c0_79 = arith.constant 0 : index
    %c0_80 = arith.constant 0 : index
    %c32 = arith.constant 32 : index
    %233 = vector.load %arg5[%c0_79, %c0_80, %c32] : memref<1x32x64xf32, #tpu.memory_space<vmem>>, vector<1x32x8xf32>
    %234 = vector.shape_cast %233 : vector<1x32x8xf32> to vector<32x8xf32>
    %235 = vector.shape_cast %232 : vector<32x8xf32> to vector<1x32x8xf32>
    tpu.vector_store %arg5[%c0_79, %c0_80, %c32], %235 {strides = array<i32>} : memref<1x32x64xf32, #tpu.memory_space<vmem>>, vector<1x32x8xf32>,
    %cst_81 = arith.constant dense<0x7F800000> : vector<32xf32>
    %236 = vector.multi_reduction <minimumf>, %202, %cst_81 [1] : vector<32x64xf32> to vector<32xf32>
    %237 = vector.shape_cast %236 : vector<32xf32> to vector<32x1xf32>
    %238 = vector.broadcast %237 : vector<32x1xf32> to vector<32x64xf32>
    %239 = arith.cmpf oeq, %202, %238 : vector<32x64xf32>
    %c64_i32_82 = arith.constant 64 : i32
    %240 = vector.broadcast %c64_i32_82 : i32 to vector<32x64xi32>
    %241 = arith.select %239, %7, %240 : vector<32x64xi1>, vector<32x64xi32>
    %cst_83 = arith.constant dense<2147483647> : vector<32xi32>
    %242 = vector.multi_reduction <minsi>, %241, %cst_83 [1] : vector<32x64xi32> to vector<32xi32>
    %243 = vector.shape_cast %242 : vector<32xi32> to vector<32x1xi32>
    %244 = vector.broadcast %243 : vector<32x1xi32> to vector<32x64xi32>
    %245 = arith.cmpi eq, %7, %244 : vector<32x64xi32>
    %cst_84 = arith.constant 0x7F800000 : f32
    %246 = vector.broadcast %cst_84 : f32 to vector<32x64xf32>
    %247 = arith.select %245, %246, %202 : vector<32x64xi1>, vector<32x64xf32>
    %248 = arith.extui %245 : vector<32x64xi1> to vector<32x64xi32>
    %249 = arith.sitofp %248 : vector<32x64xi32> to vector<32x64xf32>
    %cst_85 = arith.constant dense<0.000000e+00> : vector<32x8xf32>
    %250 = tpu.matmul %249, %1, %cst_85 {dimension_numbers = #tpu.dot_dimension_numbers<[1], [0], [0], [1], [0, 0, 1, 1], [], []>} : vector<32x64xf32>, vector<64x8xf32>, vector<32x8xf32> -> vector<32x8xf32>
    %cst_86 = arith.constant 4.900000e-01 : f32
    %251 = vector.broadcast %cst_86 : f32 to vector<32x1xf32>
    %252 = arith.cmpf oge, %251, %237 : vector<32x1xf32>
    %cst_87 = arith.constant 0.000000e+00 : f32
    %253 = vector.shape_cast %252 : vector<32x1xi1> to vector<32x1xi1>
    %254 = vector.broadcast %253 : vector<32x1xi1> to vector<32x8xi1>
    %255 = vector.broadcast %cst_87 : f32 to vector<32x8xf32>
    %256 = arith.select %254, %250, %255 : vector<32x8xi1>, vector<32x8xf32>
    %cst_88 = arith.constant -0.714284718 : f32
    %257 = vector.broadcast %cst_88 : f32 to vector<32x8xf32>
    %258 = arith.mulf %256, %257 : vector<32x8xf32>
    %259 = arith.subf %258, %10 : vector<32x8xf32>
    %cst_89 = arith.constant 9.99999971E-10 : f32
    %260 = vector.broadcast %cst_89 : f32 to vector<32x1xf32>
    %261 = arith.maximumf %237, %260 : vector<32x1xf32>
    %262 = math.sqrt %261 : vector<32x1xf32>
    %cst_90 = arith.constant 1.42856944 : f32
    %263 = vector.broadcast %cst_90 : f32 to vector<32x1xf32>
    %264 = arith.mulf %262, %263 : vector<32x1xf32>
    %c-1_i32_91 = arith.constant -1 : i32
    %265 = vector.broadcast %c-1_i32_91 : i32 to vector<32x1xi32>
    %266 = arith.select %252, %243, %265 : vector<32x1xi1>, vector<32x1xi32>
    %267 = arith.sitofp %266 : vector<32x1xi32> to vector<32x1xf32>
    %c6_i32_92 = arith.constant 6 : i32
    %268 = vector.broadcast %c6_i32_92 : i32 to vector<32x8xi32>
    %269 = arith.cmpi eq, %8, %268 : vector<32x8xi32>
    %270 = vector.shape_cast %264 : vector<32x1xf32> to vector<32x1xf32>
    %271 = vector.broadcast %270 : vector<32x1xf32> to vector<32x8xf32>
    %272 = arith.select %269, %271, %259 : vector<32x8xi1>, vector<32x8xf32>
    %c7_i32_93 = arith.constant 7 : i32
    %273 = vector.broadcast %c7_i32_93 : i32 to vector<32x8xi32>
    %274 = arith.cmpi eq, %8, %273 : vector<32x8xi32>
    %275 = vector.shape_cast %267 : vector<32x1xf32> to vector<32x1xf32>
    %276 = vector.broadcast %275 : vector<32x1xf32> to vector<32x8xf32>
    %277 = arith.select %274, %276, %272 : vector<32x8xi1>, vector<32x8xf32>
    %c0_94 = arith.constant 0 : index
    %c0_95 = arith.constant 0 : index
    %c40 = arith.constant 40 : index
    %278 = vector.load %arg5[%c0_94, %c0_95, %c40] : memref<1x32x64xf32, #tpu.memory_space<vmem>>, vector<1x32x8xf32>
    %279 = vector.shape_cast %278 : vector<1x32x8xf32> to vector<32x8xf32>
    %280 = vector.shape_cast %277 : vector<32x8xf32> to vector<1x32x8xf32>
    tpu.vector_store %arg5[%c0_94, %c0_95, %c40], %280 {strides = array<i32>} : memref<1x32x64xf32, #tpu.memory_space<vmem>>, vector<1x32x8xf32>,
    %cst_96 = arith.constant dense<0x7F800000> : vector<32xf32>
    %281 = vector.multi_reduction <minimumf>, %247, %cst_96 [1] : vector<32x64xf32> to vector<32xf32>
    %282 = vector.shape_cast %281 : vector<32xf32> to vector<32x1xf32>
    %283 = vector.broadcast %282 : vector<32x1xf32> to vector<32x64xf32>
    %284 = arith.cmpf oeq, %247, %283 : vector<32x64xf32>
    %c64_i32_97 = arith.constant 64 : i32
    %285 = vector.broadcast %c64_i32_97 : i32 to vector<32x64xi32>
    %286 = arith.select %284, %7, %285 : vector<32x64xi1>, vector<32x64xi32>
    %cst_98 = arith.constant dense<2147483647> : vector<32xi32>
    %287 = vector.multi_reduction <minsi>, %286, %cst_98 [1] : vector<32x64xi32> to vector<32xi32>
    %288 = vector.shape_cast %287 : vector<32xi32> to vector<32x1xi32>
    %289 = vector.broadcast %288 : vector<32x1xi32> to vector<32x64xi32>
    %290 = arith.cmpi eq, %7, %289 : vector<32x64xi32>
    %cst_99 = arith.constant 0x7F800000 : f32
    %291 = vector.broadcast %cst_99 : f32 to vector<32x64xf32>
    %292 = arith.select %290, %291, %247 : vector<32x64xi1>, vector<32x64xf32>
    %293 = arith.extui %290 : vector<32x64xi1> to vector<32x64xi32>
    %294 = arith.sitofp %293 : vector<32x64xi32> to vector<32x64xf32>
    %cst_100 = arith.constant dense<0.000000e+00> : vector<32x8xf32>
    %295 = tpu.matmul %294, %1, %cst_100 {dimension_numbers = #tpu.dot_dimension_numbers<[1], [0], [0], [1], [0, 0, 1, 1], [], []>} : vector<32x64xf32>, vector<64x8xf32>, vector<32x8xf32> -> vector<32x8xf32>
    %cst_101 = arith.constant 4.900000e-01 : f32
    %296 = vector.broadcast %cst_101 : f32 to vector<32x1xf32>
    %297 = arith.cmpf oge, %296, %282 : vector<32x1xf32>
    %cst_102 = arith.constant 0.000000e+00 : f32
    %298 = vector.shape_cast %297 : vector<32x1xi1> to vector<32x1xi1>
    %299 = vector.broadcast %298 : vector<32x1xi1> to vector<32x8xi1>
    %300 = vector.broadcast %cst_102 : f32 to vector<32x8xf32>
    %301 = arith.select %299, %295, %300 : vector<32x8xi1>, vector<32x8xf32>
    %cst_103 = arith.constant -0.714284718 : f32
    %302 = vector.broadcast %cst_103 : f32 to vector<32x8xf32>
    %303 = arith.mulf %301, %302 : vector<32x8xf32>
    %304 = arith.subf %303, %10 : vector<32x8xf32>
    %cst_104 = arith.constant 9.99999971E-10 : f32
    %305 = vector.broadcast %cst_104 : f32 to vector<32x1xf32>
    %306 = arith.maximumf %282, %305 : vector<32x1xf32>
    %307 = math.sqrt %306 : vector<32x1xf32>
    %cst_105 = arith.constant 1.42856944 : f32
    %308 = vector.broadcast %cst_105 : f32 to vector<32x1xf32>
    %309 = arith.mulf %307, %308 : vector<32x1xf32>
    %c-1_i32_106 = arith.constant -1 : i32
    %310 = vector.broadcast %c-1_i32_106 : i32 to vector<32x1xi32>
    %311 = arith.select %297, %288, %310 : vector<32x1xi1>, vector<32x1xi32>
    %312 = arith.sitofp %311 : vector<32x1xi32> to vector<32x1xf32>
    %c6_i32_107 = arith.constant 6 : i32
    %313 = vector.broadcast %c6_i32_107 : i32 to vector<32x8xi32>
    %314 = arith.cmpi eq, %8, %313 : vector<32x8xi32>
    %315 = vector.shape_cast %309 : vector<32x1xf32> to vector<32x1xf32>
    %316 = vector.broadcast %315 : vector<32x1xf32> to vector<32x8xf32>
    %317 = arith.select %314, %316, %304 : vector<32x8xi1>, vector<32x8xf32>
    %c7_i32_108 = arith.constant 7 : i32
    %318 = vector.broadcast %c7_i32_108 : i32 to vector<32x8xi32>
    %319 = arith.cmpi eq, %8, %318 : vector<32x8xi32>
    %320 = vector.shape_cast %312 : vector<32x1xf32> to vector<32x1xf32>
    %321 = vector.broadcast %320 : vector<32x1xf32> to vector<32x8xf32>
    %322 = arith.select %319, %321, %317 : vector<32x8xi1>, vector<32x8xf32>
    %c0_109 = arith.constant 0 : index
    %c0_110 = arith.constant 0 : index
    %c48 = arith.constant 48 : index
    %323 = vector.load %arg5[%c0_109, %c0_110, %c48] : memref<1x32x64xf32, #tpu.memory_space<vmem>>, vector<1x32x8xf32>
    %324 = vector.shape_cast %323 : vector<1x32x8xf32> to vector<32x8xf32>
    %325 = vector.shape_cast %322 : vector<32x8xf32> to vector<1x32x8xf32>
    tpu.vector_store %arg5[%c0_109, %c0_110, %c48], %325 {strides = array<i32>} : memref<1x32x64xf32, #tpu.memory_space<vmem>>, vector<1x32x8xf32>,
    %cst_111 = arith.constant dense<0x7F800000> : vector<32xf32>
    %326 = vector.multi_reduction <minimumf>, %292, %cst_111 [1] : vector<32x64xf32> to vector<32xf32>
    %327 = vector.shape_cast %326 : vector<32xf32> to vector<32x1xf32>
    %328 = vector.broadcast %327 : vector<32x1xf32> to vector<32x64xf32>
    %329 = arith.cmpf oeq, %292, %328 : vector<32x64xf32>
    %c64_i32_112 = arith.constant 64 : i32
    %330 = vector.broadcast %c64_i32_112 : i32 to vector<32x64xi32>
    %331 = arith.select %329, %7, %330 : vector<32x64xi1>, vector<32x64xi32>
    %cst_113 = arith.constant dense<2147483647> : vector<32xi32>
    %332 = vector.multi_reduction <minsi>, %331, %cst_113 [1] : vector<32x64xi32> to vector<32xi32>
    %333 = vector.shape_cast %332 : vector<32xi32> to vector<32x1xi32>
    %334 = vector.broadcast %333 : vector<32x1xi32> to vector<32x64xi32>
    %335 = arith.cmpi eq, %7, %334 : vector<32x64xi32>
    %336 = arith.extui %335 : vector<32x64xi1> to vector<32x64xi32>
    %337 = arith.sitofp %336 : vector<32x64xi32> to vector<32x64xf32>
    %cst_114 = arith.constant dense<0.000000e+00> : vector<32x8xf32>
    %338 = tpu.matmul %337, %1, %cst_114 {dimension_numbers = #tpu.dot_dimension_numbers<[1], [0], [0], [1], [0, 0, 1, 1], [], []>} : vector<32x64xf32>, vector<64x8xf32>, vector<32x8xf32> -> vector<32x8xf32>
    %cst_115 = arith.constant 4.900000e-01 : f32
    %339 = vector.broadcast %cst_115 : f32 to vector<32x1xf32>
    %340 = arith.cmpf oge, %339, %327 : vector<32x1xf32>
    %cst_116 = arith.constant 0.000000e+00 : f32
    %341 = vector.shape_cast %340 : vector<32x1xi1> to vector<32x1xi1>
    %342 = vector.broadcast %341 : vector<32x1xi1> to vector<32x8xi1>
    %343 = vector.broadcast %cst_116 : f32 to vector<32x8xf32>
    %344 = arith.select %342, %338, %343 : vector<32x8xi1>, vector<32x8xf32>
    %cst_117 = arith.constant -0.714284718 : f32
    %345 = vector.broadcast %cst_117 : f32 to vector<32x8xf32>
    %346 = arith.mulf %344, %345 : vector<32x8xf32>
    %347 = arith.subf %346, %10 : vector<32x8xf32>
    %cst_118 = arith.constant 9.99999971E-10 : f32
    %348 = vector.broadcast %cst_118 : f32 to vector<32x1xf32>
    %349 = arith.maximumf %327, %348 : vector<32x1xf32>
    %350 = math.sqrt %349 : vector<32x1xf32>
    %cst_119 = arith.constant 1.42856944 : f32
    %351 = vector.broadcast %cst_119 : f32 to vector<32x1xf32>
    %352 = arith.mulf %350, %351 : vector<32x1xf32>
    %c-1_i32_120 = arith.constant -1 : i32
    %353 = vector.broadcast %c-1_i32_120 : i32 to vector<32x1xi32>
    %354 = arith.select %340, %333, %353 : vector<32x1xi1>, vector<32x1xi32>
    %355 = arith.sitofp %354 : vector<32x1xi32> to vector<32x1xf32>
    %c6_i32_121 = arith.constant 6 : i32
    %356 = vector.broadcast %c6_i32_121 : i32 to vector<32x8xi32>
    %357 = arith.cmpi eq, %8, %356 : vector<32x8xi32>
    %358 = vector.shape_cast %352 : vector<32x1xf32> to vector<32x1xf32>
    %359 = vector.broadcast %358 : vector<32x1xf32> to vector<32x8xf32>
    %360 = arith.select %357, %359, %347 : vector<32x8xi1>, vector<32x8xf32>
    %c7_i32_122 = arith.constant 7 : i32
    %361 = vector.broadcast %c7_i32_122 : i32 to vector<32x8xi32>
    %362 = arith.cmpi eq, %8, %361 : vector<32x8xi32>
    %363 = vector.shape_cast %355 : vector<32x1xf32> to vector<32x1xf32>
    %364 = vector.broadcast %363 : vector<32x1xf32> to vector<32x8xf32>
    %365 = arith.select %362, %364, %360 : vector<32x8xi1>, vector<32x8xf32>
    %c0_123 = arith.constant 0 : index
    %c0_124 = arith.constant 0 : index
    %c56 = arith.constant 56 : index
    %366 = vector.load %arg5[%c0_123, %c0_124, %c56] : memref<1x32x64xf32, #tpu.memory_space<vmem>>, vector<1x32x8xf32>
    %367 = vector.shape_cast %366 : vector<1x32x8xf32> to vector<32x8xf32>
    %368 = vector.shape_cast %365 : vector<32x8xf32> to vector<1x32x8xf32>
    tpu.vector_store %arg5[%c0_123, %c0_124, %c56], %368 {strides = array<i32>} : memref<1x32x64xf32, #tpu.memory_space<vmem>>, vector<1x32x8xf32>,
    return
  }
  func.func @transform_0(%arg0: i32, %arg1: i32) -> (i32, i32, i32) {
    %c0_i32 = arith.constant 0 : i32
    %c0_i32_0 = arith.constant 0 : i32
    %c0_i32_1 = arith.constant 0 : i32
    return %arg0, %c0_i32, %c0_i32_0 : i32, i32, i32
  }
  func.func @transform_1(%arg0: i32, %arg1: i32) -> (i32, i32, i32) {
    %c0_i32 = arith.constant 0 : i32
    %c0_i32_0 = arith.constant 0 : i32
    %c0_i32_1 = arith.constant 0 : i32
    return %arg0, %c0_i32, %c0_i32_0 : i32, i32, i32
  }
  func.func @transform_2(%arg0: i32, %arg1: i32) -> (i32, i32, i32) {
    %c0_i32 = arith.constant 0 : i32
    %c0_i32_0 = arith.constant 0 : i32
    return %arg0, %arg1, %c0_i32 : i32, i32, i32
  }
  func.func @transform_3(%arg0: i32, %arg1: i32) -> (i32, i32, i32) {
    %c0_i32 = arith.constant 0 : i32
    %c0_i32_0 = arith.constant 0 : i32
    return %arg0, %arg1, %c0_i32 : i32, i32, i32
  }
}

</mosaic_0001>

<llo_original>
// kernel: tpu_custom_call.1
$region0: #{tpu_custom_call.1}
  #allocation0 [shape = 'u32[]', space=smem, size = 0x4, offset = 0x4, fixed_abs, tag = 'smem constant byte address 0x4 - core index']
  #allocation1 [shape = 'u32[144,128]{1,0:T(1,128)}', space=vmem, size = 0x12000, scoped, tag = 'internal scratch']
  %s0 = inlined_call_operand.vmem [shape: f32[2,64,8], index: 0, kind: input, shape index: {}]
  %s1 = inlined_call_operand.vmem [shape: f32[2,8,64], index: 1, kind: input, shape index: {}]
  %s2 = inlined_call_operand.vmem [shape: f32[2,32,8], index: 2, kind: input, shape index: {}]
  %s3 = inlined_call_operand.hbm [shape: f32[2,32,64], index: 3, kind: output, shape index: {}]
  %s4 = sld [smem:[#allocation0]]
  $region45: #{tpu_custom_call.1} parent=0
    _
  %s6 = ssub.s32 1, %s4
  %s7 = scalar_select 0, %s6, %s4
  $region1: #{tpu_custom_call.1} parent=0
    #allocation2 [shape = 'u8[32768]{0}', space=vmem, size = 0x8000, scoped, tag = 'output window, operand 0']
    #allocation3 [shape = 's32[2]{0}', space=sflag, size = 0x8, scoped, tag = 'scoped memory for tpu_custom_call.1']
    %8 = vsyncpa [#allocation3], 0
    %s9 = scalar_lea.sflag [#allocation3], 1
    %10 = vsyncpa %s9, 0
    loop: start=0, step=1, limit=4
    $region2: #{tpu_custom_call.1} parent=1 // loop_pre_header
      _
    $region3: #{tpu_custom_call.1} parent=1 // loop_header
      %s12 = sphi 0, %s16
      %p13 = scmp.ge.s32.totalorder %s12, 4
      %s19 = sphi 0, %s31
      %s20 = sphi 0, %s27
      %s21 = sphi 0, %s19
      %s22 = sphi 0, %s20
      %s23 = sphi 0, %s21
      %s24 = sphi 0, %s22
      %s34 = sphi 0, %s36
      %s37 = sphi 0, %s34
      %s38 = sphi 0, %s37
      %s54 = sphi 0, %s38
      %s60 = sphi 0, %s62
      %s63 = sphi 0, %s60
      %s64 = sphi 0, %s63
      %s80 = sphi 0, %s64
      %s88 = sphi 0, %s90
      %s91 = sphi 0, %s88
      %s92 = sphi 0, %s91
      %s108 = sphi 0, %s92
      %s116 = sphi 0, %s118
      %s119 = sphi 0, %s116
      %s120 = sphi 0, %s119
      %s136 = sphi 0, %s120
    $region4: #{tpu_custom_call.1} parent=1 // loop_header_branch
      %15 = sbr.rel (%p13) target = $region8
    $region5: #{tpu_custom_call.1} parent=1 // loop_body
      %s17 = ssub.s32 %s12, 1
      %s18 = ssub.s32 %s12, 2
      %s25 = sadd.s32 1, %s20
      %p26 = scmp.ge.s32.totalorder %s25, 1
      %s27 = scalar_select %p26, 0, %s25
      %s28 = sadd.s32 1, %s19
      %s29 = scalar_select %p26, %s28, %s19
      %p30 = scmp.ge.s32.totalorder %s29, 2
      %s31 = scalar_select %p30, 0, %s29
      %s32 = ssub.s32 %s19, %s31
      %p33 = scmp.eq.s32.totalorder %s32, 0
      %s35 = sadd.s32 %s34, 1
      %s36 = scalar_select %p33, %s34, %s35
      %p39 = pneg %p33
      %p40 = scmp.eq.s32.totalorder %s12, 1
      %p41 = por %p39, %p40
      %p42 = scmp.ne.s32.totalorder %s34, %s37
      %p43 = scmp.eq.s32.totalorder %s12, 0
      %p44 = por %p42, %p43
      %p45 = scmp.ne.s32.totalorder %s34, %s37
      %p46 = scmp.eq.s32.totalorder %s17, 1
      %p47 = por %p45, %p46
      %p48 = scmp.ne.s32.totalorder %s37, %s38
      %p49 = scmp.eq.s32.totalorder %s17, 0
      %p50 = por %p48, %p49
      %p51 = scmp.ne.s32.totalorder %s37, %s38
      %p52 = scmp.eq.s32.totalorder %s18, 1
      %p53 = por %p51, %p52
      %p55 = scmp.ne.s32.totalorder %s38, %s54
      %p56 = scmp.eq.s32.totalorder %s18, 0
      %p57 = por %p55, %p56
      %s58 = ssub.s32 %s19, %s31
      %p59 = scmp.eq.s32.totalorder %s58, 0
      %s61 = sadd.s32 %s60, 1
      %s62 = scalar_select %p59, %s60, %s61
      %p65 = pneg %p59
      %p66 = scmp.eq.s32.totalorder %s12, 1
      %p67 = por %p65, %p66
      %p68 = scmp.ne.s32.totalorder %s60, %s63
      %p69 = scmp.eq.s32.totalorder %s12, 0
      %p70 = por %p68, %p69
      %p71 = scmp.ne.s32.totalorder %s60, %s63
      %p72 = scmp.eq.s32.totalorder %s17, 1
      %p73 = por %p71, %p72
      %p74 = scmp.ne.s32.totalorder %s63, %s64
      %p75 = scmp.eq.s32.totalorder %s17, 0
      %p76 = por %p74, %p75
      %p77 = scmp.ne.s32.totalorder %s63, %s64
      %p78 = scmp.eq.s32.totalorder %s18, 1
      %p79 = por %p77, %p78
      %p81 = scmp.ne.s32.totalorder %s64, %s80
      %p82 = scmp.eq.s32.totalorder %s18, 0
      %p83 = por %p81, %p82
      %s84 = ssub.s32 %s19, %s31
      %s85 = ssub.s32 %s20, %s27
      %s86 = sor.u32 %s84, %s85
      %p87 = scmp.eq.s32.totalorder %s86, 0
      %s89 = sadd.s32 %s88, 1
      %s90 = scalar_select %p87, %s88, %s89
      %p93 = pneg %p87
      %p94 = scmp.eq.s32.totalorder %s12, 1
      %p95 = por %p93, %p94
      %p96 = scmp.ne.s32.totalorder %s88, %s91
      %p97 = scmp.eq.s32.totalorder %s12, 0
      %p98 = por %p96, %p97
      %p99 = scmp.ne.s32.totalorder %s88, %s91
      %p100 = scmp.eq.s32.totalorder %s17, 1
      %p101 = por %p99, %p100
      %p102 = scmp.ne.s32.totalorder %s91, %s92
      %p103 = scmp.eq.s32.totalorder %s17, 0
      %p104 = por %p102, %p103
      %p105 = scmp.ne.s32.totalorder %s91, %s92
      %p106 = scmp.eq.s32.totalorder %s18, 1
      %p107 = por %p105, %p106
      %p109 = scmp.ne.s32.totalorder %s92, %s108
      %p110 = scmp.eq.s32.totalorder %s18, 0
      %p111 = por %p109, %p110
      %s112 = ssub.s32 %s19, %s31
      %s113 = ssub.s32 %s20, %s27
      %s114 = sor.u32 %s112, %s113
      %p115 = scmp.eq.s32.totalorder %s114, 0
      %s117 = sadd.s32 %s116, 1
      %s118 = scalar_select %p115, %s116, %s117
      %p121 = pneg %p115
      %p122 = scmp.eq.s32.totalorder %s12, 1
      %p123 = por %p121, %p122
      %p124 = scmp.ne.s32.totalorder %s116, %s119
      %p125 = scmp.eq.s32.totalorder %s12, 0
      %p126 = por %p124, %p125
      %p127 = scmp.ne.s32.totalorder %s116, %s119
      %p128 = scmp.eq.s32.totalorder %s17, 1
      %p129 = por %p127, %p128
      %p130 = scmp.ne.s32.totalorder %s119, %s120
      %p131 = scmp.eq.s32.totalorder %s17, 0
      %p132 = por %p130, %p131
      %p133 = scmp.ne.s32.totalorder %s119, %s120
      %p134 = scmp.eq.s32.totalorder %s18, 1
      %p135 = por %p133, %p134
      %p137 = scmp.ne.s32.totalorder %s120, %s136
      %p138 = scmp.eq.s32.totalorder %s18, 0
      %p139 = por %p137, %p138
      %p140 = scmp.le.s32.totalorder 1, %s12
      %p141 = scmp.lt.s32.totalorder %s12, 3
      %p142 = pnand %p140, %p141
      %p143 = pneg %p142
      // Predicated region
      $region9: #{tpu_custom_call.1} parent=5 // pred_check
        _
      $region10: #{tpu_custom_call.1} parent=5 // pred_check_branch
        %145 = sbr.rel (%p142) target = $region12
      $region11: #{tpu_custom_call.1} parent=5 // pred_region
        %s146 = ssub.s32 %s12, 1
      $region12: #{tpu_custom_call.1} parent=5 // pred_fallthru
        _
      %p147 = scmp.lt.s32.totalorder %s12, 2
      // Predicated region
      $region13: #{tpu_custom_call.1} parent=5 // pred_check
        %p148 = pneg %p147
      $region14: #{tpu_custom_call.1} parent=5 // pred_check_branch
        %150 = sbr.rel (%p148) target = $region16
      $region15: #{tpu_custom_call.1} parent=5 // pred_region
        // Predicated region
        $region17: #{tpu_custom_call.1} parent=15 // pred_check
          %p151 = pneg %p44
        $region18: #{tpu_custom_call.1} parent=15 // pred_check_branch
          %153 = sbr.rel (%p151) target = $region20
        $region19: #{tpu_custom_call.1} parent=15 // pred_region
          %p154 = scmp.lt.s32.totalorder %s19, 1
          %s155 = scalar_select %p154, %s19, 1
          %s156 = smul.addr %s155, 8
          %s157 = smul.addr %s156, 8
          %s158 = scalar_lea.vmem %s0, %s157
        $region20: #{tpu_custom_call.1} parent=15 // pred_fallthru
          _
        // Predicated region
        $region21: #{tpu_custom_call.1} parent=15 // pred_check
          %p159 = pneg %p70
        $region22: #{tpu_custom_call.1} parent=15 // pred_check_branch
          %161 = sbr.rel (%p159) target = $region24
        $region23: #{tpu_custom_call.1} parent=15 // pred_region
          %p162 = scmp.lt.s32.totalorder %s19, 1
          %s163 = scalar_select %p162, %s19, 1
          %s164 = smul.addr %s163, 8
          %s165 = scalar_lea.vmem %s1, %s164
        $region24: #{tpu_custom_call.1} parent=15 // pred_fallthru
          _
        // Predicated region
        $region25: #{tpu_custom_call.1} parent=15 // pred_check
          %p166 = pneg %p98
        $region26: #{tpu_custom_call.1} parent=15 // pred_check_branch
          %168 = sbr.rel (%p166) target = $region28
        $region27: #{tpu_custom_call.1} parent=15 // pred_region
          %s169 = smul.u32 4, %s20
          %p170 = scmp.lt.s32.totalorder %s19, 1
          %s171 = scalar_select %p170, %s19, 1
          %p172 = scmp.lt.s32.totalorder %s169, 3
          %s173 = scalar_select %p172, %s169, 3
          %s174 = smul.addr %s171, 4
          %s175 = sadd.s32 %s173, %s174
          %s176 = smul.addr %s175, 8
          %s177 = scalar_lea.vmem %s2, %s176
          %s178 = smul.u32 4, %s20
        $region28: #{tpu_custom_call.1} parent=15 // pred_fallthru
          _
      $region16: #{tpu_custom_call.1} parent=5 // pred_fallthru
        _
      %p179 = scmp.le.s32.totalorder 1, %s12
      %p180 = scmp.lt.s32.totalorder %s12, 3
      %p181 = pnand %p179, %p180
      %p182 = pneg %p181
      // Predicated region
      $region29: #{tpu_custom_call.1} parent=5 // pred_check
        _
      $region30: #{tpu_custom_call.1} parent=5 // pred_check_branch
        %184 = sbr.rel (%p181) target = $region32
      $region31: #{tpu_custom_call.1} parent=5 // pred_region
        %s185 = ssub.s32 %s12, 1
        %p186 = scmp.lt.s32.totalorder %s21, 1
        %s187 = scalar_select %p186, %s21, 1
        %s188 = smul.addr %s187, 8
        %s189 = smul.addr %s188, 8
        %s190 = scalar_lea.vmem %s0, %s189
        %p191 = pneg %p50
        %p192 = pneg %p47
        %p193 = scmp.lt.s32.totalorder %s21, 1
        %s194 = scalar_select %p193, %s21, 1
        %s195 = smul.addr %s194, 8
        %s196 = scalar_lea.vmem %s1, %s195
        %p197 = pneg %p76
        %p198 = pneg %p73
        %s199 = smul.u32 4, %s22
        %p200 = scmp.lt.s32.totalorder %s21, 1
        %s201 = scalar_select %p200, %s21, 1
        %p202 = scmp.lt.s32.totalorder %s199, 3
        %s203 = scalar_select %p202, %s199, 3
        %s204 = smul.addr %s201, 4
        %s205 = sadd.s32 %s203, %s204
        %s206 = smul.addr %s205, 8
        %s207 = scalar_lea.vmem %s2, %s206
        %p208 = pneg %p104
        %p209 = pneg %p101
        %p210 = pneg %p132
        %p211 = pneg %p129
        %s212 = sand.u32 %s119, 1
        %s213 = scalar_lea.sflag [#allocation3], %s212
        %s214 = sand.u32 %s119, 1
        %s215 = smul.addr %s214, 32
        %s216 = scalar_lea.vmem [#allocation2], %s215
        %p217 = scmp.lt.s32.totalorder %s21, 1
        %s218 = scalar_select %p217, %s21, 1
        %s219 = smul.addr %s218, 8
        %s220 = smul.addr %s219, 8
        %s221 = scalar_lea.vmem %s0, %s220
        %p222 = scmp.lt.s32.totalorder %s21, 1
        %s223 = scalar_select %p222, %s21, 1
        %s224 = smul.addr %s223, 8
        %s225 = scalar_lea.vmem %s1, %s224
        %s226 = smul.u32 4, %s22
        %p227 = scmp.lt.s32.totalorder %s21, 1
        %s228 = scalar_select %p227, %s21, 1
        %p229 = scmp.lt.s32.totalorder %s226, 3
        %s230 = scalar_select %p229, %s226, 3
        %s231 = smul.addr %s228, 4
        %s232 = sadd.s32 %s230, %s231
        %s233 = smul.addr %s232, 8
        %s234 = scalar_lea.vmem %s2, %s233
        %s235 = smul.u32 4, %s22
        %s236 = smul.u32 4, %s22
        %v237 = vld [vmem:[%s221] sm:$0xff]
        %v238 = vld [vmem:[%s221 + $0x8] sm:$0xff]
        %v239 = vld [vmem:[%s221 + $0x10] sm:$0xff]
        %v240 = vld [vmem:[%s221 + $0x18] sm:$0xff]
        %v241 = vld [vmem:[%s221 + $0x20] sm:$0xff]
        %v242 = vld [vmem:[%s221 + $0x28] sm:$0xff]
        %v243 = vld [vmem:[%s221 + $0x30] sm:$0xff]
        %v244 = vld [vmem:[%s221 + $0x38] sm:$0xff]
        %v245 = vld [vmem:[%s225] sm:$0xff]
        %v246 = vld [vmem:[%s234] sm:$0xff]
        %v247 = vld [vmem:[%s234 + $0x8] sm:$0xff]
        %v248 = vld [vmem:[%s234 + $0x10] sm:$0xff]
        %v249 = vld [vmem:[%s234 + $0x18] sm:$0xff]
        %vm250 = vcmask 64512
        %v252 = vsel %vm250, %v246, 0
        %v255 = vsel %vm250, %v247, 0
        %v258 = vsel %vm250, %v248, 0
        %v261 = vsel %vm250, %v249, 0
        %263 = vmatprep.subr.mxu0 0.0
        %264 = vmatpush1.msra.mxu0 %v245
        %265 = vmatprep.subr.mxu0 0.0
        %266 = vmatpush1.msra.mxu0 0.0
        %267 = vmatprep.subr.mxu0 0.0
        %268 = vmatpush1.msra.mxu0 0.0
        %269 = vmatprep.subr.mxu0 0.0
        %270 = vmatpush1.msra.mxu0 0.0
        %271 = vmatprep.subr.mxu0 0.0
        %272 = vmatpush1.msra.mxu0 0.0
        %273 = vmatprep.subr.mxu0 0.0
        %274 = vmatpush1.msra.mxu0 0.0
        %275 = vmatprep.subr.mxu0 0.0
        %276 = vmatpush1.msra.mxu0 0.0
        %277 = vmatprep.subr.mxu0 0.0
        %278 = vmatpush1.msra.mxu0 0.0
        %279 = vmatprep.subr.mxu0 0.0
        %280 = vmatpush1.msra.mxu0 0.0
        %281 = vmatprep.subr.mxu0 0.0
        %282 = vmatpush1.msra.mxu0 0.0
        %283 = vmatprep.subr.mxu0 0.0
        %284 = vmatpush1.msra.mxu0 0.0
        %285 = vmatprep.subr.mxu0 0.0
        %286 = vmatpush1.msra.mxu0 0.0
        %287 = vmatprep.subr.mxu0 0.0
        %288 = vmatpush1.msra.mxu0 0.0
        %289 = vmatprep.subr.mxu0 0.0
        %290 = vmatpush1.msra.mxu0 0.0
        %291 = vmatprep.subr.mxu0 0.0
        %292 = vmatpush1.msra.mxu0 0.0
        %293 = vmatprep.subr.mxu0 0.0
        %294 = vmatpush1.msra.mxu0 0.0
        %295 = vmatprep.subr.mxu0 0.0
        %296 = vmatpush1.msra.mxu0 0.0
        %297 = vmatprep.subr.mxu0 0.0
        %298 = vmatpush1.msra.mxu0 0.0
        %299 = vmatprep.subr.mxu0 0.0
        %300 = vmatpush1.msra.mxu0 0.0
        %301 = vmatprep.subr.mxu0 0.0
        %302 = vmatpush1.msra.mxu0 0.0
        %303 = vmatprep.subr.mxu0 0.0
        %304 = vmatpush1.msra.mxu0 0.0
        %305 = vmatprep.subr.mxu0 0.0
        %306 = vmatpush1.msra.mxu0 0.0
        %307 = vmatprep.subr.mxu0 0.0
        %308 = vmatpush1.msra.mxu0 0.0
        %309 = vmatprep.subr.mxu0 0.0
        %310 = vmatpush1.msra.mxu0 0.0
        %311 = vmatprep.subr.mxu0 0.0
        %312 = vmatpush1.msra.mxu0 0.0
        %313 = vmatprep.subr.mxu0 0.0
        %314 = vmatpush1.msra.mxu0 0.0
        %315 = vmatprep.subr.mxu0 0.0
        %316 = vmatpush1.msra.mxu0 0.0
        %317 = vmatprep.subr.mxu0 0.0
        %318 = vmatpush1.msra.mxu0 0.0
        %319 = vmatprep.subr.mxu0 0.0
        %320 = vmatpush1.msra.mxu0 0.0
        %321 = vmatprep.subr.mxu0 0.0
        %322 = vmatpush1.msra.mxu0 0.0
        %323 = vmatprep.subr.mxu0 0.0
        %324 = vmatpush1.msra.mxu0 0.0
        %325 = vmatprep.subr.mxu0 0.0
        %326 = vmatpush1.msra.mxu0 0.0
        %327 = vmatprep.mubr.f32.mxu0 0.0
        %328 = vmatmul.mubr.f32.gmra.mrb[0].mxu0 %v252
        %v329 = vpop.f32.mrb[0].mxu0
        %v330 = vadd.f32 0.0, %v329
        %v331 = vpop.f32.mrb[0].mxu0
        %332 = vmatprep.mubr.f32.mxu0 0.0
        %333 = vmatmul.mubr.f32.gmra.mrb[0].mxu0 %v255
        %v334 = vpop.f32.mrb[0].mxu0
        %v335 = vadd.f32 0.0, %v334
        %v336 = vpop.f32.mrb[0].mxu0
        %337 = vmatprep.mubr.f32.mxu0 0.0
        %338 = vmatmul.mubr.f32.gmra.mrb[0].mxu0 %v258
        %v339 = vpop.f32.mrb[0].mxu0
        %v340 = vadd.f32 0.0, %v339
        %v341 = vpop.f32.mrb[0].mxu0
        %342 = vmatprep.mubr.f32.mxu0 0.0
        %343 = vmatmul.mubr.f32.gmra.mrb[0].mxu0 %v261
        %v344 = vpop.f32.mrb[0].mxu0
        %v345 = vadd.f32 0.0, %v344
        %v346 = vpop.f32.mrb[0].mxu0
        %347 = vdwg.mxu0
        %v348 = vlaneseq
        %v349 = vand.u32 %v348, 127
        %v350 = vmul.f32 %v246, 1.4285694
        %v351 = vmul.f32 %v247, 1.4285694
        %v352 = vmul.f32 %v248, 1.4285694
        %v353 = vmul.f32 %v249, 1.4285694
        %vm354 = vcmask 523264
        %v355 = vsel %vm354, %v330, inf
        %356 = vmin.xlane.f32.xlu0 %v355
        %v357 = vpop.xlane.xlu0 %356
        %v358 = vsel %vm354, %v335, inf
        %359 = vmin.xlane.f32.xlu0 %v358
        %v360 = vpop.xlane.xlu0 %359
        %v361 = vsel %vm354, %v340, inf
        %362 = vmin.xlane.f32.xlu0 %v361
        %v363 = vpop.xlane.xlu0 %362
        %v364 = vsel %vm354, %v345, inf
        %365 = vmin.xlane.f32.xlu0 %v364
        %v366 = vpop.xlane.xlu0 %365
        %vm367 = vcmp.eq.f32.partialorder %v330, %v357
        %vm368 = vcmp.eq.f32.partialorder %v335, %v360
        %vm369 = vcmp.eq.f32.partialorder %v340, %v363
        %vm370 = vcmp.eq.f32.partialorder %v345, %v366
        %v371 = vsel %vm367, %v349, 64
        %v372 = vsel %vm368, %v349, 64
        %v373 = vsel %vm369, %v349, 64
        %v374 = vsel %vm370, %v349, 64
        %v375 = vsel %vm354, %v371, 2147483647
        %v376 = vand.u32 %v375, 65535
        %v377 = vshra.s32 %v375, 16
        %v378 = vcvt.s32.f32 %v376
        %v379 = vcvt.s32.f32 %v377
        %380 = vmin.xlane.f32.xlu0 %v379
        %v381 = vpop.xlane.xlu0 %380
        %vm382 = vcmp.eq.f32.partialorder %v379, %v381
        %v383 = vsel %vm382, %v378, inf
        %384 = vmin.xlane.f32.xlu0 %v383
        %v385 = vpop.xlane.xlu0 %384
        %v386 = vcvt.f32.s32 %v385
        %v387 = vcvt.f32.s32 %v381
        %v388 = vshll.u32 %v387, 16
        %v389 = vadd.s32 %v388, %v386
        %v390 = vsel %vm354, %v372, 2147483647
        %v391 = vand.u32 %v390, 65535
        %v392 = vshra.s32 %v390, 16
        %v393 = vcvt.s32.f32 %v391
        %v394 = vcvt.s32.f32 %v392
        %395 = vmin.xlane.f32.xlu0 %v394
        %v396 = vpop.xlane.xlu0 %395
        %vm397 = vcmp.eq.f32.partialorder %v394, %v396
        %v398 = vsel %vm397, %v393, inf
        %399 = vmin.xlane.f32.xlu0 %v398
        %v400 = vpop.xlane.xlu0 %399
        %v401 = vcvt.f32.s32 %v400
        %v402 = vcvt.f32.s32 %v396
        %v403 = vshll.u32 %v402, 16
        %v404 = vadd.s32 %v403, %v401
        %v405 = vsel %vm354, %v373, 2147483647
        %v406 = vand.u32 %v405, 65535
        %v407 = vshra.s32 %v405, 16
        %v408 = vcvt.s32.f32 %v406
        %v409 = vcvt.s32.f32 %v407
        %410 = vmin.xlane.f32.xlu0 %v409
        %v411 = vpop.xlane.xlu0 %410
        %vm412 = vcmp.eq.f32.partialorder %v409, %v411
        %v413 = vsel %vm412, %v408, inf
        %414 = vmin.xlane.f32.xlu0 %v413
        %v415 = vpop.xlane.xlu0 %414
        %v416 = vcvt.f32.s32 %v415
        %v417 = vcvt.f32.s32 %v411
        %v418 = vshll.u32 %v417, 16
        %v419 = vadd.s32 %v418, %v416
        %v420 = vsel %vm354, %v374, 2147483647
        %v421 = vand.u32 %v420, 65535
        %v422 = vshra.s32 %v420, 16
        %v423 = vcvt.s32.f32 %v421
        %v424 = vcvt.s32.f32 %v422
        %425 = vmin.xlane.f32.xlu0 %v424
        %v426 = vpop.xlane.xlu0 %425
        %vm427 = vcmp.eq.f32.partialorder %v424, %v426
        %v428 = vsel %vm427, %v423, inf
        %429 = vmin.xlane.f32.xlu0 %v428
        %v430 = vpop.xlane.xlu0 %429
        %v431 = vcvt.f32.s32 %v430
        %v432 = vcvt.f32.s32 %v426
        %v433 = vshll.u32 %v432, 16
        %v434 = vadd.s32 %v433, %v431
        %vm435 = vcmp.eq.s32.totalorder %v349, %v389
        %vm436 = vcmp.eq.s32.totalorder %v349, %v404
        %vm437 = vcmp.eq.s32.totalorder %v349, %v419
        %vm438 = vcmp.eq.s32.totalorder %v349, %v434
        %v439 = vsel %vm435, inf, %v330
        %v440 = vsel %vm436, inf, %v335
        %v441 = vsel %vm437, inf, %v340
        %v442 = vsel %vm438, inf, %v345
        %v443 = vsel %vm435, 1, 0
        %v444 = vsel %vm436, 1, 0
        %v445 = vsel %vm437, 1, 0
        %v446 = vsel %vm438, 1, 0
        %v447 = vcvt.s32.f32 %v443
        %v448 = vcvt.s32.f32 %v444
        %v449 = vcvt.s32.f32 %v445
        %v450 = vcvt.s32.f32 %v446
        %v452 = vsel %vm354, %v447, 0
        %v455 = vsel %vm354, %v448, 0
        %v458 = vsel %vm354, %v449, 0
        %v461 = vsel %vm354, %v450, 0
        %463 = vmatprep.subr.mxu0 0.0
        %464 = vmatpush1.msra.mxu0 %v237
        %465 = vmatprep.subr.mxu0 0.0
        %466 = vmatpush1.msra.mxu0 %v238
        %467 = vmatprep.subr.mxu0 0.0
        %468 = vmatpush1.msra.mxu0 %v239
        %469 = vmatprep.subr.mxu0 0.0
        %470 = vmatpush1.msra.mxu0 %v240
        %471 = vmatprep.subr.mxu0 0.0
        %472 = vmatpush1.msra.mxu0 %v241
        %473 = vmatprep.subr.mxu0 0.0
        %474 = vmatpush1.msra.mxu0 %v242
        %475 = vmatprep.subr.mxu0 0.0
        %476 = vmatpush1.msra.mxu0 %v243
        %477 = vmatprep.subr.mxu0 0.0
        %478 = vmatpush1.msra.mxu0 %v244
        %479 = vmatprep.subr.mxu0 0.0
        %480 = vmatpush1.msra.mxu0 0.0
        %481 = vmatprep.subr.mxu0 0.0
        %482 = vmatpush1.msra.mxu0 0.0
        %483 = vmatprep.subr.mxu0 0.0
        %484 = vmatpush1.msra.mxu0 0.0
        %485 = vmatprep.subr.mxu0 0.0
        %486 = vmatpush1.msra.mxu0 0.0
        %487 = vmatprep.subr.mxu0 0.0
        %488 = vmatpush1.msra.mxu0 0.0
        %489 = vmatprep.subr.mxu0 0.0
        %490 = vmatpush1.msra.mxu0 0.0
        %491 = vmatprep.subr.mxu0 0.0
        %492 = vmatpush1.msra.mxu0 0.0
        %493 = vmatprep.subr.mxu0 0.0
        %494 = vmatpush1.msra.mxu0 0.0
        %495 = vmatprep.subr.mxu0 0.0
        %496 = vmatpush1.msra.mxu0 0.0
        %497 = vmatprep.subr.mxu0 0.0
        %498 = vmatpush1.msra.mxu0 0.0
        %499 = vmatprep.subr.mxu0 0.0
        %500 = vmatpush1.msra.mxu0 0.0
        %501 = vmatprep.subr.mxu0 0.0
        %502 = vmatpush1.msra.mxu0 0.0
        %503 = vmatprep.subr.mxu0 0.0
        %504 = vmatpush1.msra.mxu0 0.0
        %505 = vmatprep.subr.mxu0 0.0
        %506 = vmatpush1.msra.mxu0 0.0
        %507 = vmatprep.subr.mxu0 0.0
        %508 = vmatpush1.msra.mxu0 0.0
        %509 = vmatprep.subr.mxu0 0.0
        %510 = vmatpush1.msra.mxu0 0.0
        %511 = vmatprep.subr.mxu0 0.0
        %512 = vmatpush1.msra.mxu0 0.0
        %513 = vmatprep.subr.mxu0 0.0
        %514 = vmatpush1.msra.mxu0 0.0
        %515 = vmatprep.subr.mxu0 0.0
        %516 = vmatpush1.msra.mxu0 0.0
        %517 = vmatprep.subr.mxu0 0.0
        %518 = vmatpush1.msra.mxu0 0.0
        %519 = vmatprep.subr.mxu0 0.0
        %520 = vmatpush1.msra.mxu0 0.0
        %521 = vmatprep.subr.mxu0 0.0
        %522 = vmatpush1.msra.mxu0 0.0
        %523 = vmatprep.subr.mxu0 0.0
        %524 = vmatpush1.msra.mxu0 0.0
        %525 = vmatprep.subr.mxu0 0.0
        %526 = vmatpush1.msra.mxu0 0.0
        %527 = vmatprep.mubr.f32.mxu0 0.0
        %528 = vmatmul.mubr.f32.gmra.mrb[0].mxu0 %v452
        %v529 = vpop.f32.mrb[0].mxu0
        %v530 = vadd.f32 0.0, %v529
        %v531 = vpop.f32.mrb[0].mxu0
        %532 = vmatprep.mubr.f32.mxu0 0.0
        %533 = vmatmul.mubr.f32.gmra.mrb[0].mxu0 %v455
        %v534 = vpop.f32.mrb[0].mxu0
        %v535 = vadd.f32 0.0, %v534
        %v536 = vpop.f32.mrb[0].mxu0
        %537 = vmatprep.mubr.f32.mxu0 0.0
        %538 = vmatmul.mubr.f32.gmra.mrb[0].mxu0 %v458
        %v539 = vpop.f32.mrb[0].mxu0
        %v540 = vadd.f32 0.0, %v539
        %v541 = vpop.f32.mrb[0].mxu0
        %542 = vmatprep.mubr.f32.mxu0 0.0
        %543 = vmatmul.mubr.f32.gmra.mrb[0].mxu0 %v461
        %v544 = vpop.f32.mrb[0].mxu0
        %v545 = vadd.f32 0.0, %v544
        %v546 = vpop.f32.mrb[0].mxu0
        %547 = vdwg.mxu0
        %vm548 = vcmp.ge.f32.partialorder 0.49, %v357
        %vm549 = vcmp.ge.f32.partialorder 0.49, %v360
        %vm550 = vcmp.ge.f32.partialorder 0.49, %v363
        %vm551 = vcmp.ge.f32.partialorder 0.49, %v366
        %v552 = vsel %vm548, 1, 0
        %v553 = vsel %vm549, 1, 0
        %v554 = vsel %vm550, 1, 0
        %v555 = vsel %vm551, 1, 0
        %vm556 = vcmp.eq.s32.totalorder %v552, 1
        %vm557 = vcmp.eq.s32.totalorder %v553, 1
        %vm558 = vcmp.eq.s32.totalorder %v554, 1
        %vm559 = vcmp.eq.s32.totalorder %v555, 1
        %v560 = vsel %vm556, %v530, 0.0
        %v561 = vsel %vm557, %v535, 0.0
        %v562 = vsel %vm558, %v540, 0.0
        %v563 = vsel %vm559, %v545, 0.0
        %v564 = vmul.f32 %v560, -0.7142847
        %v565 = vmul.f32 %v561, -0.7142847
        %v566 = vmul.f32 %v562, -0.7142847
        %v567 = vmul.f32 %v563, -0.7142847
        %v568 = vsub.f32 %v564, %v350
        %v569 = vsub.f32 %v565, %v351
        %v570 = vsub.f32 %v566, %v352
        %v571 = vsub.f32 %v567, %v353
        %v572 = vmax.f32 %v357, 1e-09
        %v573 = vmax.f32 %v360, 1e-09
        %v574 = vmax.f32 %v363, 1e-09
        %v575 = vmax.f32 %v366, 1e-09
        %v576 = vrsqrt.pop %v572
        %v577 = vmul.f32 %v572, %v576
        %vm578 = vcmp.eq.f32.partialorder %v572, inf
        %v579 = vsel %vm578, %v572, %v577
        %vm580 = vcmp.eq.f32.partialorder %v572, 0.0
        %v581 = vand.u32 %v572, 2147483648
        %v582 = vsel %vm580, %v581, %v579
        %v583 = vrsqrt.pop %v573
        %v584 = vmul.f32 %v573, %v583
        %vm585 = vcmp.eq.f32.partialorder %v573, inf
        %v586 = vsel %vm585, %v573, %v584
        %vm587 = vcmp.eq.f32.partialorder %v573, 0.0
        %v588 = vand.u32 %v573, 2147483648
        %v589 = vsel %vm587, %v588, %v586
        %v590 = vrsqrt.pop %v574
        %v591 = vmul.f32 %v574, %v590
        %vm592 = vcmp.eq.f32.partialorder %v574, inf
        %v593 = vsel %vm592, %v574, %v591
        %vm594 = vcmp.eq.f32.partialorder %v574, 0.0
        %v595 = vand.u32 %v574, 2147483648
        %v596 = vsel %vm594, %v595, %v593
        %v597 = vrsqrt.pop %v575
        %v598 = vmul.f32 %v575, %v597
        %vm599 = vcmp.eq.f32.partialorder %v575, inf
        %v600 = vsel %vm599, %v575, %v598
        %vm601 = vcmp.eq.f32.partialorder %v575, 0.0
        %v602 = vand.u32 %v575, 2147483648
        %v603 = vsel %vm601, %v602, %v600
        %v604 = vmul.f32 %v582, 1.4285694
        %v605 = vmul.f32 %v589, 1.4285694
        %v606 = vmul.f32 %v596, 1.4285694
        %v607 = vmul.f32 %v603, 1.4285694
        %v608 = vsel %vm548, %v389, 4294967295
        %v609 = vsel %vm549, %v404, 4294967295
        %v610 = vsel %vm550, %v419, 4294967295
        %v611 = vsel %vm551, %v434, 4294967295
        %v612 = vcvt.s32.f32 %v608
        %v613 = vcvt.s32.f32 %v609
        %v614 = vcvt.s32.f32 %v610
        %v615 = vcvt.s32.f32 %v611
        %vm616 = vcmp.eq.s32.totalorder %v349, 6
        %v617 = vsel %vm616, %v604, %v568
        %v618 = vsel %vm616, %v605, %v569
        %v619 = vsel %vm616, %v606, %v570
        %v620 = vsel %vm616, %v607, %v571
        %vm621 = vcmp.eq.s32.totalorder %v349, 7
        %v622 = vsel %vm621, %v612, %v617
        %v623 = vsel %vm621, %v613, %v618
        %v624 = vsel %vm621, %v614, %v619
        %v625 = vsel %vm621, %v615, %v620
        %626 = vst.msk [vmem:[%s216] sm:$0xff] %vm250, %v622
        %627 = vst.msk [vmem:[%s216 + $0x8] sm:$0xff] %vm250, %v623
        %628 = vst.msk [vmem:[%s216 + $0x10] sm:$0xff] %vm250, %v624
        %629 = vst.msk [vmem:[%s216 + $0x18] sm:$0xff] %vm250, %v625
        %v630 = vsel %vm354, %v439, inf
        %631 = vmin.xlane.f32.xlu0 %v630
        %v632 = vpop.xlane.xlu0 %631
        %v633 = vsel %vm354, %v440, inf
        %634 = vmin.xlane.f32.xlu0 %v633
        %v635 = vpop.xlane.xlu0 %634
        %v636 = vsel %vm354, %v441, inf
        %637 = vmin.xlane.f32.xlu0 %v636
        %v638 = vpop.xlane.xlu0 %637
        %v639 = vsel %vm354, %v442, inf
        %640 = vmin.xlane.f32.xlu0 %v639
        %v641 = vpop.xlane.xlu0 %640
        %vm642 = vcmp.eq.f32.partialorder %v439, %v632
        %vm643 = vcmp.eq.f32.partialorder %v440, %v635
        %vm644 = vcmp.eq.f32.partialorder %v441, %v638
        %vm645 = vcmp.eq.f32.partialorder %v442, %v641
        %v646 = vsel %vm642, %v349, 64
        %v647 = vsel %vm643, %v349, 64
        %v648 = vsel %vm644, %v349, 64
        %v649 = vsel %vm645, %v349, 64
        %v650 = vsel %vm354, %v646, 2147483647
        %v651 = vand.u32 %v650, 65535
        %v652 = vshra.s32 %v650, 16
        %v653 = vcvt.s32.f32 %v651
        %v654 = vcvt.s32.f32 %v652
        %655 = vmin.xlane.f32.xlu0 %v654
        %v656 = vpop.xlane.xlu0 %655
        %vm657 = vcmp.eq.f32.partialorder %v654, %v656
        %v658 = vsel %vm657, %v653, inf
        %659 = vmin.xlane.f32.xlu0 %v658
        %v660 = vpop.xlane.xlu0 %659
        %v661 = vcvt.f32.s32 %v660
        %v662 = vcvt.f32.s32 %v656
        %v663 = vshll.u32 %v662, 16
        %v664 = vadd.s32 %v663, %v661
        %v665 = vsel %vm354, %v647, 2147483647
        %v666 = vand.u32 %v665, 65535
        %v667 = vshra.s32 %v665, 16
        %v668 = vcvt.s32.f32 %v666
        %v669 = vcvt.s32.f32 %v667
        %670 = vmin.xlane.f32.xlu0 %v669
        %v671 = vpop.xlane.xlu0 %670
        %vm672 = vcmp.eq.f32.partialorder %v669, %v671
        %v673 = vsel %vm672, %v668, inf
        %674 = vmin.xlane.f32.xlu0 %v673
        %v675 = vpop.xlane.xlu0 %674
        %v676 = vcvt.f32.s32 %v675
        %v677 = vcvt.f32.s32 %v671
        %v678 = vshll.u32 %v677, 16
        %v679 = vadd.s32 %v678, %v676
        %v680 = vsel %vm354, %v648, 2147483647
        %v681 = vand.u32 %v680, 65535
        %v682 = vshra.s32 %v680, 16
        %v683 = vcvt.s32.f32 %v681
        %v684 = vcvt.s32.f32 %v682
        %685 = vmin.xlane.f32.xlu0 %v684
        %v686 = vpop.xlane.xlu0 %685
        %vm687 = vcmp.eq.f32.partialorder %v684, %v686
        %v688 = vsel %vm687, %v683, inf
        %689 = vmin.xlane.f32.xlu0 %v688
        %v690 = vpop.xlane.xlu0 %689
        %v691 = vcvt.f32.s32 %v690
        %v692 = vcvt.f32.s32 %v686
        %v693 = vshll.u32 %v692, 16
        %v694 = vadd.s32 %v693, %v691
        %v695 = vsel %vm354, %v649, 2147483647
        %v696 = vand.u32 %v695, 65535
        %v697 = vshra.s32 %v695, 16
        %v698 = vcvt.s32.f32 %v696
        %v699 = vcvt.s32.f32 %v697
        %700 = vmin.xlane.f32.xlu0 %v699
        %v701 = vpop.xlane.xlu0 %700
        %vm702 = vcmp.eq.f32.partialorder %v699, %v701
        %v703 = vsel %vm702, %v698, inf
        %704 = vmin.xlane.f32.xlu0 %v703
        %v705 = vpop.xlane.xlu0 %704
        %v706 = vcvt.f32.s32 %v705
        %v707 = vcvt.f32.s32 %v701
        %v708 = vshll.u32 %v707, 16
        %v709 = vadd.s32 %v708, %v706
        %vm710 = vcmp.eq.s32.totalorder %v349, %v664
        %vm711 = vcmp.eq.s32.totalorder %v349, %v679
        %vm712 = vcmp.eq.s32.totalorder %v349, %v694
        %vm713 = vcmp.eq.s32.totalorder %v349, %v709
        %v714 = vsel %vm710, inf, %v439
        %v715 = vsel %vm711, inf, %v440
        %v716 = vsel %vm712, inf, %v441
        %v717 = vsel %vm713, inf, %v442
        %v718 = vsel %vm710, 1, 0
        %v719 = vsel %vm711, 1, 0
        %v720 = vsel %vm712, 1, 0
        %v721 = vsel %vm713, 1, 0
        %v722 = vcvt.s32.f32 %v718
        %v723 = vcvt.s32.f32 %v719
        %v724 = vcvt.s32.f32 %v720
        %v725 = vcvt.s32.f32 %v721
        %v727 = vsel %vm354, %v722, 0
        %v730 = vsel %vm354, %v723, 0
        %v733 = vsel %vm354, %v724, 0
        %v736 = vsel %vm354, %v725, 0
        %738 = vmatprep.subr.mxu0 0.0
        %739 = vmatpush1.msra.mxu0 %v237
        %740 = vmatprep.subr.mxu0 0.0
        %741 = vmatpush1.msra.mxu0 %v238
        %742 = vmatprep.subr.mxu0 0.0
        %743 = vmatpush1.msra.mxu0 %v239
        %744 = vmatprep.subr.mxu0 0.0
        %745 = vmatpush1.msra.mxu0 %v240
        %746 = vmatprep.subr.mxu0 0.0
        %747 = vmatpush1.msra.mxu0 %v241
        %748 = vmatprep.subr.mxu0 0.0
        %749 = vmatpush1.msra.mxu0 %v242
        %750 = vmatprep.subr.mxu0 0.0
        %751 = vmatpush1.msra.mxu0 %v243
        %752 = vmatprep.subr.mxu0 0.0
        %753 = vmatpush1.msra.mxu0 %v244
        %754 = vmatprep.subr.mxu0 0.0
        %755 = vmatpush1.msra.mxu0 0.0
        %756 = vmatprep.subr.mxu0 0.0
        %757 = vmatpush1.msra.mxu0 0.0
        %758 = vmatprep.subr.mxu0 0.0
        %759 = vmatpush1.msra.mxu0 0.0
        %760 = vmatprep.subr.mxu0 0.0
        %761 = vmatpush1.msra.mxu0 0.0
        %762 = vmatprep.subr.mxu0 0.0
        %763 = vmatpush1.msra.mxu0 0.0
        %764 = vmatprep.subr.mxu0 0.0
        %765 = vmatpush1.msra.mxu0 0.0
        %766 = vmatprep.subr.mxu0 0.0
        %767 = vmatpush1.msra.mxu0 0.0
        %768 = vmatprep.subr.mxu0 0.0
        %769 = vmatpush1.msra.mxu0 0.0
        %770 = vmatprep.subr.mxu0 0.0
        %771 = vmatpush1.msra.mxu0 0.0
        %772 = vmatprep.subr.mxu0 0.0
        %773 = vmatpush1.msra.mxu0 0.0
        %774 = vmatprep.subr.mxu0 0.0
        %775 = vmatpush1.msra.mxu0 0.0
        %776 = vmatprep.subr.mxu0 0.0
        %777 = vmatpush1.msra.mxu0 0.0
        %778 = vmatprep.subr.mxu0 0.0
        %779 = vmatpush1.msra.mxu0 0.0
        %780 = vmatprep.subr.mxu0 0.0
        %781 = vmatpush1.msra.mxu0 0.0
        %782 = vmatprep.subr.mxu0 0.0
        %783 = vmatpush1.msra.mxu0 0.0
        %784 = vmatprep.subr.mxu0 0.0
        %785 = vmatpush1.msra.mxu0 0.0
        %786 = vmatprep.subr.mxu0 0.0
        %787 = vmatpush1.msra.mxu0 0.0
        %788 = vmatprep.subr.mxu0 0.0
        %789 = vmatpush1.msra.mxu0 0.0
        %790 = vmatprep.subr.mxu0 0.0
        %791 = vmatpush1.msra.mxu0 0.0
        %792 = vmatprep.subr.mxu0 0.0
        %793 = vmatpush1.msra.mxu0 0.0
        %794 = vmatprep.subr.mxu0 0.0
        %795 = vmatpush1.msra.mxu0 0.0
        %796 = vmatprep.subr.mxu0 0.0
        %797 = vmatpush1.msra.mxu0 0.0
        %798 = vmatprep.subr.mxu0 0.0
        %799 = vmatpush1.msra.mxu0 0.0
        %800 = vmatprep.subr.mxu0 0.0
        %801 = vmatpush1.msra.mxu0 0.0
        %802 = vmatprep.mubr.f32.mxu0 0.0
        %803 = vmatmul.mubr.f32.gmra.mrb[0].mxu0 %v727
        %v804 = vpop.f32.mrb[0].mxu0
        %v805 = vadd.f32 0.0, %v804
        %v806 = vpop.f32.mrb[0].mxu0
        %807 = vmatprep.mubr.f32.mxu0 0.0
        %808 = vmatmul.mubr.f32.gmra.mrb[0].mxu0 %v730
        %v809 = vpop.f32.mrb[0].mxu0
        %v810 = vadd.f32 0.0, %v809
        %v811 = vpop.f32.mrb[0].mxu0
        %812 = vmatprep.mubr.f32.mxu0 0.0
        %813 = vmatmul.mubr.f32.gmra.mrb[0].mxu0 %v733
        %v814 = vpop.f32.mrb[0].mxu0
        %v815 = vadd.f32 0.0, %v814
        %v816 = vpop.f32.mrb[0].mxu0
        %817 = vmatprep.mubr.f32.mxu0 0.0
        %818 = vmatmul.mubr.f32.gmra.mrb[0].mxu0 %v736
        %v819 = vpop.f32.mrb[0].mxu0
        %v820 = vadd.f32 0.0, %v819
        %v821 = vpop.f32.mrb[0].mxu0
        %822 = vdwg.mxu0
        %vm823 = vcmp.ge.f32.partialorder 0.49, %v632
        %vm824 = vcmp.ge.f32.partialorder 0.49, %v635
        %vm825 = vcmp.ge.f32.partialorder 0.49, %v638
        %vm826 = vcmp.ge.f32.partialorder 0.49, %v641
        %v827 = vsel %vm823, 1, 0
        %v828 = vsel %vm824, 1, 0
        %v829 = vsel %vm825, 1, 0
        %v830 = vsel %vm826, 1, 0
        %vm831 = vcmp.eq.s32.totalorder %v827, 1
        %vm832 = vcmp.eq.s32.totalorder %v828, 1
        %vm833 = vcmp.eq.s32.totalorder %v829, 1
        %vm834 = vcmp.eq.s32.totalorder %v830, 1
        %v835 = vsel %vm831, %v805, 0.0
        %v836 = vsel %vm832, %v810, 0.0
        %v837 = vsel %vm833, %v815, 0.0
        %v838 = vsel %vm834, %v820, 0.0
        %v839 = vmul.f32 %v835, -0.7142847
        %v840 = vmul.f32 %v836, -0.7142847
        %v841 = vmul.f32 %v837, -0.7142847
        %v842 = vmul.f32 %v838, -0.7142847
        %v843 = vsub.f32 %v839, %v350
        %v844 = vsub.f32 %v840, %v351
        %v845 = vsub.f32 %v841, %v352
        %v846 = vsub.f32 %v842, %v353
        %v847 = vmax.f32 %v632, 1e-09
        %v848 = vmax.f32 %v635, 1e-09
        %v849 = vmax.f32 %v638, 1e-09
        %v850 = vmax.f32 %v641, 1e-09
        %v851 = vrsqrt.pop %v847
        %v852 = vmul.f32 %v847, %v851
        %vm853 = vcmp.eq.f32.partialorder %v847, inf
        %v854 = vsel %vm853, %v847, %v852
        %vm855 = vcmp.eq.f32.partialorder %v847, 0.0
        %v856 = vand.u32 %v847, 2147483648
        %v857 = vsel %vm855, %v856, %v854
        %v858 = vrsqrt.pop %v848
        %v859 = vmul.f32 %v848, %v858
        %vm860 = vcmp.eq.f32.partialorder %v848, inf
        %v861 = vsel %vm860, %v848, %v859
        %vm862 = vcmp.eq.f32.partialorder %v848, 0.0
        %v863 = vand.u32 %v848, 2147483648
        %v864 = vsel %vm862, %v863, %v861
        %v865 = vrsqrt.pop %v849
        %v866 = vmul.f32 %v849, %v865
        %vm867 = vcmp.eq.f32.partialorder %v849, inf
        %v868 = vsel %vm867, %v849, %v866
        %vm869 = vcmp.eq.f32.partialorder %v849, 0.0
        %v870 = vand.u32 %v849, 2147483648
        %v871 = vsel %vm869, %v870, %v868
        %v872 = vrsqrt.pop %v850
        %v873 = vmul.f32 %v850, %v872
        %vm874 = vcmp.eq.f32.partialorder %v850, inf
        %v875 = vsel %vm874, %v850, %v873
        %vm876 = vcmp.eq.f32.partialorder %v850, 0.0
        %v877 = vand.u32 %v850, 2147483648
        %v878 = vsel %vm876, %v877, %v875
        %v879 = vmul.f32 %v857, 1.4285694
        %v880 = vmul.f32 %v864, 1.4285694
        %v881 = vmul.f32 %v871, 1.4285694
        %v882 = vmul.f32 %v878, 1.4285694
        %v883 = vsel %vm823, %v664, 4294967295
        %v884 = vsel %vm824, %v679, 4294967295
        %v885 = vsel %vm825, %v694, 4294967295
        %v886 = vsel %vm826, %v709, 4294967295
        %v887 = vcvt.s32.f32 %v883
        %v888 = vcvt.s32.f32 %v884
        %v889 = vcvt.s32.f32 %v885
        %v890 = vcvt.s32.f32 %v886
        %v891 = vsel %vm616, %v879, %v843
        %v892 = vsel %vm616, %v880, %v844
        %v893 = vsel %vm616, %v881, %v845
        %v894 = vsel %vm616, %v882, %v846
        %v895 = vsel %vm621, %v887, %v891
        %v896 = vsel %vm621, %v888, %v892
        %v897 = vsel %vm621, %v889, %v893
        %v898 = vsel %vm621, %v890, %v894
        %903 = vrot.lane.b32.xlu0 %v895, 8
        %v904 = vpop.permute.xlu0 %903
        %905 = vrot.lane.b32.xlu0 %v896, 8
        %v906 = vpop.permute.xlu0 %905
        %907 = vrot.lane.b32.xlu0 %v897, 8
        %v908 = vpop.permute.xlu0 %907
        %909 = vrot.lane.b32.xlu0 %v898, 8
        %v910 = vpop.permute.xlu0 %909
        %vm915 = vcmask 130112
        %916 = vst.msk [vmem:[%s216] sm:$0xff] %vm915, %v904
        %917 = vst.msk [vmem:[%s216 + $0x8] sm:$0xff] %vm915, %v906
        %918 = vst.msk [vmem:[%s216 + $0x10] sm:$0xff] %vm915, %v908
        %919 = vst.msk [vmem:[%s216 + $0x18] sm:$0xff] %vm915, %v910
        %v920 = vsel %vm354, %v714, inf
        %921 = vmin.xlane.f32.xlu0 %v920
        %v922 = vpop.xlane.xlu0 %921
        %v923 = vsel %vm354, %v715, inf
        %924 = vmin.xlane.f32.xlu0 %v923
        %v925 = vpop.xlane.xlu0 %924
        %v926 = vsel %vm354, %v716, inf
        %927 = vmin.xlane.f32.xlu0 %v926
        %v928 = vpop.xlane.xlu0 %927
        %v929 = vsel %vm354, %v717, inf
        %930 = vmin.xlane.f32.xlu0 %v929
        %v931 = vpop.xlane.xlu0 %930
        %vm932 = vcmp.eq.f32.partialorder %v714, %v922
        %vm933 = vcmp.eq.f32.partialorder %v715, %v925
        %vm934 = vcmp.eq.f32.partialorder %v716, %v928
        %vm935 = vcmp.eq.f32.partialorder %v717, %v931
        %v936 = vsel %vm932, %v349, 64
        %v937 = vsel %vm933, %v349, 64
        %v938 = vsel %vm934, %v349, 64
        %v939 = vsel %vm935, %v349, 64
        %v940 = vsel %vm354, %v936, 2147483647
        %v941 = vand.u32 %v940, 65535
        %v942 = vshra.s32 %v940, 16
        %v943 = vcvt.s32.f32 %v941
        %v944 = vcvt.s32.f32 %v942
        %945 = vmin.xlane.f32.xlu0 %v944
        %v946 = vpop.xlane.xlu0 %945
        %vm947 = vcmp.eq.f32.partialorder %v944, %v946
        %v948 = vsel %vm947, %v943, inf
        %949 = vmin.xlane.f32.xlu0 %v948
        %v950 = vpop.xlane.xlu0 %949
        %v951 = vcvt.f32.s32 %v950
        %v952 = vcvt.f32.s32 %v946
        %v953 = vshll.u32 %v952, 16
        %v954 = vadd.s32 %v953, %v951
        %v955 = vsel %vm354, %v937, 2147483647
        %v956 = vand.u32 %v955, 65535
        %v957 = vshra.s32 %v955, 16
        %v958 = vcvt.s32.f32 %v956
        %v959 = vcvt.s32.f32 %v957
        %960 = vmin.xlane.f32.xlu0 %v959
        %v961 = vpop.xlane.xlu0 %960
        %vm962 = vcmp.eq.f32.partialorder %v959, %v961
        %v963 = vsel %vm962, %v958, inf
        %964 = vmin.xlane.f32.xlu0 %v963
        %v965 = vpop.xlane.xlu0 %964
        %v966 = vcvt.f32.s32 %v965
        %v967 = vcvt.f32.s32 %v961
        %v968 = vshll.u32 %v967, 16
        %v969 = vadd.s32 %v968, %v966
        %v970 = vsel %vm354, %v938, 2147483647
        %v971 = vand.u32 %v970, 65535
        %v972 = vshra.s32 %v970, 16
        %v973 = vcvt.s32.f32 %v971
        %v974 = vcvt.s32.f32 %v972
        %975 = vmin.xlane.f32.xlu0 %v974
        %v976 = vpop.xlane.xlu0 %975
        %vm977 = vcmp.eq.f32.partialorder %v974, %v976
        %v978 = vsel %vm977, %v973, inf
        %979 = vmin.xlane.f32.xlu0 %v978
        %v980 = vpop.xlane.xlu0 %979
        %v981 = vcvt.f32.s32 %v980
        %v982 = vcvt.f32.s32 %v976
        %v983 = vshll.u32 %v982, 16
        %v984 = vadd.s32 %v983, %v981
        %v985 = vsel %vm354, %v939, 2147483647
        %v986 = vand.u32 %v985, 65535
        %v987 = vshra.s32 %v985, 16
        %v988 = vcvt.s32.f32 %v986
        %v989 = vcvt.s32.f32 %v987
        %990 = vmin.xlane.f32.xlu0 %v989
        %v991 = vpop.xlane.xlu0 %990
        %vm992 = vcmp.eq.f32.partialorder %v989, %v991
        %v993 = vsel %vm992, %v988, inf
        %994 = vmin.xlane.f32.xlu0 %v993
        %v995 = vpop.xlane.xlu0 %994
        %v996 = vcvt.f32.s32 %v995
        %v997 = vcvt.f32.s32 %v991
        %v998 = vshll.u32 %v997, 16
        %v999 = vadd.s32 %v998, %v996
        %vm1000 = vcmp.eq.s32.totalorder %v349, %v954
        %vm1001 = vcmp.eq.s32.totalorder %v349, %v969
        %vm1002 = vcmp.eq.s32.totalorder %v349, %v984
        %vm1003 = vcmp.eq.s32.totalorder %v349, %v999
        %v1004 = vsel %vm1000, inf, %v714
        %v1005 = vsel %vm1001, inf, %v715
        %v1006 = vsel %vm1002, inf, %v716
        %v1007 = vsel %vm1003, inf, %v717
        %v1008 = vsel %vm1000, 1, 0
        %v1009 = vsel %vm1001, 1, 0
        %v1010 = vsel %vm1002, 1, 0
        %v1011 = vsel %vm1003, 1, 0
        %v1012 = vcvt.s32.f32 %v1008
        %v1013 = vcvt.s32.f32 %v1009
        %v1014 = vcvt.s32.f32 %v1010
        %v1015 = vcvt.s32.f32 %v1011
        %v1017 = vsel %vm354, %v1012, 0
        %v1020 = vsel %vm354, %v1013, 0
        %v1023 = vsel %vm354, %v1014, 0
        %v1026 = vsel %vm354, %v1015, 0
        %1028 = vmatprep.subr.mxu0 0.0
        %1029 = vmatpush1.msra.mxu0 %v237
        %1030 = vmatprep.subr.mxu0 0.0
        %1031 = vmatpush1.msra.mxu0 %v238
        %1032 = vmatprep.subr.mxu0 0.0
        %1033 = vmatpush1.msra.mxu0 %v239
        %1034 = vmatprep.subr.mxu0 0.0
        %1035 = vmatpush1.msra.mxu0 %v240
        %1036 = vmatprep.subr.mxu0 0.0
        %1037 = vmatpush1.msra.mxu0 %v241
        %1038 = vmatprep.subr.mxu0 0.0
        %1039 = vmatpush1.msra.mxu0 %v242
        %1040 = vmatprep.subr.mxu0 0.0
        %1041 = vmatpush1.msra.mxu0 %v243
        %1042 = vmatprep.subr.mxu0 0.0
        %1043 = vmatpush1.msra.mxu0 %v244
        %1044 = vmatprep.subr.mxu0 0.0
        %1045 = vmatpush1.msra.mxu0 0.0
        %1046 = vmatprep.subr.mxu0 0.0
        %1047 = vmatpush1.msra.mxu0 0.0
        %1048 = vmatprep.subr.mxu0 0.0
        %1049 = vmatpush1.msra.mxu0 0.0
        %1050 = vmatprep.subr.mxu0 0.0
        %1051 = vmatpush1.msra.mxu0 0.0
        %1052 = vmatprep.subr.mxu0 0.0
        %1053 = vmatpush1.msra.mxu0 0.0
        %1054 = vmatprep.subr.mxu0 0.0
        %1055 = vmatpush1.msra.mxu0 0.0
        %1056 = vmatprep.subr.mxu0 0.0
        %1057 = vmatpush1.msra.mxu0 0.0
        %1058 = vmatprep.subr.mxu0 0.0
        %1059 = vmatpush1.msra.mxu0 0.0
        %1060 = vmatprep.subr.mxu0 0.0
        %1061 = vmatpush1.msra.mxu0 0.0
        %1062 = vmatprep.subr.mxu0 0.0
        %1063 = vmatpush1.msra.mxu0 0.0
        %1064 = vmatprep.subr.mxu0 0.0
        %1065 = vmatpush1.msra.mxu0 0.0
        %1066 = vmatprep.subr.mxu0 0.0
        %1067 = vmatpush1.msra.mxu0 0.0
        %1068 = vmatprep.subr.mxu0 0.0
        %1069 = vmatpush1.msra.mxu0 0.0
        %1070 = vmatprep.subr.mxu0 0.0
        %1071 = vmatpush1.msra.mxu0 0.0
        %1072 = vmatprep.subr.mxu0 0.0
        %1073 = vmatpush1.msra.mxu0 0.0
        %1074 = vmatprep.subr.mxu0 0.0
        %1075 = vmatpush1.msra.mxu0 0.0
        %1076 = vmatprep.subr.mxu0 0.0
        %1077 = vmatpush1.msra.mxu0 0.0
        %1078 = vmatprep.subr.mxu0 0.0
        %1079 = vmatpush1.msra.mxu0 0.0
        %1080 = vmatprep.subr.mxu0 0.0
        %1081 = vmatpush1.msra.mxu0 0.0
        %1082 = vmatprep.subr.mxu0 0.0
        %1083 = vmatpush1.msra.mxu0 0.0
        %1084 = vmatprep.subr.mxu0 0.0
        %1085 = vmatpush1.msra.mxu0 0.0
        %1086 = vmatprep.subr.mxu0 0.0
        %1087 = vmatpush1.msra.mxu0 0.0
        %1088 = vmatprep.subr.mxu0 0.0
        %1089 = vmatpush1.msra.mxu0 0.0
        %1090 = vmatprep.subr.mxu0 0.0
        %1091 = vmatpush1.msra.mxu0 0.0
        %1092 = vmatprep.mubr.f32.mxu0 0.0
        %1093 = vmatmul.mubr.f32.gmra.mrb[0].mxu0 %v1017
        %v1094 = vpop.f32.mrb[0].mxu0
        %v1095 = vadd.f32 0.0, %v1094
        %v1096 = vpop.f32.mrb[0].mxu0
        %1097 = vmatprep.mubr.f32.mxu0 0.0
        %1098 = vmatmul.mubr.f32.gmra.mrb[0].mxu0 %v1020
        %v1099 = vpop.f32.mrb[0].mxu0
        %v1100 = vadd.f32 0.0, %v1099
        %v1101 = vpop.f32.mrb[0].mxu0
        %1102 = vmatprep.mubr.f32.mxu0 0.0
        %1103 = vmatmul.mubr.f32.gmra.mrb[0].mxu0 %v1023
        %v1104 = vpop.f32.mrb[0].mxu0
        %v1105 = vadd.f32 0.0, %v1104
        %v1106 = vpop.f32.mrb[0].mxu0
        %1107 = vmatprep.mubr.f32.mxu0 0.0
        %1108 = vmatmul.mubr.f32.gmra.mrb[0].mxu0 %v1026
        %v1109 = vpop.f32.mrb[0].mxu0
        %v1110 = vadd.f32 0.0, %v1109
        %v1111 = vpop.f32.mrb[0].mxu0
        %1112 = vdwg.mxu0
        %vm1113 = vcmp.ge.f32.partialorder 0.49, %v922
        %vm1114 = vcmp.ge.f32.partialorder 0.49, %v925
        %vm1115 = vcmp.ge.f32.partialorder 0.49, %v928
        %vm1116 = vcmp.ge.f32.partialorder 0.49, %v931
        %v1117 = vsel %vm1113, 1, 0
        %v1118 = vsel %vm1114, 1, 0
        %v1119 = vsel %vm1115, 1, 0
        %v1120 = vsel %vm1116, 1, 0
        %vm1121 = vcmp.eq.s32.totalorder %v1117, 1
        %vm1122 = vcmp.eq.s32.totalorder %v1118, 1
        %vm1123 = vcmp.eq.s32.totalorder %v1119, 1
        %vm1124 = vcmp.eq.s32.totalorder %v1120, 1
        %v1125 = vsel %vm1121, %v1095, 0.0
        %v1126 = vsel %vm1122, %v1100, 0.0
        %v1127 = vsel %vm1123, %v1105, 0.0
        %v1128 = vsel %vm1124, %v1110, 0.0
        %v1129 = vmul.f32 %v1125, -0.7142847
        %v1130 = vmul.f32 %v1126, -0.7142847
        %v1131 = vmul.f32 %v1127, -0.7142847
        %v1132 = vmul.f32 %v1128, -0.7142847
        %v1133 = vsub.f32 %v1129, %v350
        %v1134 = vsub.f32 %v1130, %v351
        %v1135 = vsub.f32 %v1131, %v352
        %v1136 = vsub.f32 %v1132, %v353
        %v1137 = vmax.f32 %v922, 1e-09
        %v1138 = vmax.f32 %v925, 1e-09
        %v1139 = vmax.f32 %v928, 1e-09
        %v1140 = vmax.f32 %v931, 1e-09
        %v1141 = vrsqrt.pop %v1137
        %v1142 = vmul.f32 %v1137, %v1141
        %vm1143 = vcmp.eq.f32.partialorder %v1137, inf
        %v1144 = vsel %vm1143, %v1137, %v1142
        %vm1145 = vcmp.eq.f32.partialorder %v1137, 0.0
        %v1146 = vand.u32 %v1137, 2147483648
        %v1147 = vsel %vm1145, %v1146, %v1144
        %v1148 = vrsqrt.pop %v1138
        %v1149 = vmul.f32 %v1138, %v1148
        %vm1150 = vcmp.eq.f32.partialorder %v1138, inf
        %v1151 = vsel %vm1150, %v1138, %v1149
        %vm1152 = vcmp.eq.f32.partialorder %v1138, 0.0
        %v1153 = vand.u32 %v1138, 2147483648
        %v1154 = vsel %vm1152, %v1153, %v1151
        %v1155 = vrsqrt.pop %v1139
        %v1156 = vmul.f32 %v1139, %v1155
        %vm1157 = vcmp.eq.f32.partialorder %v1139, inf
        %v1158 = vsel %vm1157, %v1139, %v1156
        %vm1159 = vcmp.eq.f32.partialorder %v1139, 0.0
        %v1160 = vand.u32 %v1139, 2147483648
        %v1161 = vsel %vm1159, %v1160, %v1158
        %v1162 = vrsqrt.pop %v1140
        %v1163 = vmul.f32 %v1140, %v1162
        %vm1164 = vcmp.eq.f32.partialorder %v1140, inf
        %v1165 = vsel %vm1164, %v1140, %v1163
        %vm1166 = vcmp.eq.f32.partialorder %v1140, 0.0
        %v1167 = vand.u32 %v1140, 2147483648
        %v1168 = vsel %vm1166, %v1167, %v1165
        %v1169 = vmul.f32 %v1147, 1.4285694
        %v1170 = vmul.f32 %v1154, 1.4285694
        %v1171 = vmul.f32 %v1161, 1.4285694
        %v1172 = vmul.f32 %v1168, 1.4285694
        %v1173 = vsel %vm1113, %v954, 4294967295
        %v1174 = vsel %vm1114, %v969, 4294967295
        %v1175 = vsel %vm1115, %v984, 4294967295
        %v1176 = vsel %vm1116, %v999, 4294967295
        %v1177 = vcvt.s32.f32 %v1173
        %v1178 = vcvt.s32.f32 %v1174
        %v1179 = vcvt.s32.f32 %v1175
        %v1180 = vcvt.s32.f32 %v1176
        %v1181 = vsel %vm616, %v1169, %v1133
        %v1182 = vsel %vm616, %v1170, %v1134
        %v1183 = vsel %vm616, %v1171, %v1135
        %v1184 = vsel %vm616, %v1172, %v1136
        %v1185 = vsel %vm621, %v1177, %v1181
        %v1186 = vsel %vm621, %v1178, %v1182
        %v1187 = vsel %vm621, %v1179, %v1183
        %v1188 = vsel %vm621, %v1180, %v1184
        %1193 = vrot.lane.b32.xlu0 %v1185, 16
        %v1194 = vpop.permute.xlu0 %1193
        %1195 = vrot.lane.b32.xlu0 %v1186, 16
        %v1196 = vpop.permute.xlu0 %1195
        %1197 = vrot.lane.b32.xlu0 %v1187, 16
        %v1198 = vpop.permute.xlu0 %1197
        %1199 = vrot.lane.b32.xlu0 %v1188, 16
        %v1200 = vpop.permute.xlu0 %1199
        %vm1205 = vcmask 195712
        %1206 = vst.msk [vmem:[%s216] sm:$0xff] %vm1205, %v1194
        %1207 = vst.msk [vmem:[%s216 + $0x8] sm:$0xff] %vm1205, %v1196
        %1208 = vst.msk [vmem:[%s216 + $0x10] sm:$0xff] %vm1205, %v1198
        %1209 = vst.msk [vmem:[%s216 + $0x18] sm:$0xff] %vm1205, %v1200
        %v1210 = vsel %vm354, %v1004, inf
        %1211 = vmin.xlane.f32.xlu0 %v1210
        %v1212 = vpop.xlane.xlu0 %1211
        %v1213 = vsel %vm354, %v1005, inf
        %1214 = vmin.xlane.f32.xlu0 %v1213
        %v1215 = vpop.xlane.xlu0 %1214
        %v1216 = vsel %vm354, %v1006, inf
        %1217 = vmin.xlane.f32.xlu0 %v1216
        %v1218 = vpop.xlane.xlu0 %1217
        %v1219 = vsel %vm354, %v1007, inf
        %1220 = vmin.xlane.f32.xlu0 %v1219
        %v1221 = vpop.xlane.xlu0 %1220
        %vm1222 = vcmp.eq.f32.partialorder %v1004, %v1212
        %vm1223 = vcmp.eq.f32.partialorder %v1005, %v1215
        %vm1224 = vcmp.eq.f32.partialorder %v1006, %v1218
        %vm1225 = vcmp.eq.f32.partialorder %v1007, %v1221
        %v1226 = vsel %vm1222, %v349, 64
        %v1227 = vsel %vm1223, %v349, 64
        %v1228 = vsel %vm1224, %v349, 64
        %v1229 = vsel %vm1225, %v349, 64
        %v1230 = vsel %vm354, %v1226, 2147483647
        %v1231 = vand.u32 %v1230, 65535
        %v1232 = vshra.s32 %v1230, 16
        %v1233 = vcvt.s32.f32 %v1231
        %v1234 = vcvt.s32.f32 %v1232
        %1235 = vmin.xlane.f32.xlu0 %v1234
        %v1236 = vpop.xlane.xlu0 %1235
        %vm1237 = vcmp.eq.f32.partialorder %v1234, %v1236
        %v1238 = vsel %vm1237, %v1233, inf
        %1239 = vmin.xlane.f32.xlu0 %v1238
        %v1240 = vpop.xlane.xlu0 %1239
        %v1241 = vcvt.f32.s32 %v1240
        %v1242 = vcvt.f32.s32 %v1236
        %v1243 = vshll.u32 %v1242, 16
        %v1244 = vadd.s32 %v1243, %v1241
        %v1245 = vsel %vm354, %v1227, 2147483647
        %v1246 = vand.u32 %v1245, 65535
        %v1247 = vshra.s32 %v1245, 16
        %v1248 = vcvt.s32.f32 %v1246
        %v1249 = vcvt.s32.f32 %v1247
        %1250 = vmin.xlane.f32.xlu0 %v1249
        %v1251 = vpop.xlane.xlu0 %1250
        %vm1252 = vcmp.eq.f32.partialorder %v1249, %v1251
        %v1253 = vsel %vm1252, %v1248, inf
        %1254 = vmin.xlane.f32.xlu0 %v1253
        %v1255 = vpop.xlane.xlu0 %1254
        %v1256 = vcvt.f32.s32 %v1255
        %v1257 = vcvt.f32.s32 %v1251
        %v1258 = vshll.u32 %v1257, 16
        %v1259 = vadd.s32 %v1258, %v1256
        %v1260 = vsel %vm354, %v1228, 2147483647
        %v1261 = vand.u32 %v1260, 65535
        %v1262 = vshra.s32 %v1260, 16
        %v1263 = vcvt.s32.f32 %v1261
        %v1264 = vcvt.s32.f32 %v1262
        %1265 = vmin.xlane.f32.xlu0 %v1264
        %v1266 = vpop.xlane.xlu0 %1265
        %vm1267 = vcmp.eq.f32.partialorder %v1264, %v1266
        %v1268 = vsel %vm1267, %v1263, inf
        %1269 = vmin.xlane.f32.xlu0 %v1268
        %v1270 = vpop.xlane.xlu0 %1269
        %v1271 = vcvt.f32.s32 %v1270
        %v1272 = vcvt.f32.s32 %v1266
        %v1273 = vshll.u32 %v1272, 16
        %v1274 = vadd.s32 %v1273, %v1271
        %v1275 = vsel %vm354, %v1229, 2147483647
        %v1276 = vand.u32 %v1275, 65535
        %v1277 = vshra.s32 %v1275, 16
        %v1278 = vcvt.s32.f32 %v1276
        %v1279 = vcvt.s32.f32 %v1277
        %1280 = vmin.xlane.f32.xlu0 %v1279
        %v1281 = vpop.xlane.xlu0 %1280
        %vm1282 = vcmp.eq.f32.partialorder %v1279, %v1281
        %v1283 = vsel %vm1282, %v1278, inf
        %1284 = vmin.xlane.f32.xlu0 %v1283
        %v1285 = vpop.xlane.xlu0 %1284
        %v1286 = vcvt.f32.s32 %v1285
        %v1287 = vcvt.f32.s32 %v1281
        %v1288 = vshll.u32 %v1287, 16
        %v1289 = vadd.s32 %v1288, %v1286
        %vm1290 = vcmp.eq.s32.totalorder %v349, %v1244
        %vm1291 = vcmp.eq.s32.totalorder %v349, %v1259
        %vm1292 = vcmp.eq.s32.totalorder %v349, %v1274
        %vm1293 = vcmp.eq.s32.totalorder %v349, %v1289
        %v1294 = vsel %vm1290, inf, %v1004
        %v1295 = vsel %vm1291, inf, %v1005
        %v1296 = vsel %vm1292, inf, %v1006
        %v1297 = vsel %vm1293, inf, %v1007
        %v1298 = vsel %vm1290, 1, 0
        %v1299 = vsel %vm1291, 1, 0
        %v1300 = vsel %vm1292, 1, 0
        %v1301 = vsel %vm1293, 1, 0
        %v1302 = vcvt.s32.f32 %v1298
        %v1303 = vcvt.s32.f32 %v1299
        %v1304 = vcvt.s32.f32 %v1300
        %v1305 = vcvt.s32.f32 %v1301
        %v1307 = vsel %vm354, %v1302, 0
        %v1310 = vsel %vm354, %v1303, 0
        %v1313 = vsel %vm354, %v1304, 0
        %v1316 = vsel %vm354, %v1305, 0
        %1318 = vmatprep.subr.mxu0 0.0
        %1319 = vmatpush1.msra.mxu0 %v237
        %1320 = vmatprep.subr.mxu0 0.0
        %1321 = vmatpush1.msra.mxu0 %v238
        %1322 = vmatprep.subr.mxu0 0.0
        %1323 = vmatpush1.msra.mxu0 %v239
        %1324 = vmatprep.subr.mxu0 0.0
        %1325 = vmatpush1.msra.mxu0 %v240
        %1326 = vmatprep.subr.mxu0 0.0
        %1327 = vmatpush1.msra.mxu0 %v241
        %1328 = vmatprep.subr.mxu0 0.0
        %1329 = vmatpush1.msra.mxu0 %v242
        %1330 = vmatprep.subr.mxu0 0.0
        %1331 = vmatpush1.msra.mxu0 %v243
        %1332 = vmatprep.subr.mxu0 0.0
        %1333 = vmatpush1.msra.mxu0 %v244
        %1334 = vmatprep.subr.mxu0 0.0
        %1335 = vmatpush1.msra.mxu0 0.0
        %1336 = vmatprep.subr.mxu0 0.0
        %1337 = vmatpush1.msra.mxu0 0.0
        %1338 = vmatprep.subr.mxu0 0.0
        %1339 = vmatpush1.msra.mxu0 0.0
        %1340 = vmatprep.subr.mxu0 0.0
        %1341 = vmatpush1.msra.mxu0 0.0
        %1342 = vmatprep.subr.mxu0 0.0
        %1343 = vmatpush1.msra.mxu0 0.0
        %1344 = vmatprep.subr.mxu0 0.0
        %1345 = vmatpush1.msra.mxu0 0.0
        %1346 = vmatprep.subr.mxu0 0.0
        %1347 = vmatpush1.msra.mxu0 0.0
        %1348 = vmatprep.subr.mxu0 0.0
        %1349 = vmatpush1.msra.mxu0 0.0
        %1350 = vmatprep.subr.mxu0 0.0
        %1351 = vmatpush1.msra.mxu0 0.0
        %1352 = vmatprep.subr.mxu0 0.0
        %1353 = vmatpush1.msra.mxu0 0.0
        %1354 = vmatprep.subr.mxu0 0.0
        %1355 = vmatpush1.msra.mxu0 0.0
        %1356 = vmatprep.subr.mxu0 0.0
        %1357 = vmatpush1.msra.mxu0 0.0
        %1358 = vmatprep.subr.mxu0 0.0
        %1359 = vmatpush1.msra.mxu0 0.0
        %1360 = vmatprep.subr.mxu0 0.0
        %1361 = vmatpush1.msra.mxu0 0.0
        %1362 = vmatprep.subr.mxu0 0.0
        %1363 = vmatpush1.msra.mxu0 0.0
        %1364 = vmatprep.subr.mxu0 0.0
        %1365 = vmatpush1.msra.mxu0 0.0
        %1366 = vmatprep.subr.mxu0 0.0
        %1367 = vmatpush1.msra.mxu0 0.0
        %1368 = vmatprep.subr.mxu0 0.0
        %1369 = vmatpush1.msra.mxu0 0.0
        %1370 = vmatprep.subr.mxu0 0.0
        %1371 = vmatpush1.msra.mxu0 0.0
        %1372 = vmatprep.subr.mxu0 0.0
        %1373 = vmatpush1.msra.mxu0 0.0
        %1374 = vmatprep.subr.mxu0 0.0
        %1375 = vmatpush1.msra.mxu0 0.0
        %1376 = vmatprep.subr.mxu0 0.0
        %1377 = vmatpush1.msra.mxu0 0.0
        %1378 = vmatprep.subr.mxu0 0.0
        %1379 = vmatpush1.msra.mxu0 0.0
        %1380 = vmatprep.subr.mxu0 0.0
        %1381 = vmatpush1.msra.mxu0 0.0
        %1382 = vmatprep.mubr.f32.mxu0 0.0
        %1383 = vmatmul.mubr.f32.gmra.mrb[0].mxu0 %v1307
        %v1384 = vpop.f32.mrb[0].mxu0
        %v1385 = vadd.f32 0.0, %v1384
        %v1386 = vpop.f32.mrb[0].mxu0
        %1387 = vmatprep.mubr.f32.mxu0 0.0
        %1388 = vmatmul.mubr.f32.gmra.mrb[0].mxu0 %v1310
        %v1389 = vpop.f32.mrb[0].mxu0
        %v1390 = vadd.f32 0.0, %v1389
        %v1391 = vpop.f32.mrb[0].mxu0
        %1392 = vmatprep.mubr.f32.mxu0 0.0
        %1393 = vmatmul.mubr.f32.gmra.mrb[0].mxu0 %v1313
        %v1394 = vpop.f32.mrb[0].mxu0
        %v1395 = vadd.f32 0.0, %v1394
        %v1396 = vpop.f32.mrb[0].mxu0
        %1397 = vmatprep.mubr.f32.mxu0 0.0
        %1398 = vmatmul.mubr.f32.gmra.mrb[0].mxu0 %v1316
        %v1399 = vpop.f32.mrb[0].mxu0
        %v1400 = vadd.f32 0.0, %v1399
        %v1401 = vpop.f32.mrb[0].mxu0
        %1402 = vdwg.mxu0
        %vm1403 = vcmp.ge.f32.partialorder 0.49, %v1212
        %vm1404 = vcmp.ge.f32.partialorder 0.49, %v1215
        %vm1405 = vcmp.ge.f32.partialorder 0.49, %v1218
        %vm1406 = vcmp.ge.f32.partialorder 0.49, %v1221
        %v1407 = vsel %vm1403, 1, 0
        %v1408 = vsel %vm1404, 1, 0
        %v1409 = vsel %vm1405, 1, 0
        %v1410 = vsel %vm1406, 1, 0
        %vm1411 = vcmp.eq.s32.totalorder %v1407, 1
        %vm1412 = vcmp.eq.s32.totalorder %v1408, 1
        %vm1413 = vcmp.eq.s32.totalorder %v1409, 1
        %vm1414 = vcmp.eq.s32.totalorder %v1410, 1
        %v1415 = vsel %vm1411, %v1385, 0.0
        %v1416 = vsel %vm1412, %v1390, 0.0
        %v1417 = vsel %vm1413, %v1395, 0.0
        %v1418 = vsel %vm1414, %v1400, 0.0
        %v1419 = vmul.f32 %v1415, -0.7142847
        %v1420 = vmul.f32 %v1416, -0.7142847
        %v1421 = vmul.f32 %v1417, -0.7142847
        %v1422 = vmul.f32 %v1418, -0.7142847
        %v1423 = vsub.f32 %v1419, %v350
        %v1424 = vsub.f32 %v1420, %v351
        %v1425 = vsub.f32 %v1421, %v352
        %v1426 = vsub.f32 %v1422, %v353
        %v1427 = vmax.f32 %v1212, 1e-09
        %v1428 = vmax.f32 %v1215, 1e-09
        %v1429 = vmax.f32 %v1218, 1e-09
        %v1430 = vmax.f32 %v1221, 1e-09
        %v1431 = vrsqrt.pop %v1427
        %v1432 = vmul.f32 %v1427, %v1431
        %vm1433 = vcmp.eq.f32.partialorder %v1427, inf
        %v1434 = vsel %vm1433, %v1427, %v1432
        %vm1435 = vcmp.eq.f32.partialorder %v1427, 0.0
        %v1436 = vand.u32 %v1427, 2147483648
        %v1437 = vsel %vm1435, %v1436, %v1434
        %v1438 = vrsqrt.pop %v1428
        %v1439 = vmul.f32 %v1428, %v1438
        %vm1440 = vcmp.eq.f32.partialorder %v1428, inf
        %v1441 = vsel %vm1440, %v1428, %v1439
        %vm1442 = vcmp.eq.f32.partialorder %v1428, 0.0
        %v1443 = vand.u32 %v1428, 2147483648
        %v1444 = vsel %vm1442, %v1443, %v1441
        %v1445 = vrsqrt.pop %v1429
        %v1446 = vmul.f32 %v1429, %v1445
        %vm1447 = vcmp.eq.f32.partialorder %v1429, inf
        %v1448 = vsel %vm1447, %v1429, %v1446
        %vm1449 = vcmp.eq.f32.partialorder %v1429, 0.0
        %v1450 = vand.u32 %v1429, 2147483648
        %v1451 = vsel %vm1449, %v1450, %v1448
        %v1452 = vrsqrt.pop %v1430
        %v1453 = vmul.f32 %v1430, %v1452
        %vm1454 = vcmp.eq.f32.partialorder %v1430, inf
        %v1455 = vsel %vm1454, %v1430, %v1453
        %vm1456 = vcmp.eq.f32.partialorder %v1430, 0.0
        %v1457 = vand.u32 %v1430, 2147483648
        %v1458 = vsel %vm1456, %v1457, %v1455
        %v1459 = vmul.f32 %v1437, 1.4285694
        %v1460 = vmul.f32 %v1444, 1.4285694
        %v1461 = vmul.f32 %v1451, 1.4285694
        %v1462 = vmul.f32 %v1458, 1.4285694
        %v1463 = vsel %vm1403, %v1244, 4294967295
        %v1464 = vsel %vm1404, %v1259, 4294967295
        %v1465 = vsel %vm1405, %v1274, 4294967295
        %v1466 = vsel %vm1406, %v1289, 4294967295
        %v1467 = vcvt.s32.f32 %v1463
        %v1468 = vcvt.s32.f32 %v1464
        %v1469 = vcvt.s32.f32 %v1465
        %v1470 = vcvt.s32.f32 %v1466
        %v1471 = vsel %vm616, %v1459, %v1423
        %v1472 = vsel %vm616, %v1460, %v1424
        %v1473 = vsel %vm616, %v1461, %v1425
        %v1474 = vsel %vm616, %v1462, %v1426
        %v1475 = vsel %vm621, %v1467, %v1471
        %v1476 = vsel %vm621, %v1468, %v1472
        %v1477 = vsel %vm621, %v1469, %v1473
        %v1478 = vsel %vm621, %v1470, %v1474
        %1483 = vrot.lane.b32.xlu0 %v1475, 24
        %v1484 = vpop.permute.xlu0 %1483
        %1485 = vrot.lane.b32.xlu0 %v1476, 24
        %v1486 = vpop.permute.xlu0 %1485
        %1487 = vrot.lane.b32.xlu0 %v1477, 24
        %v1488 = vpop.permute.xlu0 %1487
        %1489 = vrot.lane.b32.xlu0 %v1478, 24
        %v1490 = vpop.permute.xlu0 %1489
        %vm1495 = vcmask 261312
        %1496 = vst.msk [vmem:[%s216] sm:$0xff] %vm1495, %v1484
        %1497 = vst.msk [vmem:[%s216 + $0x8] sm:$0xff] %vm1495, %v1486
        %1498 = vst.msk [vmem:[%s216 + $0x10] sm:$0xff] %vm1495, %v1488
        %1499 = vst.msk [vmem:[%s216 + $0x18] sm:$0xff] %vm1495, %v1490
        %v1500 = vsel %vm354, %v1294, inf
        %1501 = vmin.xlane.f32.xlu0 %v1500
        %v1502 = vpop.xlane.xlu0 %1501
        %v1503 = vsel %vm354, %v1295, inf
        %1504 = vmin.xlane.f32.xlu0 %v1503
        %v1505 = vpop.xlane.xlu0 %1504
        %v1506 = vsel %vm354, %v1296, inf
        %1507 = vmin.xlane.f32.xlu0 %v1506
        %v1508 = vpop.xlane.xlu0 %1507
        %v1509 = vsel %vm354, %v1297, inf
        %1510 = vmin.xlane.f32.xlu0 %v1509
        %v1511 = vpop.xlane.xlu0 %1510
        %vm1512 = vcmp.eq.f32.partialorder %v1294, %v1502
        %vm1513 = vcmp.eq.f32.partialorder %v1295, %v1505
        %vm1514 = vcmp.eq.f32.partialorder %v1296, %v1508
        %vm1515 = vcmp.eq.f32.partialorder %v1297, %v1511
        %v1516 = vsel %vm1512, %v349, 64
        %v1517 = vsel %vm1513, %v349, 64
        %v1518 = vsel %vm1514, %v349, 64
        %v1519 = vsel %vm1515, %v349, 64
        %v1520 = vsel %vm354, %v1516, 2147483647
        %v1521 = vand.u32 %v1520, 65535
        %v1522 = vshra.s32 %v1520, 16
        %v1523 = vcvt.s32.f32 %v1521
        %v1524 = vcvt.s32.f32 %v1522
        %1525 = vmin.xlane.f32.xlu0 %v1524
        %v1526 = vpop.xlane.xlu0 %1525
        %vm1527 = vcmp.eq.f32.partialorder %v1524, %v1526
        %v1528 = vsel %vm1527, %v1523, inf
        %1529 = vmin.xlane.f32.xlu0 %v1528
        %v1530 = vpop.xlane.xlu0 %1529
        %v1531 = vcvt.f32.s32 %v1530
        %v1532 = vcvt.f32.s32 %v1526
        %v1533 = vshll.u32 %v1532, 16
        %v1534 = vadd.s32 %v1533, %v1531
        %v1535 = vsel %vm354, %v1517, 2147483647
        %v1536 = vand.u32 %v1535, 65535
        %v1537 = vshra.s32 %v1535, 16
        %v1538 = vcvt.s32.f32 %v1536
        %v1539 = vcvt.s32.f32 %v1537
        %1540 = vmin.xlane.f32.xlu0 %v1539
        %v1541 = vpop.xlane.xlu0 %1540
        %vm1542 = vcmp.eq.f32.partialorder %v1539, %v1541
        %v1543 = vsel %vm1542, %v1538, inf
        %1544 = vmin.xlane.f32.xlu0 %v1543
        %v1545 = vpop.xlane.xlu0 %1544
        %v1546 = vcvt.f32.s32 %v1545
        %v1547 = vcvt.f32.s32 %v1541
        %v1548 = vshll.u32 %v1547, 16
        %v1549 = vadd.s32 %v1548, %v1546
        %v1550 = vsel %vm354, %v1518, 2147483647
        %v1551 = vand.u32 %v1550, 65535
        %v1552 = vshra.s32 %v1550, 16
        %v1553 = vcvt.s32.f32 %v1551
        %v1554 = vcvt.s32.f32 %v1552
        %1555 = vmin.xlane.f32.xlu0 %v1554
        %v1556 = vpop.xlane.xlu0 %1555
        %vm1557 = vcmp.eq.f32.partialorder %v1554, %v1556
        %v1558 = vsel %vm1557, %v1553, inf
        %1559 = vmin.xlane.f32.xlu0 %v1558
        %v1560 = vpop.xlane.xlu0 %1559
        %v1561 = vcvt.f32.s32 %v1560
        %v1562 = vcvt.f32.s32 %v1556
        %v1563 = vshll.u32 %v1562, 16
        %v1564 = vadd.s32 %v1563, %v1561
        %v1565 = vsel %vm354, %v1519, 2147483647
        %v1566 = vand.u32 %v1565, 65535
        %v1567 = vshra.s32 %v1565, 16
        %v1568 = vcvt.s32.f32 %v1566
        %v1569 = vcvt.s32.f32 %v1567
        %1570 = vmin.xlane.f32.xlu0 %v1569
        %v1571 = vpop.xlane.xlu0 %1570
        %vm1572 = vcmp.eq.f32.partialorder %v1569, %v1571
        %v1573 = vsel %vm1572, %v1568, inf
        %1574 = vmin.xlane.f32.xlu0 %v1573
        %v1575 = vpop.xlane.xlu0 %1574
        %v1576 = vcvt.f32.s32 %v1575
        %v1577 = vcvt.f32.s32 %v1571
        %v1578 = vshll.u32 %v1577, 16
        %v1579 = vadd.s32 %v1578, %v1576
        %vm1580 = vcmp.eq.s32.totalorder %v349, %v1534
        %vm1581 = vcmp.eq.s32.totalorder %v349, %v1549
        %vm1582 = vcmp.eq.s32.totalorder %v349, %v1564
        %vm1583 = vcmp.eq.s32.totalorder %v349, %v1579
        %v1584 = vsel %vm1580, inf, %v1294
        %v1585 = vsel %vm1581, inf, %v1295
        %v1586 = vsel %vm1582, inf, %v1296
        %v1587 = vsel %vm1583, inf, %v1297
        %v1588 = vsel %vm1580, 1, 0
        %v1589 = vsel %vm1581, 1, 0
        %v1590 = vsel %vm1582, 1, 0
        %v1591 = vsel %vm1583, 1, 0
        %v1592 = vcvt.s32.f32 %v1588
        %v1593 = vcvt.s32.f32 %v1589
        %v1594 = vcvt.s32.f32 %v1590
        %v1595 = vcvt.s32.f32 %v1591
        %v1597 = vsel %vm354, %v1592, 0
        %v1600 = vsel %vm354, %v1593, 0
        %v1603 = vsel %vm354, %v1594, 0
        %v1606 = vsel %vm354, %v1595, 0
        %1608 = vmatprep.subr.mxu0 0.0
        %1609 = vmatpush1.msra.mxu0 %v237
        %1610 = vmatprep.subr.mxu0 0.0
        %1611 = vmatpush1.msra.mxu0 %v238
        %1612 = vmatprep.subr.mxu0 0.0
        %1613 = vmatpush1.msra.mxu0 %v239
        %1614 = vmatprep.subr.mxu0 0.0
        %1615 = vmatpush1.msra.mxu0 %v240
        %1616 = vmatprep.subr.mxu0 0.0
        %1617 = vmatpush1.msra.mxu0 %v241
        %1618 = vmatprep.subr.mxu0 0.0
        %1619 = vmatpush1.msra.mxu0 %v242
        %1620 = vmatprep.subr.mxu0 0.0
        %1621 = vmatpush1.msra.mxu0 %v243
        %1622 = vmatprep.subr.mxu0 0.0
        %1623 = vmatpush1.msra.mxu0 %v244
        %1624 = vmatprep.subr.mxu0 0.0
        %1625 = vmatpush1.msra.mxu0 0.0
        %1626 = vmatprep.subr.mxu0 0.0
        %1627 = vmatpush1.msra.mxu0 0.0
        %1628 = vmatprep.subr.mxu0 0.0
        %1629 = vmatpush1.msra.mxu0 0.0
        %1630 = vmatprep.subr.mxu0 0.0
        %1631 = vmatpush1.msra.mxu0 0.0
        %1632 = vmatprep.subr.mxu0 0.0
        %1633 = vmatpush1.msra.mxu0 0.0
        %1634 = vmatprep.subr.mxu0 0.0
        %1635 = vmatpush1.msra.mxu0 0.0
        %1636 = vmatprep.subr.mxu0 0.0
        %1637 = vmatpush1.msra.mxu0 0.0
        %1638 = vmatprep.subr.mxu0 0.0
        %1639 = vmatpush1.msra.mxu0 0.0
        %1640 = vmatprep.subr.mxu0 0.0
        %1641 = vmatpush1.msra.mxu0 0.0
        %1642 = vmatprep.subr.mxu0 0.0
        %1643 = vmatpush1.msra.mxu0 0.0
        %1644 = vmatprep.subr.mxu0 0.0
        %1645 = vmatpush1.msra.mxu0 0.0
        %1646 = vmatprep.subr.mxu0 0.0
        %1647 = vmatpush1.msra.mxu0 0.0
        %1648 = vmatprep.subr.mxu0 0.0
        %1649 = vmatpush1.msra.mxu0 0.0
        %1650 = vmatprep.subr.mxu0 0.0
        %1651 = vmatpush1.msra.mxu0 0.0
        %1652 = vmatprep.subr.mxu0 0.0
        %1653 = vmatpush1.msra.mxu0 0.0
        %1654 = vmatprep.subr.mxu0 0.0
        %1655 = vmatpush1.msra.mxu0 0.0
        %1656 = vmatprep.subr.mxu0 0.0
        %1657 = vmatpush1.msra.mxu0 0.0
        %1658 = vmatprep.subr.mxu0 0.0
        %1659 = vmatpush1.msra.mxu0 0.0
        %1660 = vmatprep.subr.mxu0 0.0
        %1661 = vmatpush1.msra.mxu0 0.0
        %1662 = vmatprep.subr.mxu0 0.0
        %1663 = vmatpush1.msra.mxu0 0.0
        %1664 = vmatprep.subr.mxu0 0.0
        %1665 = vmatpush1.msra.mxu0 0.0
        %1666 = vmatprep.subr.mxu0 0.0
        %1667 = vmatpush1.msra.mxu0 0.0
        %1668 = vmatprep.subr.mxu0 0.0
        %1669 = vmatpush1.msra.mxu0 0.0
        %1670 = vmatprep.subr.mxu0 0.0
        %1671 = vmatpush1.msra.mxu0 0.0
        %1672 = vmatprep.mubr.f32.mxu0 0.0
        %1673 = vmatmul.mubr.f32.gmra.mrb[0].mxu0 %v1597
        %v1674 = vpop.f32.mrb[0].mxu0
        %v1675 = vadd.f32 0.0, %v1674
        %v1676 = vpop.f32.mrb[0].mxu0
        %1677 = vmatprep.mubr.f32.mxu0 0.0
        %1678 = vmatmul.mubr.f32.gmra.mrb[0].mxu0 %v1600
        %v1679 = vpop.f32.mrb[0].mxu0
        %v1680 = vadd.f32 0.0, %v1679
        %v1681 = vpop.f32.mrb[0].mxu0
        %1682 = vmatprep.mubr.f32.mxu0 0.0
        %1683 = vmatmul.mubr.f32.gmra.mrb[0].mxu0 %v1603
        %v1684 = vpop.f32.mrb[0].mxu0
        %v1685 = vadd.f32 0.0, %v1684
        %v1686 = vpop.f32.mrb[0].mxu0
        %1687 = vmatprep.mubr.f32.mxu0 0.0
        %1688 = vmatmul.mubr.f32.gmra.mrb[0].mxu0 %v1606
        %v1689 = vpop.f32.mrb[0].mxu0
        %v1690 = vadd.f32 0.0, %v1689
        %v1691 = vpop.f32.mrb[0].mxu0
        %1692 = vdwg.mxu0
        %vm1693 = vcmp.ge.f32.partialorder 0.49, %v1502
        %vm1694 = vcmp.ge.f32.partialorder 0.49, %v1505
        %vm1695 = vcmp.ge.f32.partialorder 0.49, %v1508
        %vm1696 = vcmp.ge.f32.partialorder 0.49, %v1511
        %v1697 = vsel %vm1693, 1, 0
        %v1698 = vsel %vm1694, 1, 0
        %v1699 = vsel %vm1695, 1, 0
        %v1700 = vsel %vm1696, 1, 0
        %vm1701 = vcmp.eq.s32.totalorder %v1697, 1
        %vm1702 = vcmp.eq.s32.totalorder %v1698, 1
        %vm1703 = vcmp.eq.s32.totalorder %v1699, 1
        %vm1704 = vcmp.eq.s32.totalorder %v1700, 1
        %v1705 = vsel %vm1701, %v1675, 0.0
        %v1706 = vsel %vm1702, %v1680, 0.0
        %v1707 = vsel %vm1703, %v1685, 0.0
        %v1708 = vsel %vm1704, %v1690, 0.0
        %v1709 = vmul.f32 %v1705, -0.7142847
        %v1710 = vmul.f32 %v1706, -0.7142847
        %v1711 = vmul.f32 %v1707, -0.7142847
        %v1712 = vmul.f32 %v1708, -0.7142847
        %v1713 = vsub.f32 %v1709, %v350
        %v1714 = vsub.f32 %v1710, %v351
        %v1715 = vsub.f32 %v1711, %v352
        %v1716 = vsub.f32 %v1712, %v353
        %v1717 = vmax.f32 %v1502, 1e-09
        %v1718 = vmax.f32 %v1505, 1e-09
        %v1719 = vmax.f32 %v1508, 1e-09
        %v1720 = vmax.f32 %v1511, 1e-09
        %v1721 = vrsqrt.pop %v1717
        %v1722 = vmul.f32 %v1717, %v1721
        %vm1723 = vcmp.eq.f32.partialorder %v1717, inf
        %v1724 = vsel %vm1723, %v1717, %v1722
        %vm1725 = vcmp.eq.f32.partialorder %v1717, 0.0
        %v1726 = vand.u32 %v1717, 2147483648
        %v1727 = vsel %vm1725, %v1726, %v1724
        %v1728 = vrsqrt.pop %v1718
        %v1729 = vmul.f32 %v1718, %v1728
        %vm1730 = vcmp.eq.f32.partialorder %v1718, inf
        %v1731 = vsel %vm1730, %v1718, %v1729
        %vm1732 = vcmp.eq.f32.partialorder %v1718, 0.0
        %v1733 = vand.u32 %v1718, 2147483648
        %v1734 = vsel %vm1732, %v1733, %v1731
        %v1735 = vrsqrt.pop %v1719
        %v1736 = vmul.f32 %v1719, %v1735
        %vm1737 = vcmp.eq.f32.partialorder %v1719, inf
        %v1738 = vsel %vm1737, %v1719, %v1736
        %vm1739 = vcmp.eq.f32.partialorder %v1719, 0.0
        %v1740 = vand.u32 %v1719, 2147483648
        %v1741 = vsel %vm1739, %v1740, %v1738
        %v1742 = vrsqrt.pop %v1720
        %v1743 = vmul.f32 %v1720, %v1742
        %vm1744 = vcmp.eq.f32.partialorder %v1720, inf
        %v1745 = vsel %vm1744, %v1720, %v1743
        %vm1746 = vcmp.eq.f32.partialorder %v1720, 0.0
        %v1747 = vand.u32 %v1720, 2147483648
        %v1748 = vsel %vm1746, %v1747, %v1745
        %v1749 = vmul.f32 %v1727, 1.4285694
        %v1750 = vmul.f32 %v1734, 1.4285694
        %v1751 = vmul.f32 %v1741, 1.4285694
        %v1752 = vmul.f32 %v1748, 1.4285694
        %v1753 = vsel %vm1693, %v1534, 4294967295
        %v1754 = vsel %vm1694, %v1549, 4294967295
        %v1755 = vsel %vm1695, %v1564, 4294967295
        %v1756 = vsel %vm1696, %v1579, 4294967295
        %v1757 = vcvt.s32.f32 %v1753
        %v1758 = vcvt.s32.f32 %v1754
        %v1759 = vcvt.s32.f32 %v1755
        %v1760 = vcvt.s32.f32 %v1756
        %v1761 = vsel %vm616, %v1749, %v1713
        %v1762 = vsel %vm616, %v1750, %v1714
        %v1763 = vsel %vm616, %v1751, %v1715
        %v1764 = vsel %vm616, %v1752, %v1716
        %v1765 = vsel %vm621, %v1757, %v1761
        %v1766 = vsel %vm621, %v1758, %v1762
        %v1767 = vsel %vm621, %v1759, %v1763
        %v1768 = vsel %vm621, %v1760, %v1764
        %1773 = vrot.lane.b32.xlu0 %v1765, 32
        %v1774 = vpop.permute.xlu0 %1773
        %1775 = vrot.lane.b32.xlu0 %v1766, 32
        %v1776 = vpop.permute.xlu0 %1775
        %1777 = vrot.lane.b32.xlu0 %v1767, 32
        %v1778 = vpop.permute.xlu0 %1777
        %1779 = vrot.lane.b32.xlu0 %v1768, 32
        %v1780 = vpop.permute.xlu0 %1779
        %vm1785 = vcmask 326912
        %1786 = vst.msk [vmem:[%s216] sm:$0xff] %vm1785, %v1774
        %1787 = vst.msk [vmem:[%s216 + $0x8] sm:$0xff] %vm1785, %v1776
        %1788 = vst.msk [vmem:[%s216 + $0x10] sm:$0xff] %vm1785, %v1778
        %1789 = vst.msk [vmem:[%s216 + $0x18] sm:$0xff] %vm1785, %v1780
        %v1790 = vsel %vm354, %v1584, inf
        %1791 = vmin.xlane.f32.xlu0 %v1790
        %v1792 = vpop.xlane.xlu0 %1791
        %v1793 = vsel %vm354, %v1585, inf
        %1794 = vmin.xlane.f32.xlu0 %v1793
        %v1795 = vpop.xlane.xlu0 %1794
        %v1796 = vsel %vm354, %v1586, inf
        %1797 = vmin.xlane.f32.xlu0 %v1796
        %v1798 = vpop.xlane.xlu0 %1797
        %v1799 = vsel %vm354, %v1587, inf
        %1800 = vmin.xlane.f32.xlu0 %v1799
        %v1801 = vpop.xlane.xlu0 %1800
        %vm1802 = vcmp.eq.f32.partialorder %v1584, %v1792
        %vm1803 = vcmp.eq.f32.partialorder %v1585, %v1795
        %vm1804 = vcmp.eq.f32.partialorder %v1586, %v1798
        %vm1805 = vcmp.eq.f32.partialorder %v1587, %v1801
        %v1806 = vsel %vm1802, %v349, 64
        %v1807 = vsel %vm1803, %v349, 64
        %v1808 = vsel %vm1804, %v349, 64
        %v1809 = vsel %vm1805, %v349, 64
        %v1810 = vsel %vm354, %v1806, 2147483647
        %v1811 = vand.u32 %v1810, 65535
        %v1812 = vshra.s32 %v1810, 16
        %v1813 = vcvt.s32.f32 %v1811
        %v1814 = vcvt.s32.f32 %v1812
        %1815 = vmin.xlane.f32.xlu0 %v1814
        %v1816 = vpop.xlane.xlu0 %1815
        %vm1817 = vcmp.eq.f32.partialorder %v1814, %v1816
        %v1818 = vsel %vm1817, %v1813, inf
        %1819 = vmin.xlane.f32.xlu0 %v1818
        %v1820 = vpop.xlane.xlu0 %1819
        %v1821 = vcvt.f32.s32 %v1820
        %v1822 = vcvt.f32.s32 %v1816
        %v1823 = vshll.u32 %v1822, 16
        %v1824 = vadd.s32 %v1823, %v1821
        %v1825 = vsel %vm354, %v1807, 2147483647
        %v1826 = vand.u32 %v1825, 65535
        %v1827 = vshra.s32 %v1825, 16
        %v1828 = vcvt.s32.f32 %v1826
        %v1829 = vcvt.s32.f32 %v1827
        %1830 = vmin.xlane.f32.xlu0 %v1829
        %v1831 = vpop.xlane.xlu0 %1830
        %vm1832 = vcmp.eq.f32.partialorder %v1829, %v1831
        %v1833 = vsel %vm1832, %v1828, inf
        %1834 = vmin.xlane.f32.xlu0 %v1833
        %v1835 = vpop.xlane.xlu0 %1834
        %v1836 = vcvt.f32.s32 %v1835
        %v1837 = vcvt.f32.s32 %v1831
        %v1838 = vshll.u32 %v1837, 16
        %v1839 = vadd.s32 %v1838, %v1836
        %v1840 = vsel %vm354, %v1808, 2147483647
        %v1841 = vand.u32 %v1840, 65535
        %v1842 = vshra.s32 %v1840, 16
        %v1843 = vcvt.s32.f32 %v1841
        %v1844 = vcvt.s32.f32 %v1842
        %1845 = vmin.xlane.f32.xlu0 %v1844
        %v1846 = vpop.xlane.xlu0 %1845
        %vm1847 = vcmp.eq.f32.partialorder %v1844, %v1846
        %v1848 = vsel %vm1847, %v1843, inf
        %1849 = vmin.xlane.f32.xlu0 %v1848
        %v1850 = vpop.xlane.xlu0 %1849
        %v1851 = vcvt.f32.s32 %v1850
        %v1852 = vcvt.f32.s32 %v1846
        %v1853 = vshll.u32 %v1852, 16
        %v1854 = vadd.s32 %v1853, %v1851
        %v1855 = vsel %vm354, %v1809, 2147483647
        %v1856 = vand.u32 %v1855, 65535
        %v1857 = vshra.s32 %v1855, 16
        %v1858 = vcvt.s32.f32 %v1856
        %v1859 = vcvt.s32.f32 %v1857
        %1860 = vmin.xlane.f32.xlu0 %v1859
        %v1861 = vpop.xlane.xlu0 %1860
        %vm1862 = vcmp.eq.f32.partialorder %v1859, %v1861
        %v1863 = vsel %vm1862, %v1858, inf
        %1864 = vmin.xlane.f32.xlu0 %v1863
        %v1865 = vpop.xlane.xlu0 %1864
        %v1866 = vcvt.f32.s32 %v1865
        %v1867 = vcvt.f32.s32 %v1861
        %v1868 = vshll.u32 %v1867, 16
        %v1869 = vadd.s32 %v1868, %v1866
        %vm1870 = vcmp.eq.s32.totalorder %v349, %v1824
        %vm1871 = vcmp.eq.s32.totalorder %v349, %v1839
        %vm1872 = vcmp.eq.s32.totalorder %v349, %v1854
        %vm1873 = vcmp.eq.s32.totalorder %v349, %v1869
        %v1874 = vsel %vm1870, inf, %v1584
        %v1875 = vsel %vm1871, inf, %v1585
        %v1876 = vsel %vm1872, inf, %v1586
        %v1877 = vsel %vm1873, inf, %v1587
        %v1878 = vsel %vm1870, 1, 0
        %v1879 = vsel %vm1871, 1, 0
        %v1880 = vsel %vm1872, 1, 0
        %v1881 = vsel %vm1873, 1, 0
        %v1882 = vcvt.s32.f32 %v1878
        %v1883 = vcvt.s32.f32 %v1879
        %v1884 = vcvt.s32.f32 %v1880
        %v1885 = vcvt.s32.f32 %v1881
        %v1887 = vsel %vm354, %v1882, 0
        %v1890 = vsel %vm354, %v1883, 0
        %v1893 = vsel %vm354, %v1884, 0
        %v1896 = vsel %vm354, %v1885, 0
        %1898 = vmatprep.subr.mxu0 0.0
        %1899 = vmatpush1.msra.mxu0 %v237
        %1900 = vmatprep.subr.mxu0 0.0
        %1901 = vmatpush1.msra.mxu0 %v238
        %1902 = vmatprep.subr.mxu0 0.0
        %1903 = vmatpush1.msra.mxu0 %v239
        %1904 = vmatprep.subr.mxu0 0.0
        %1905 = vmatpush1.msra.mxu0 %v240
        %1906 = vmatprep.subr.mxu0 0.0
        %1907 = vmatpush1.msra.mxu0 %v241
        %1908 = vmatprep.subr.mxu0 0.0
        %1909 = vmatpush1.msra.mxu0 %v242
        %1910 = vmatprep.subr.mxu0 0.0
        %1911 = vmatpush1.msra.mxu0 %v243
        %1912 = vmatprep.subr.mxu0 0.0
        %1913 = vmatpush1.msra.mxu0 %v244
        %1914 = vmatprep.subr.mxu0 0.0
        %1915 = vmatpush1.msra.mxu0 0.0
        %1916 = vmatprep.subr.mxu0 0.0
        %1917 = vmatpush1.msra.mxu0 0.0
        %1918 = vmatprep.subr.mxu0 0.0
        %1919 = vmatpush1.msra.mxu0 0.0
        %1920 = vmatprep.subr.mxu0 0.0
        %1921 = vmatpush1.msra.mxu0 0.0
        %1922 = vmatprep.subr.mxu0 0.0
        %1923 = vmatpush1.msra.mxu0 0.0
        %1924 = vmatprep.subr.mxu0 0.0
        %1925 = vmatpush1.msra.mxu0 0.0
        %1926 = vmatprep.subr.mxu0 0.0
        %1927 = vmatpush1.msra.mxu0 0.0
        %1928 = vmatprep.subr.mxu0 0.0
        %1929 = vmatpush1.msra.mxu0 0.0
        %1930 = vmatprep.subr.mxu0 0.0
        %1931 = vmatpush1.msra.mxu0 0.0
        %1932 = vmatprep.subr.mxu0 0.0
        %1933 = vmatpush1.msra.mxu0 0.0
        %1934 = vmatprep.subr.mxu0 0.0
        %1935 = vmatpush1.msra.mxu0 0.0
        %1936 = vmatprep.subr.mxu0 0.0
        %1937 = vmatpush1.msra.mxu0 0.0
        %1938 = vmatprep.subr.mxu0 0.0
        %1939 = vmatpush1.msra.mxu0 0.0
        %1940 = vmatprep.subr.mxu0 0.0
        %1941 = vmatpush1.msra.mxu0 0.0
        %1942 = vmatprep.subr.mxu0 0.0
        %1943 = vmatpush1.msra.mxu0 0.0
        %1944 = vmatprep.subr.mxu0 0.0
        %1945 = vmatpush1.msra.mxu0 0.0
        %1946 = vmatprep.subr.mxu0 0.0
        %1947 = vmatpush1.msra.mxu0 0.0
        %1948 = vmatprep.subr.mxu0 0.0
        %1949 = vmatpush1.msra.mxu0 0.0
        %1950 = vmatprep.subr.mxu0 0.0
        %1951 = vmatpush1.msra.mxu0 0.0
        %1952 = vmatprep.subr.mxu0 0.0
        %1953 = vmatpush1.msra.mxu0 0.0
        %1954 = vmatprep.subr.mxu0 0.0
        %1955 = vmatpush1.msra.mxu0 0.0
        %1956 = vmatprep.subr.mxu0 0.0
        %1957 = vmatpush1.msra.mxu0 0.0
        %1958 = vmatprep.subr.mxu0 0.0
        %1959 = vmatpush1.msra.mxu0 0.0
        %1960 = vmatprep.subr.mxu0 0.0
        %1961 = vmatpush1.msra.mxu0 0.0
        %1962 = vmatprep.mubr.f32.mxu0 0.0
        %1963 = vmatmul.mubr.f32.gmra.mrb[0].mxu0 %v1887
        %v1964 = vpop.f32.mrb[0].mxu0
        %v1965 = vadd.f32 0.0, %v1964
        %v1966 = vpop.f32.mrb[0].mxu0
        %1967 = vmatprep.mubr.f32.mxu0 0.0
        %1968 = vmatmul.mubr.f32.gmra.mrb[0].mxu0 %v1890
        %v1969 = vpop.f32.mrb[0].mxu0
        %v1970 = vadd.f32 0.0, %v1969
        %v1971 = vpop.f32.mrb[0].mxu0
        %1972 = vmatprep.mubr.f32.mxu0 0.0
        %1973 = vmatmul.mubr.f32.gmra.mrb[0].mxu0 %v1893
        %v1974 = vpop.f32.mrb[0].mxu0
        %v1975 = vadd.f32 0.0, %v1974
        %v1976 = vpop.f32.mrb[0].mxu0
        %1977 = vmatprep.mubr.f32.mxu0 0.0
        %1978 = vmatmul.mubr.f32.gmra.mrb[0].mxu0 %v1896
        %v1979 = vpop.f32.mrb[0].mxu0
        %v1980 = vadd.f32 0.0, %v1979
        %v1981 = vpop.f32.mrb[0].mxu0
        %1982 = vdwg.mxu0
        %vm1983 = vcmp.ge.f32.partialorder 0.49, %v1792
        %vm1984 = vcmp.ge.f32.partialorder 0.49, %v1795
        %vm1985 = vcmp.ge.f32.partialorder 0.49, %v1798
        %vm1986 = vcmp.ge.f32.partialorder 0.49, %v1801
        %v1987 = vsel %vm1983, 1, 0
        %v1988 = vsel %vm1984, 1, 0
        %v1989 = vsel %vm1985, 1, 0
        %v1990 = vsel %vm1986, 1, 0
        %vm1991 = vcmp.eq.s32.totalorder %v1987, 1
        %vm1992 = vcmp.eq.s32.totalorder %v1988, 1
        %vm1993 = vcmp.eq.s32.totalorder %v1989, 1
        %vm1994 = vcmp.eq.s32.totalorder %v1990, 1
        %v1995 = vsel %vm1991, %v1965, 0.0
        %v1996 = vsel %vm1992, %v1970, 0.0
        %v1997 = vsel %vm1993, %v1975, 0.0
        %v1998 = vsel %vm1994, %v1980, 0.0
        %v1999 = vmul.f32 %v1995, -0.7142847
        %v2000 = vmul.f32 %v1996, -0.7142847
        %v2001 = vmul.f32 %v1997, -0.7142847
        %v2002 = vmul.f32 %v1998, -0.7142847
        %v2003 = vsub.f32 %v1999, %v350
        %v2004 = vsub.f32 %v2000, %v351
        %v2005 = vsub.f32 %v2001, %v352
        %v2006 = vsub.f32 %v2002, %v353
        %v2007 = vmax.f32 %v1792, 1e-09
        %v2008 = vmax.f32 %v1795, 1e-09
        %v2009 = vmax.f32 %v1798, 1e-09
        %v2010 = vmax.f32 %v1801, 1e-09
        %v2011 = vrsqrt.pop %v2007
        %v2012 = vmul.f32 %v2007, %v2011
        %vm2013 = vcmp.eq.f32.partialorder %v2007, inf
        %v2014 = vsel %vm2013, %v2007, %v2012
        %vm2015 = vcmp.eq.f32.partialorder %v2007, 0.0
        %v2016 = vand.u32 %v2007, 2147483648
        %v2017 = vsel %vm2015, %v2016, %v2014
        %v2018 = vrsqrt.pop %v2008
        %v2019 = vmul.f32 %v2008, %v2018
        %vm2020 = vcmp.eq.f32.partialorder %v2008, inf
        %v2021 = vsel %vm2020, %v2008, %v2019
        %vm2022 = vcmp.eq.f32.partialorder %v2008, 0.0
        %v2023 = vand.u32 %v2008, 2147483648
        %v2024 = vsel %vm2022, %v2023, %v2021
        %v2025 = vrsqrt.pop %v2009
        %v2026 = vmul.f32 %v2009, %v2025
        %vm2027 = vcmp.eq.f32.partialorder %v2009, inf
        %v2028 = vsel %vm2027, %v2009, %v2026
        %vm2029 = vcmp.eq.f32.partialorder %v2009, 0.0
        %v2030 = vand.u32 %v2009, 2147483648
        %v2031 = vsel %vm2029, %v2030, %v2028
        %v2032 = vrsqrt.pop %v2010
        %v2033 = vmul.f32 %v2010, %v2032
        %vm2034 = vcmp.eq.f32.partialorder %v2010, inf
        %v2035 = vsel %vm2034, %v2010, %v2033
        %vm2036 = vcmp.eq.f32.partialorder %v2010, 0.0
        %v2037 = vand.u32 %v2010, 2147483648
        %v2038 = vsel %vm2036, %v2037, %v2035
        %v2039 = vmul.f32 %v2017, 1.4285694
        %v2040 = vmul.f32 %v2024, 1.4285694
        %v2041 = vmul.f32 %v2031, 1.4285694
        %v2042 = vmul.f32 %v2038, 1.4285694
        %v2043 = vsel %vm1983, %v1824, 4294967295
        %v2044 = vsel %vm1984, %v1839, 4294967295
        %v2045 = vsel %vm1985, %v1854, 4294967295
        %v2046 = vsel %vm1986, %v1869, 4294967295
        %v2047 = vcvt.s32.f32 %v2043
        %v2048 = vcvt.s32.f32 %v2044
        %v2049 = vcvt.s32.f32 %v2045
        %v2050 = vcvt.s32.f32 %v2046
        %v2051 = vsel %vm616, %v2039, %v2003
        %v2052 = vsel %vm616, %v2040, %v2004
        %v2053 = vsel %vm616, %v2041, %v2005
        %v2054 = vsel %vm616, %v2042, %v2006
        %v2055 = vsel %vm621, %v2047, %v2051
        %v2056 = vsel %vm621, %v2048, %v2052
        %v2057 = vsel %vm621, %v2049, %v2053
        %v2058 = vsel %vm621, %v2050, %v2054
        %2063 = vrot.lane.b32.xlu0 %v2055, 40
        %v2064 = vpop.permute.xlu0 %2063
        %2065 = vrot.lane.b32.xlu0 %v2056, 40
        %v2066 = vpop.permute.xlu0 %2065
        %2067 = vrot.lane.b32.xlu0 %v2057, 40
        %v2068 = vpop.permute.xlu0 %2067
        %2069 = vrot.lane.b32.xlu0 %v2058, 40
        %v2070 = vpop.permute.xlu0 %2069
        %vm2075 = vcmask 392512
        %2076 = vst.msk [vmem:[%s216] sm:$0xff] %vm2075, %v2064
        %2077 = vst.msk [vmem:[%s216 + $0x8] sm:$0xff] %vm2075, %v2066
        %2078 = vst.msk [vmem:[%s216 + $0x10] sm:$0xff] %vm2075, %v2068
        %2079 = vst.msk [vmem:[%s216 + $0x18] sm:$0xff] %vm2075, %v2070
        %v2080 = vsel %vm354, %v1874, inf
        %2081 = vmin.xlane.f32.xlu0 %v2080
        %v2082 = vpop.xlane.xlu0 %2081
        %v2083 = vsel %vm354, %v1875, inf
        %2084 = vmin.xlane.f32.xlu0 %v2083
        %v2085 = vpop.xlane.xlu0 %2084
        %v2086 = vsel %vm354, %v1876, inf
        %2087 = vmin.xlane.f32.xlu0 %v2086
        %v2088 = vpop.xlane.xlu0 %2087
        %v2089 = vsel %vm354, %v1877, inf
        %2090 = vmin.xlane.f32.xlu0 %v2089
        %v2091 = vpop.xlane.xlu0 %2090
        %vm2092 = vcmp.eq.f32.partialorder %v1874, %v2082
        %vm2093 = vcmp.eq.f32.partialorder %v1875, %v2085
        %vm2094 = vcmp.eq.f32.partialorder %v1876, %v2088
        %vm2095 = vcmp.eq.f32.partialorder %v1877, %v2091
        %v2096 = vsel %vm2092, %v349, 64
        %v2097 = vsel %vm2093, %v349, 64
        %v2098 = vsel %vm2094, %v349, 64
        %v2099 = vsel %vm2095, %v349, 64
        %v2100 = vsel %vm354, %v2096, 2147483647
        %v2101 = vand.u32 %v2100, 65535
        %v2102 = vshra.s32 %v2100, 16
        %v2103 = vcvt.s32.f32 %v2101
        %v2104 = vcvt.s32.f32 %v2102
        %2105 = vmin.xlane.f32.xlu0 %v2104
        %v2106 = vpop.xlane.xlu0 %2105
        %vm2107 = vcmp.eq.f32.partialorder %v2104, %v2106
        %v2108 = vsel %vm2107, %v2103, inf
        %2109 = vmin.xlane.f32.xlu0 %v2108
        %v2110 = vpop.xlane.xlu0 %2109
        %v2111 = vcvt.f32.s32 %v2110
        %v2112 = vcvt.f32.s32 %v2106
        %v2113 = vshll.u32 %v2112, 16
        %v2114 = vadd.s32 %v2113, %v2111
        %v2115 = vsel %vm354, %v2097, 2147483647
        %v2116 = vand.u32 %v2115, 65535
        %v2117 = vshra.s32 %v2115, 16
        %v2118 = vcvt.s32.f32 %v2116
        %v2119 = vcvt.s32.f32 %v2117
        %2120 = vmin.xlane.f32.xlu0 %v2119
        %v2121 = vpop.xlane.xlu0 %2120
        %vm2122 = vcmp.eq.f32.partialorder %v2119, %v2121
        %v2123 = vsel %vm2122, %v2118, inf
        %2124 = vmin.xlane.f32.xlu0 %v2123
        %v2125 = vpop.xlane.xlu0 %2124
        %v2126 = vcvt.f32.s32 %v2125
        %v2127 = vcvt.f32.s32 %v2121
        %v2128 = vshll.u32 %v2127, 16
        %v2129 = vadd.s32 %v2128, %v2126
        %v2130 = vsel %vm354, %v2098, 2147483647
        %v2131 = vand.u32 %v2130, 65535
        %v2132 = vshra.s32 %v2130, 16
        %v2133 = vcvt.s32.f32 %v2131
        %v2134 = vcvt.s32.f32 %v2132
        %2135 = vmin.xlane.f32.xlu0 %v2134
        %v2136 = vpop.xlane.xlu0 %2135
        %vm2137 = vcmp.eq.f32.partialorder %v2134, %v2136
        %v2138 = vsel %vm2137, %v2133, inf
        %2139 = vmin.xlane.f32.xlu0 %v2138
        %v2140 = vpop.xlane.xlu0 %2139
        %v2141 = vcvt.f32.s32 %v2140
        %v2142 = vcvt.f32.s32 %v2136
        %v2143 = vshll.u32 %v2142, 16
        %v2144 = vadd.s32 %v2143, %v2141
        %v2145 = vsel %vm354, %v2099, 2147483647
        %v2146 = vand.u32 %v2145, 65535
        %v2147 = vshra.s32 %v2145, 16
        %v2148 = vcvt.s32.f32 %v2146
        %v2149 = vcvt.s32.f32 %v2147
        %2150 = vmin.xlane.f32.xlu0 %v2149
        %v2151 = vpop.xlane.xlu0 %2150
        %vm2152 = vcmp.eq.f32.partialorder %v2149, %v2151
        %v2153 = vsel %vm2152, %v2148, inf
        %2154 = vmin.xlane.f32.xlu0 %v2153
        %v2155 = vpop.xlane.xlu0 %2154
        %v2156 = vcvt.f32.s32 %v2155
        %v2157 = vcvt.f32.s32 %v2151
        %v2158 = vshll.u32 %v2157, 16
        %v2159 = vadd.s32 %v2158, %v2156
        %vm2160 = vcmp.eq.s32.totalorder %v349, %v2114
        %vm2161 = vcmp.eq.s32.totalorder %v349, %v2129
        %vm2162 = vcmp.eq.s32.totalorder %v349, %v2144
        %vm2163 = vcmp.eq.s32.totalorder %v349, %v2159
        %v2164 = vsel %vm2160, inf, %v1874
        %v2165 = vsel %vm2161, inf, %v1875
        %v2166 = vsel %vm2162, inf, %v1876
        %v2167 = vsel %vm2163, inf, %v1877
        %v2168 = vsel %vm2160, 1, 0
        %v2169 = vsel %vm2161, 1, 0
        %v2170 = vsel %vm2162, 1, 0
        %v2171 = vsel %vm2163, 1, 0
        %v2172 = vcvt.s32.f32 %v2168
        %v2173 = vcvt.s32.f32 %v2169
        %v2174 = vcvt.s32.f32 %v2170
        %v2175 = vcvt.s32.f32 %v2171
        %v2177 = vsel %vm354, %v2172, 0
        %v2180 = vsel %vm354, %v2173, 0
        %v2183 = vsel %vm354, %v2174, 0
        %v2186 = vsel %vm354, %v2175, 0
        %2188 = vmatprep.subr.mxu0 0.0
        %2189 = vmatpush1.msra.mxu0 %v237
        %2190 = vmatprep.subr.mxu0 0.0
        %2191 = vmatpush1.msra.mxu0 %v238
        %2192 = vmatprep.subr.mxu0 0.0
        %2193 = vmatpush1.msra.mxu0 %v239
        %2194 = vmatprep.subr.mxu0 0.0
        %2195 = vmatpush1.msra.mxu0 %v240
        %2196 = vmatprep.subr.mxu0 0.0
        %2197 = vmatpush1.msra.mxu0 %v241
        %2198 = vmatprep.subr.mxu0 0.0
        %2199 = vmatpush1.msra.mxu0 %v242
        %2200 = vmatprep.subr.mxu0 0.0
        %2201 = vmatpush1.msra.mxu0 %v243
        %2202 = vmatprep.subr.mxu0 0.0
        %2203 = vmatpush1.msra.mxu0 %v244
        %2204 = vmatprep.subr.mxu0 0.0
        %2205 = vmatpush1.msra.mxu0 0.0
        %2206 = vmatprep.subr.mxu0 0.0
        %2207 = vmatpush1.msra.mxu0 0.0
        %2208 = vmatprep.subr.mxu0 0.0
        %2209 = vmatpush1.msra.mxu0 0.0
        %2210 = vmatprep.subr.mxu0 0.0
        %2211 = vmatpush1.msra.mxu0 0.0
        %2212 = vmatprep.subr.mxu0 0.0
        %2213 = vmatpush1.msra.mxu0 0.0
        %2214 = vmatprep.subr.mxu0 0.0
        %2215 = vmatpush1.msra.mxu0 0.0
        %2216 = vmatprep.subr.mxu0 0.0
        %2217 = vmatpush1.msra.mxu0 0.0
        %2218 = vmatprep.subr.mxu0 0.0
        %2219 = vmatpush1.msra.mxu0 0.0
        %2220 = vmatprep.subr.mxu0 0.0
        %2221 = vmatpush1.msra.mxu0 0.0
        %2222 = vmatprep.subr.mxu0 0.0
        %2223 = vmatpush1.msra.mxu0 0.0
        %2224 = vmatprep.subr.mxu0 0.0
        %2225 = vmatpush1.msra.mxu0 0.0
        %2226 = vmatprep.subr.mxu0 0.0
        %2227 = vmatpush1.msra.mxu0 0.0
        %2228 = vmatprep.subr.mxu0 0.0
        %2229 = vmatpush1.msra.mxu0 0.0
        %2230 = vmatprep.subr.mxu0 0.0
        %2231 = vmatpush1.msra.mxu0 0.0
        %2232 = vmatprep.subr.mxu0 0.0
        %2233 = vmatpush1.msra.mxu0 0.0
        %2234 = vmatprep.subr.mxu0 0.0
        %2235 = vmatpush1.msra.mxu0 0.0
        %2236 = vmatprep.subr.mxu0 0.0
        %2237 = vmatpush1.msra.mxu0 0.0
        %2238 = vmatprep.subr.mxu0 0.0
        %2239 = vmatpush1.msra.mxu0 0.0
        %2240 = vmatprep.subr.mxu0 0.0
        %2241 = vmatpush1.msra.mxu0 0.0
        %2242 = vmatprep.subr.mxu0 0.0
        %2243 = vmatpush1.msra.mxu0 0.0
        %2244 = vmatprep.subr.mxu0 0.0
        %2245 = vmatpush1.msra.mxu0 0.0
        %2246 = vmatprep.subr.mxu0 0.0
        %2247 = vmatpush1.msra.mxu0 0.0
        %2248 = vmatprep.subr.mxu0 0.0
        %2249 = vmatpush1.msra.mxu0 0.0
        %2250 = vmatprep.subr.mxu0 0.0
        %2251 = vmatpush1.msra.mxu0 0.0
        %2252 = vmatprep.mubr.f32.mxu0 0.0
        %2253 = vmatmul.mubr.f32.gmra.mrb[0].mxu0 %v2177
        %v2254 = vpop.f32.mrb[0].mxu0
        %v2255 = vadd.f32 0.0, %v2254
        %v2256 = vpop.f32.mrb[0].mxu0
        %2257 = vmatprep.mubr.f32.mxu0 0.0
        %2258 = vmatmul.mubr.f32.gmra.mrb[0].mxu0 %v2180
        %v2259 = vpop.f32.mrb[0].mxu0
        %v2260 = vadd.f32 0.0, %v2259
        %v2261 = vpop.f32.mrb[0].mxu0
        %2262 = vmatprep.mubr.f32.mxu0 0.0
        %2263 = vmatmul.mubr.f32.gmra.mrb[0].mxu0 %v2183
        %v2264 = vpop.f32.mrb[0].mxu0
        %v2265 = vadd.f32 0.0, %v2264
        %v2266 = vpop.f32.mrb[0].mxu0
        %2267 = vmatprep.mubr.f32.mxu0 0.0
        %2268 = vmatmul.mubr.f32.gmra.mrb[0].mxu0 %v2186
        %v2269 = vpop.f32.mrb[0].mxu0
        %v2270 = vadd.f32 0.0, %v2269
        %v2271 = vpop.f32.mrb[0].mxu0
        %2272 = vdwg.mxu0
        %vm2273 = vcmp.ge.f32.partialorder 0.49, %v2082
        %vm2274 = vcmp.ge.f32.partialorder 0.49, %v2085
        %vm2275 = vcmp.ge.f32.partialorder 0.49, %v2088
        %vm2276 = vcmp.ge.f32.partialorder 0.49, %v2091
        %v2277 = vsel %vm2273, 1, 0
        %v2278 = vsel %vm2274, 1, 0
        %v2279 = vsel %vm2275, 1, 0
        %v2280 = vsel %vm2276, 1, 0
        %vm2281 = vcmp.eq.s32.totalorder %v2277, 1
        %vm2282 = vcmp.eq.s32.totalorder %v2278, 1
        %vm2283 = vcmp.eq.s32.totalorder %v2279, 1
        %vm2284 = vcmp.eq.s32.totalorder %v2280, 1
        %v2285 = vsel %vm2281, %v2255, 0.0
        %v2286 = vsel %vm2282, %v2260, 0.0
        %v2287 = vsel %vm2283, %v2265, 0.0
        %v2288 = vsel %vm2284, %v2270, 0.0
        %v2289 = vmul.f32 %v2285, -0.7142847
        %v2290 = vmul.f32 %v2286, -0.7142847
        %v2291 = vmul.f32 %v2287, -0.7142847
        %v2292 = vmul.f32 %v2288, -0.7142847
        %v2293 = vsub.f32 %v2289, %v350
        %v2294 = vsub.f32 %v2290, %v351
        %v2295 = vsub.f32 %v2291, %v352
        %v2296 = vsub.f32 %v2292, %v353
        %v2297 = vmax.f32 %v2082, 1e-09
        %v2298 = vmax.f32 %v2085, 1e-09
        %v2299 = vmax.f32 %v2088, 1e-09
        %v2300 = vmax.f32 %v2091, 1e-09
        %v2301 = vrsqrt.pop %v2297
        %v2302 = vmul.f32 %v2297, %v2301
        %vm2303 = vcmp.eq.f32.partialorder %v2297, inf
        %v2304 = vsel %vm2303, %v2297, %v2302
        %vm2305 = vcmp.eq.f32.partialorder %v2297, 0.0
        %v2306 = vand.u32 %v2297, 2147483648
        %v2307 = vsel %vm2305, %v2306, %v2304
        %v2308 = vrsqrt.pop %v2298
        %v2309 = vmul.f32 %v2298, %v2308
        %vm2310 = vcmp.eq.f32.partialorder %v2298, inf
        %v2311 = vsel %vm2310, %v2298, %v2309
        %vm2312 = vcmp.eq.f32.partialorder %v2298, 0.0
        %v2313 = vand.u32 %v2298, 2147483648
        %v2314 = vsel %vm2312, %v2313, %v2311
        %v2315 = vrsqrt.pop %v2299
        %v2316 = vmul.f32 %v2299, %v2315
        %vm2317 = vcmp.eq.f32.partialorder %v2299, inf
        %v2318 = vsel %vm2317, %v2299, %v2316
        %vm2319 = vcmp.eq.f32.partialorder %v2299, 0.0
        %v2320 = vand.u32 %v2299, 2147483648
        %v2321 = vsel %vm2319, %v2320, %v2318
        %v2322 = vrsqrt.pop %v2300
        %v2323 = vmul.f32 %v2300, %v2322
        %vm2324 = vcmp.eq.f32.partialorder %v2300, inf
        %v2325 = vsel %vm2324, %v2300, %v2323
        %vm2326 = vcmp.eq.f32.partialorder %v2300, 0.0
        %v2327 = vand.u32 %v2300, 2147483648
        %v2328 = vsel %vm2326, %v2327, %v2325
        %v2329 = vmul.f32 %v2307, 1.4285694
        %v2330 = vmul.f32 %v2314, 1.4285694
        %v2331 = vmul.f32 %v2321, 1.4285694
        %v2332 = vmul.f32 %v2328, 1.4285694
        %v2333 = vsel %vm2273, %v2114, 4294967295
        %v2334 = vsel %vm2274, %v2129, 4294967295
        %v2335 = vsel %vm2275, %v2144, 4294967295
        %v2336 = vsel %vm2276, %v2159, 4294967295
        %v2337 = vcvt.s32.f32 %v2333
        %v2338 = vcvt.s32.f32 %v2334
        %v2339 = vcvt.s32.f32 %v2335
        %v2340 = vcvt.s32.f32 %v2336
        %v2341 = vsel %vm616, %v2329, %v2293
        %v2342 = vsel %vm616, %v2330, %v2294
        %v2343 = vsel %vm616, %v2331, %v2295
        %v2344 = vsel %vm616, %v2332, %v2296
        %v2345 = vsel %vm621, %v2337, %v2341
        %v2346 = vsel %vm621, %v2338, %v2342
        %v2347 = vsel %vm621, %v2339, %v2343
        %v2348 = vsel %vm621, %v2340, %v2344
        %2353 = vrot.lane.b32.xlu0 %v2345, 48
        %v2354 = vpop.permute.xlu0 %2353
        %2355 = vrot.lane.b32.xlu0 %v2346, 48
        %v2356 = vpop.permute.xlu0 %2355
        %2357 = vrot.lane.b32.xlu0 %v2347, 48
        %v2358 = vpop.permute.xlu0 %2357
        %2359 = vrot.lane.b32.xlu0 %v2348, 48
        %v2360 = vpop.permute.xlu0 %2359
        %vm2365 = vcmask 458112
        %2366 = vst.msk [vmem:[%s216] sm:$0xff] %vm2365, %v2354
        %2367 = vst.msk [vmem:[%s216 + $0x8] sm:$0xff] %vm2365, %v2356
        %2368 = vst.msk [vmem:[%s216 + $0x10] sm:$0xff] %vm2365, %v2358
        %2369 = vst.msk [vmem:[%s216 + $0x18] sm:$0xff] %vm2365, %v2360
        %v2370 = vsel %vm354, %v2164, inf
        %2371 = vmin.xlane.f32.xlu0 %v2370
        %v2372 = vpop.xlane.xlu0 %2371
        %v2373 = vsel %vm354, %v2165, inf
        %2374 = vmin.xlane.f32.xlu0 %v2373
        %v2375 = vpop.xlane.xlu0 %2374
        %v2376 = vsel %vm354, %v2166, inf
        %2377 = vmin.xlane.f32.xlu0 %v2376
        %v2378 = vpop.xlane.xlu0 %2377
        %v2379 = vsel %vm354, %v2167, inf
        %2380 = vmin.xlane.f32.xlu0 %v2379
        %v2381 = vpop.xlane.xlu0 %2380
        %vm2382 = vcmp.eq.f32.partialorder %v2164, %v2372
        %vm2383 = vcmp.eq.f32.partialorder %v2165, %v2375
        %vm2384 = vcmp.eq.f32.partialorder %v2166, %v2378
        %vm2385 = vcmp.eq.f32.partialorder %v2167, %v2381
        %v2386 = vsel %vm2382, %v349, 64
        %v2387 = vsel %vm2383, %v349, 64
        %v2388 = vsel %vm2384, %v349, 64
        %v2389 = vsel %vm2385, %v349, 64
        %v2390 = vsel %vm354, %v2386, 2147483647
        %v2391 = vand.u32 %v2390, 65535
        %v2392 = vshra.s32 %v2390, 16
        %v2393 = vcvt.s32.f32 %v2391
        %v2394 = vcvt.s32.f32 %v2392
        %2395 = vmin.xlane.f32.xlu0 %v2394
        %v2396 = vpop.xlane.xlu0 %2395
        %vm2397 = vcmp.eq.f32.partialorder %v2394, %v2396
        %v2398 = vsel %vm2397, %v2393, inf
        %2399 = vmin.xlane.f32.xlu0 %v2398
        %v2400 = vpop.xlane.xlu0 %2399
        %v2401 = vcvt.f32.s32 %v2400
        %v2402 = vcvt.f32.s32 %v2396
        %v2403 = vshll.u32 %v2402, 16
        %v2404 = vadd.s32 %v2403, %v2401
        %v2405 = vsel %vm354, %v2387, 2147483647
        %v2406 = vand.u32 %v2405, 65535
        %v2407 = vshra.s32 %v2405, 16
        %v2408 = vcvt.s32.f32 %v2406
        %v2409 = vcvt.s32.f32 %v2407
        %2410 = vmin.xlane.f32.xlu0 %v2409
        %v2411 = vpop.xlane.xlu0 %2410
        %vm2412 = vcmp.eq.f32.partialorder %v2409, %v2411
        %v2413 = vsel %vm2412, %v2408, inf
        %2414 = vmin.xlane.f32.xlu0 %v2413
        %v2415 = vpop.xlane.xlu0 %2414
        %v2416 = vcvt.f32.s32 %v2415
        %v2417 = vcvt.f32.s32 %v2411
        %v2418 = vshll.u32 %v2417, 16
        %v2419 = vadd.s32 %v2418, %v2416
        %v2420 = vsel %vm354, %v2388, 2147483647
        %v2421 = vand.u32 %v2420, 65535
        %v2422 = vshra.s32 %v2420, 16
        %v2423 = vcvt.s32.f32 %v2421
        %v2424 = vcvt.s32.f32 %v2422
        %2425 = vmin.xlane.f32.xlu0 %v2424
        %v2426 = vpop.xlane.xlu0 %2425
        %vm2427 = vcmp.eq.f32.partialorder %v2424, %v2426
        %v2428 = vsel %vm2427, %v2423, inf
        %2429 = vmin.xlane.f32.xlu0 %v2428
        %v2430 = vpop.xlane.xlu0 %2429
        %v2431 = vcvt.f32.s32 %v2430
        %v2432 = vcvt.f32.s32 %v2426
        %v2433 = vshll.u32 %v2432, 16
        %v2434 = vadd.s32 %v2433, %v2431
        %v2435 = vsel %vm354, %v2389, 2147483647
        %v2436 = vand.u32 %v2435, 65535
        %v2437 = vshra.s32 %v2435, 16
        %v2438 = vcvt.s32.f32 %v2436
        %v2439 = vcvt.s32.f32 %v2437
        %2440 = vmin.xlane.f32.xlu0 %v2439
        %v2441 = vpop.xlane.xlu0 %2440
        %vm2442 = vcmp.eq.f32.partialorder %v2439, %v2441
        %v2443 = vsel %vm2442, %v2438, inf
        %2444 = vmin.xlane.f32.xlu0 %v2443
        %v2445 = vpop.xlane.xlu0 %2444
        %v2446 = vcvt.f32.s32 %v2445
        %v2447 = vcvt.f32.s32 %v2441
        %v2448 = vshll.u32 %v2447, 16
        %v2449 = vadd.s32 %v2448, %v2446
        %vm2450 = vcmp.eq.s32.totalorder %v349, %v2404
        %vm2451 = vcmp.eq.s32.totalorder %v349, %v2419
        %vm2452 = vcmp.eq.s32.totalorder %v349, %v2434
        %vm2453 = vcmp.eq.s32.totalorder %v349, %v2449
        %v2454 = vsel %vm2450, 1, 0
        %v2455 = vsel %vm2451, 1, 0
        %v2456 = vsel %vm2452, 1, 0
        %v2457 = vsel %vm2453, 1, 0
        %v2458 = vcvt.s32.f32 %v2454
        %v2459 = vcvt.s32.f32 %v2455
        %v2460 = vcvt.s32.f32 %v2456
        %v2461 = vcvt.s32.f32 %v2457
        %v2463 = vsel %vm354, %v2458, 0
        %v2466 = vsel %vm354, %v2459, 0
        %v2469 = vsel %vm354, %v2460, 0
        %v2472 = vsel %vm354, %v2461, 0
        %2474 = vmatprep.subr.mxu0 0.0
        %2475 = vmatpush1.msra.mxu0 %v237
        %2476 = vmatprep.subr.mxu0 0.0
        %2477 = vmatpush1.msra.mxu0 %v238
        %2478 = vmatprep.subr.mxu0 0.0
        %2479 = vmatpush1.msra.mxu0 %v239
        %2480 = vmatprep.subr.mxu0 0.0
        %2481 = vmatpush1.msra.mxu0 %v240
        %2482 = vmatprep.subr.mxu0 0.0
        %2483 = vmatpush1.msra.mxu0 %v241
        %2484 = vmatprep.subr.mxu0 0.0
        %2485 = vmatpush1.msra.mxu0 %v242
        %2486 = vmatprep.subr.mxu0 0.0
        %2487 = vmatpush1.msra.mxu0 %v243
        %2488 = vmatprep.subr.mxu0 0.0
        %2489 = vmatpush1.msra.mxu0 %v244
        %2490 = vmatprep.subr.mxu0 0.0
        %2491 = vmatpush1.msra.mxu0 0.0
        %2492 = vmatprep.subr.mxu0 0.0
        %2493 = vmatpush1.msra.mxu0 0.0
        %2494 = vmatprep.subr.mxu0 0.0
        %2495 = vmatpush1.msra.mxu0 0.0
        %2496 = vmatprep.subr.mxu0 0.0
        %2497 = vmatpush1.msra.mxu0 0.0
        %2498 = vmatprep.subr.mxu0 0.0
        %2499 = vmatpush1.msra.mxu0 0.0
        %2500 = vmatprep.subr.mxu0 0.0
        %2501 = vmatpush1.msra.mxu0 0.0
        %2502 = vmatprep.subr.mxu0 0.0
        %2503 = vmatpush1.msra.mxu0 0.0
        %2504 = vmatprep.subr.mxu0 0.0
        %2505 = vmatpush1.msra.mxu0 0.0
        %2506 = vmatprep.subr.mxu0 0.0
        %2507 = vmatpush1.msra.mxu0 0.0
        %2508 = vmatprep.subr.mxu0 0.0
        %2509 = vmatpush1.msra.mxu0 0.0
        %2510 = vmatprep.subr.mxu0 0.0
        %2511 = vmatpush1.msra.mxu0 0.0
        %2512 = vmatprep.subr.mxu0 0.0
        %2513 = vmatpush1.msra.mxu0 0.0
        %2514 = vmatprep.subr.mxu0 0.0
        %2515 = vmatpush1.msra.mxu0 0.0
        %2516 = vmatprep.subr.mxu0 0.0
        %2517 = vmatpush1.msra.mxu0 0.0
        %2518 = vmatprep.subr.mxu0 0.0
        %2519 = vmatpush1.msra.mxu0 0.0
        %2520 = vmatprep.subr.mxu0 0.0
        %2521 = vmatpush1.msra.mxu0 0.0
        %2522 = vmatprep.subr.mxu0 0.0
        %2523 = vmatpush1.msra.mxu0 0.0
        %2524 = vmatprep.subr.mxu0 0.0
        %2525 = vmatpush1.msra.mxu0 0.0
        %2526 = vmatprep.subr.mxu0 0.0
        %2527 = vmatpush1.msra.mxu0 0.0
        %2528 = vmatprep.subr.mxu0 0.0
        %2529 = vmatpush1.msra.mxu0 0.0
        %2530 = vmatprep.subr.mxu0 0.0
        %2531 = vmatpush1.msra.mxu0 0.0
        %2532 = vmatprep.subr.mxu0 0.0
        %2533 = vmatpush1.msra.mxu0 0.0
        %2534 = vmatprep.subr.mxu0 0.0
        %2535 = vmatpush1.msra.mxu0 0.0
        %2536 = vmatprep.subr.mxu0 0.0
        %2537 = vmatpush1.msra.mxu0 0.0
        %2538 = vmatprep.mubr.f32.mxu0 0.0
        %2539 = vmatmul.mubr.f32.gmra.mrb[0].mxu0 %v2463
        %v2540 = vpop.f32.mrb[0].mxu0
        %v2541 = vadd.f32 0.0, %v2540
        %v2542 = vpop.f32.mrb[0].mxu0
        %2543 = vmatprep.mubr.f32.mxu0 0.0
        %2544 = vmatmul.mubr.f32.gmra.mrb[0].mxu0 %v2466
        %v2545 = vpop.f32.mrb[0].mxu0
        %v2546 = vadd.f32 0.0, %v2545
        %v2547 = vpop.f32.mrb[0].mxu0
        %2548 = vmatprep.mubr.f32.mxu0 0.0
        %2549 = vmatmul.mubr.f32.gmra.mrb[0].mxu0 %v2469
        %v2550 = vpop.f32.mrb[0].mxu0
        %v2551 = vadd.f32 0.0, %v2550
        %v2552 = vpop.f32.mrb[0].mxu0
        %2553 = vmatprep.mubr.f32.mxu0 0.0
        %2554 = vmatmul.mubr.f32.gmra.mrb[0].mxu0 %v2472
        %v2555 = vpop.f32.mrb[0].mxu0
        %v2556 = vadd.f32 0.0, %v2555
        %v2557 = vpop.f32.mrb[0].mxu0
        %2558 = vdwg.mxu0
        %vm2559 = vcmp.ge.f32.partialorder 0.49, %v2372
        %vm2560 = vcmp.ge.f32.partialorder 0.49, %v2375
        %vm2561 = vcmp.ge.f32.partialorder 0.49, %v2378
        %vm2562 = vcmp.ge.f32.partialorder 0.49, %v2381
        %v2563 = vsel %vm2559, 1, 0
        %v2564 = vsel %vm2560, 1, 0
        %v2565 = vsel %vm2561, 1, 0
        %v2566 = vsel %vm2562, 1, 0
        %vm2567 = vcmp.eq.s32.totalorder %v2563, 1
        %vm2568 = vcmp.eq.s32.totalorder %v2564, 1
        %vm2569 = vcmp.eq.s32.totalorder %v2565, 1
        %vm2570 = vcmp.eq.s32.totalorder %v2566, 1
        %v2571 = vsel %vm2567, %v2541, 0.0
        %v2572 = vsel %vm2568, %v2546, 0.0
        %v2573 = vsel %vm2569, %v2551, 0.0
        %v2574 = vsel %vm2570, %v2556, 0.0
        %v2575 = vmul.f32 %v2571, -0.7142847
        %v2576 = vmul.f32 %v2572, -0.7142847
        %v2577 = vmul.f32 %v2573, -0.7142847
        %v2578 = vmul.f32 %v2574, -0.7142847
        %v2579 = vsub.f32 %v2575, %v350
        %v2580 = vsub.f32 %v2576, %v351
        %v2581 = vsub.f32 %v2577, %v352
        %v2582 = vsub.f32 %v2578, %v353
        %v2583 = vmax.f32 %v2372, 1e-09
        %v2584 = vmax.f32 %v2375, 1e-09
        %v2585 = vmax.f32 %v2378, 1e-09
        %v2586 = vmax.f32 %v2381, 1e-09
        %v2587 = vrsqrt.pop %v2583
        %v2588 = vmul.f32 %v2583, %v2587
        %vm2589 = vcmp.eq.f32.partialorder %v2583, inf
        %v2590 = vsel %vm2589, %v2583, %v2588
        %vm2591 = vcmp.eq.f32.partialorder %v2583, 0.0
        %v2592 = vand.u32 %v2583, 2147483648
        %v2593 = vsel %vm2591, %v2592, %v2590
        %v2594 = vrsqrt.pop %v2584
        %v2595 = vmul.f32 %v2584, %v2594
        %vm2596 = vcmp.eq.f32.partialorder %v2584, inf
        %v2597 = vsel %vm2596, %v2584, %v2595
        %vm2598 = vcmp.eq.f32.partialorder %v2584, 0.0
        %v2599 = vand.u32 %v2584, 2147483648
        %v2600 = vsel %vm2598, %v2599, %v2597
        %v2601 = vrsqrt.pop %v2585
        %v2602 = vmul.f32 %v2585, %v2601
        %vm2603 = vcmp.eq.f32.partialorder %v2585, inf
        %v2604 = vsel %vm2603, %v2585, %v2602
        %vm2605 = vcmp.eq.f32.partialorder %v2585, 0.0
        %v2606 = vand.u32 %v2585, 2147483648
        %v2607 = vsel %vm2605, %v2606, %v2604
        %v2608 = vrsqrt.pop %v2586
        %v2609 = vmul.f32 %v2586, %v2608
        %vm2610 = vcmp.eq.f32.partialorder %v2586, inf
        %v2611 = vsel %vm2610, %v2586, %v2609
        %vm2612 = vcmp.eq.f32.partialorder %v2586, 0.0
        %v2613 = vand.u32 %v2586, 2147483648
        %v2614 = vsel %vm2612, %v2613, %v2611
        %v2615 = vmul.f32 %v2593, 1.4285694
        %v2616 = vmul.f32 %v2600, 1.4285694
        %v2617 = vmul.f32 %v2607, 1.4285694
        %v2618 = vmul.f32 %v2614, 1.4285694
        %v2619 = vsel %vm2559, %v2404, 4294967295
        %v2620 = vsel %vm2560, %v2419, 4294967295
        %v2621 = vsel %vm2561, %v2434, 4294967295
        %v2622 = vsel %vm2562, %v2449, 4294967295
        %v2623 = vcvt.s32.f32 %v2619
        %v2624 = vcvt.s32.f32 %v2620
        %v2625 = vcvt.s32.f32 %v2621
        %v2626 = vcvt.s32.f32 %v2622
        %v2627 = vsel %vm616, %v2615, %v2579
        %v2628 = vsel %vm616, %v2616, %v2580
        %v2629 = vsel %vm616, %v2617, %v2581
        %v2630 = vsel %vm616, %v2618, %v2582
        %v2631 = vsel %vm621, %v2623, %v2627
        %v2632 = vsel %vm621, %v2624, %v2628
        %v2633 = vsel %vm621, %v2625, %v2629
        %v2634 = vsel %vm621, %v2626, %v2630
        %2639 = vrot.lane.b32.xlu0 %v2631, 56
        %v2640 = vpop.permute.xlu0 %2639
        %2641 = vrot.lane.b32.xlu0 %v2632, 56
        %v2642 = vpop.permute.xlu0 %2641
        %2643 = vrot.lane.b32.xlu0 %v2633, 56
        %v2644 = vpop.permute.xlu0 %2643
        %2645 = vrot.lane.b32.xlu0 %v2634, 56
        %v2646 = vpop.permute.xlu0 %2645
        %vm2651 = vcmask 523712
        %2652 = vst.msk [vmem:[%s216] sm:$0xff] %vm2651, %v2640
        %2653 = vst.msk [vmem:[%s216 + $0x8] sm:$0xff] %vm2651, %v2642
        %2654 = vst.msk [vmem:[%s216 + $0x10] sm:$0xff] %vm2651, %v2644
        %2655 = vst.msk [vmem:[%s216 + $0x18] sm:$0xff] %vm2651, %v2646
        %s2656 = sand.u32 %s119, 1
        %s2657 = scalar_lea.sflag [#allocation3], %s2656
        %s2658 = sand.u32 %s119, 1
        %s2659 = smul.addr %s2658, 32
        %s2660 = scalar_lea.vmem [#allocation2], %s2659
        // Predicated region
        $region33: #{tpu_custom_call.1} parent=31 // pred_check
          %p2661 = pneg %p129
        $region34: #{tpu_custom_call.1} parent=31 // pred_check_branch
          %2663 = sbr.rel (%p2661) target = $region36
        $region35: #{tpu_custom_call.1} parent=31 // pred_region
          %s2664 = smul.u32 4, %s22
          %s2666 = ssub.s32 512, 512
          %2667 = vsyncadd %s2657, %s2666
          %s2668 = smul.addr %s21, 4
          %s2669 = sadd.s32 %s2664, %s2668
          %s2670 = smul.addr %s2669, 128
          %s2671 = scalar_lea.hbm %s3, %s2670
          %s2672 = sshll.u32 %s2660, 4
          %s2673 = int_to_ptr.vmem [resolvable:$true] %s2672
          %2678 = dma.vmem_to_hbm [thread:$0]  %s2673, 512, %s2671, %s2657, 128, 128, 8
        $region36: #{tpu_custom_call.1} parent=31 // pred_fallthru
          _
      $region32: #{tpu_custom_call.1} parent=5 // pred_fallthru
        _
      %p2679 = scmp.le.s32.totalorder 2, %s12
      // Predicated region
      $region37: #{tpu_custom_call.1} parent=5 // pred_check
        %p2680 = pneg %p2679
      $region38: #{tpu_custom_call.1} parent=5 // pred_check_branch
        %2682 = sbr.rel (%p2680) target = $region40
      $region39: #{tpu_custom_call.1} parent=5 // pred_region
        %s2683 = ssub.s32 %s12, 2
        // Predicated region
        $region41: #{tpu_custom_call.1} parent=39 // pred_check
          %p2684 = pneg %p135
        $region42: #{tpu_custom_call.1} parent=39 // pred_check_branch
          %2686 = sbr.rel (%p2684) target = $region44
        $region43: #{tpu_custom_call.1} parent=39 // pred_region
          %s2687 = sand.u32 %s120, 1
          %s2688 = scalar_lea.sflag [#allocation3], %s2687
          %s2689 = sand.u32 %s120, 1
          %s2690 = smul.addr %s2689, 32
          %s2691 = scalar_lea.vmem [#allocation2], %s2690
          %2692 = dma.done %s2688, 512
        $region44: #{tpu_custom_call.1} parent=39 // pred_fallthru
          _
      $region40: #{tpu_custom_call.1} parent=5 // pred_fallthru
        _
    $region6: #{tpu_custom_call.1} parent=1 // loop_footer
      %s16 = sadd.s32 1, %s12
    $region7: #{tpu_custom_call.1} parent=1 // loop_footer_branch
      %11 = sbr.rel target = $region3
    $region8: #{tpu_custom_call.1} parent=1 // loop_exit
      _
    %2693 = vsyncpa [#allocation3], 1
    %s2694 = scalar_lea.sflag [#allocation3], 1
    %2695 = vsyncpa %s2694, 1

</llo_original>
